<compile_context>
chip_gen: v6e
topology: v6e:2x2x1
jax: 0.10.0
libtpu: 0.0.40
codegen_flags: <defaults>
</compile_context>

<pallas_src>
import jax
import jax.numpy as jnp
from jax import lax
from jax.experimental import pallas as pl
from jax.experimental.pallas import tpu as pltpu


def _matern_tile_kernel(ls_ref, xi_ref, xj_ref, xi_sq_ref, xj_sq_ref, out_ref):
    """One (tm, tn) tile of the Matern-5/2 covariance matrix.

    ls_ref    : (1,)    f32 SMEM   clamp(length_scale**-2, eps, 1e5)
    xi_ref    : (tm, D) f32 VMEM   rows of xi for this tile
    xj_ref    : (tn, D) f32 VMEM   rows of xj for this tile
    xi_sq_ref : (tm, 1) f32 VMEM   row squared norms of xi
    xj_sq_ref : (1, tn) f32 VMEM   row squared norms of xj
    out_ref   : (tm, tn) f32 VMEM  covariance tile
    """
    ls = ls_ref[0]

    # Cross term xi @ xj.T on the MXU, f32 accumulation.
    cross = lax.dot_general(
        xi_ref[...], xj_ref[...],
        dimension_numbers=(((1,), (1,)), ((), ())),
        preferred_element_type=jnp.float32,
        precision=lax.Precision.HIGHEST,
    )

    # Squared Mahalanobis distance with VI = ls * I.
    d2 = ls * (xi_sq_ref[...] + xj_sq_ref[...] - 2.0 * cross)
    # Clamp at 0 before sqrt to avoid NaNs from negative round-off.
    d2 = jnp.maximum(d2, 0.0)

    # Matern-5/2 nonlinearity: K = sqrt(5)*d ; out = (1 + K + K^2/3) * exp(-K)
    # sqrt/exp run on the EUP slot, polynomial on the VPU — fused with the matmul.
    k = jnp.sqrt(5.0 * d2)
    out_ref[...] = ((1.0 + k + (k * k) * (1.0 / 3.0)) * jnp.exp(-k)).astype(
        out_ref.dtype)


def _round_up(x, m):
    return (x + m - 1) // m * m


def matern_kernel_forward(xi, xj, length_scale, sigma_s=None, *,
                          eps=1e-6, max_val=1e5, tm=256, tn=256):
    """Pallas TPU equivalent of MaternKernel.forward(xi, xj).

    sigma_s is accepted for parameter parity with the PyTorch module but is not
    applied — the reference forward computes var_s and never uses it.
    """
    del sigma_s  # computed-but-unused in the PyTorch forward
    xi = jnp.asarray(xi, jnp.float32)
    xj = jnp.asarray(xj, jnp.float32)
    ni, d = xi.shape
    nj, d2 = xj.shape
    assert d == d2, "feature dimensions of xi and xj must match"

    # Scalar parameter preprocessing stays in plain JAX (2 VPU ops; a Pallas
    # launch would be pure overhead). Result goes to SMEM inside the kernel.
    ls = jnp.clip(jnp.asarray(length_scale, jnp.float32).reshape((1,)) ** -2.0,
                  eps, max_val)

    # Lane/sublane-aligned tiles: tm multiple of 8, tn multiple of 128
    # (lane-dense output tiles -> unmasked vector stores).
    tm = min(tm, _round_up(ni, 8))
    tn = min(tn, _round_up(nj, 128))
    ni_p = _round_up(ni, tm)
    nj_p = _round_up(nj, tn)
    xi_p = jnp.pad(xi, ((0, ni_p - ni), (0, 0)))
    xj_p = jnp.pad(xj, ((0, nj_p - nj), (0, 0)))

    # Row squared norms computed once (O(N*D)); the kernel does the O(N^2) work.
    xi_sq = jnp.sum(xi_p * xi_p, axis=-1, keepdims=True)       # (ni_p, 1)
    xj_sq = jnp.sum(xj_p * xj_p, axis=-1, keepdims=True).T     # (1, nj_p)

    grid = (ni_p // tm, nj_p // tn)

    out = pl.pallas_call(
        _matern_tile_kernel,
        out_shape=jax.ShapeDtypeStruct((ni_p, nj_p), jnp.float32),
        grid=grid,
        in_specs=[
            pl.BlockSpec(memory_space=pltpu.MemorySpace.SMEM),   # ls scalar
            pl.BlockSpec((tm, d), lambda i, j: (i, 0)),          # xi tile
            pl.BlockSpec((tn, d), lambda i, j: (j, 0)),          # xj tile
            pl.BlockSpec((tm, 1), lambda i, j: (i, 0)),          # ||xi||^2 column
            pl.BlockSpec((1, tn), lambda i, j: (0, j)),          # ||xj||^2 row
        ],
        out_specs=pl.BlockSpec((tm, tn), lambda i, j: (i, j)),
        compiler_params=pltpu.CompilerParams(
            dimension_semantics=("parallel", "parallel")),
    )(ls, xi_p, xj_p, xi_sq, xj_sq)

    return out[:ni, :nj]


def matern_reference(xi, xj, length_scale, eps=1e-6, max_val=1e5):
    """Plain-JAX reference mirroring the PyTorch forward (in float32)."""
    xi = jnp.asarray(xi, jnp.float32)
    xj = jnp.asarray(xj, jnp.float32)
    ls = jnp.clip(jnp.asarray(length_scale, jnp.float32).reshape(()) ** -2.0,
                  eps, max_val)
    cross = jnp.matmul(xi, xj.T, precision=lax.Precision.HIGHEST)
    d2 = ls * (jnp.sum(xi * xi, axis=-1)[:, None]
               + jnp.sum(xj * xj, axis=-1)[None, :]
               - 2.0 * cross)
    d2 = jnp.maximum(d2, 0.0)
    k = jnp.sqrt(5.0 * d2)
    return (1.0 + k + (k * k) / 3.0) * jnp.exp(-k)


if __name__ == "__main__":
    key = jax.random.PRNGKey(0)
    k_ls, k_sig, k_xi, k_xj = jax.random.split(key, 4)

    # Deterministic parameter init mirroring: torch.randn(1).abs()
    length_scale = jnp.abs(jax.random.normal(k_ls, (1,), dtype=jnp.float32))
    sigma_s = jnp.abs(jax.random.normal(k_sig, (1,), dtype=jnp.float32))

    # Small example inputs consistent with the module: (N, D) feature matrices.
    ni, nj, d = 256, 192, 16   # nj=192 exercises the padding/slicing path
    xi = jax.random.normal(k_xi, (ni, d), dtype=jnp.float32)
    xj = jax.random.normal(k_xj, (nj, d), dtype=jnp.float32)

    out = matern_kernel_forward(xi, xj, length_scale, sigma_s)
    out = jax.block_until_ready(out)

    ref = matern_reference(xi, xj, length_scale)
    assert out.shape == (ni, nj), out.shape
    assert bool(jnp.all(jnp.isfinite(out)))
    assert jnp.allclose(out, ref, rtol=1e-3, atol=1e-3), (
        "max abs err:", float(jnp.max(jnp.abs(out - ref))))

    print("KERNEL_OK")
</pallas_src>

<mosaic_0001>
module attributes {stable_mosaic.version = 11 : i64} {
  func.func @_matern_tile_kernel(%arg0: i32, %arg1: i32, %arg2: memref<1xf32, #tpu.memory_space<smem>>, %arg3: memref<256x16xf32, #tpu.memory_space<vmem>>, %arg4: memref<256x16xf32, #tpu.memory_space<vmem>>, %arg5: memref<256x1xf32, #tpu.memory_space<vmem>>, %arg6: memref<1x256xf32, #tpu.memory_space<vmem>>, %arg7: memref<256x256xf32, #tpu.memory_space<vmem>>) attributes {dimension_semantics = [#tpu.dimension_semantics<parallel>, #tpu.dimension_semantics<parallel>], iteration_bounds = array<i64: 1, 1>, scalar_prefetch = 0 : i64, scratch_operands = 0 : i64, tpu.core_type = #tpu.core_type<tc>, window_params = [{transform_indices = @transform_0, window_bounds = array<i64: 1>}, {transform_indices = @transform_1, window_bounds = array<i64: 256, 16>}, {transform_indices = @transform_2, window_bounds = array<i64: 256, 16>}, {transform_indices = @transform_3, window_bounds = array<i64: 256, 1>}, {transform_indices = @transform_4, window_bounds = array<i64: 1, 256>}, {transform_indices = @transform_5, window_bounds = array<i64: 256, 256>}]} {
    %c0 = arith.constant 0 : index
    %0 = memref.load %arg2[%c0] : memref<1xf32, #tpu.memory_space<smem>>
    %c0_0 = arith.constant 0 : index
    %c0_1 = arith.constant 0 : index
    %1 = vector.load %arg3[%c0_0, %c0_1] : memref<256x16xf32, #tpu.memory_space<vmem>>, vector<256x16xf32>
    %c0_2 = arith.constant 0 : index
    %c0_3 = arith.constant 0 : index
    %2 = vector.load %arg4[%c0_2, %c0_3] : memref<256x16xf32, #tpu.memory_space<vmem>>, vector<256x16xf32>
    %cst = arith.constant dense<0.000000e+00> : vector<256x256xf32>
    %3 = tpu.matmul %1, %2, %cst {dimension_numbers = #tpu.dot_dimension_numbers<[1], [1], [0], [0], [0, 0, 1, 0], [], []>, precision = #tpu.contract_precision<fp32>} : vector<256x16xf32>, vector<256x16xf32>, vector<256x256xf32> -> vector<256x256xf32>
    %c0_4 = arith.constant 0 : index
    %c0_5 = arith.constant 0 : index
    %4 = vector.load %arg5[%c0_4, %c0_5] : memref<256x1xf32, #tpu.memory_space<vmem>>, vector<256x1xf32>
    %c0_6 = arith.constant 0 : index
    %c0_7 = arith.constant 0 : index
    %5 = vector.load %arg6[%c0_6, %c0_7] : memref<1x256xf32, #tpu.memory_space<vmem>>, vector<1x256xf32>
    %6 = vector.broadcast %4 : vector<256x1xf32> to vector<256x256xf32>
    %7 = vector.broadcast %5 : vector<1x256xf32> to vector<256x256xf32>
    %8 = arith.addf %6, %7 : vector<256x256xf32>
    %cst_8 = arith.constant 2.000000e+00 : f32
    %9 = vector.broadcast %cst_8 : f32 to vector<256x256xf32>
    %10 = arith.mulf %9, %3 : vector<256x256xf32>
    %11 = arith.subf %8, %10 : vector<256x256xf32>
    %12 = vector.broadcast %0 : f32 to vector<256x256xf32>
    %13 = arith.mulf %12, %11 : vector<256x256xf32>
    %cst_9 = arith.constant 0.000000e+00 : f32
    %14 = vector.broadcast %cst_9 : f32 to vector<256x256xf32>
    %15 = arith.maximumf %13, %14 : vector<256x256xf32>
    %cst_10 = arith.constant 5.000000e+00 : f32
    %16 = vector.broadcast %cst_10 : f32 to vector<256x256xf32>
    %17 = arith.mulf %16, %15 : vector<256x256xf32>
    %18 = math.sqrt %17 : vector<256x256xf32>
    %cst_11 = arith.constant 1.000000e+00 : f32
    %19 = vector.broadcast %cst_11 : f32 to vector<256x256xf32>
    %20 = arith.addf %19, %18 : vector<256x256xf32>
    %21 = arith.mulf %18, %18 : vector<256x256xf32>
    %cst_12 = arith.constant 0.333333343 : f32
    %22 = vector.broadcast %cst_12 : f32 to vector<256x256xf32>
    %23 = arith.mulf %21, %22 : vector<256x256xf32>
    %24 = arith.addf %20, %23 : vector<256x256xf32>
    %cst_13 = arith.constant 0.000000e+00 : f32
    %25 = vector.broadcast %cst_13 : f32 to vector<256x256xf32>
    %26 = arith.subf %25, %18 : vector<256x256xf32>
    %27 = math.exp %26 : vector<256x256xf32>
    %28 = arith.mulf %24, %27 : vector<256x256xf32>
    %c0_14 = arith.constant 0 : index
    %c0_15 = arith.constant 0 : index
    %29 = vector.load %arg7[%c0_14, %c0_15] : memref<256x256xf32, #tpu.memory_space<vmem>>, vector<256x256xf32>
    tpu.vector_store %arg7[%c0_14, %c0_15], %28 {strides = array<i32>} : memref<256x256xf32, #tpu.memory_space<vmem>>, vector<256x256xf32>,
    return
  }
  func.func @transform_0(%arg0: i32, %arg1: i32) -> i32 {
    %c0_i32 = arith.constant 0 : i32
    %c0_i32_0 = arith.constant 0 : i32
    return %c0_i32 : i32
  }
  func.func @transform_1(%arg0: i32, %arg1: i32) -> (i32, i32) {
    %c0_i32 = arith.constant 0 : i32
    %c0_i32_0 = arith.constant 0 : i32
    return %arg0, %c0_i32 : i32, i32
  }
  func.func @transform_2(%arg0: i32, %arg1: i32) -> (i32, i32) {
    %c0_i32 = arith.constant 0 : i32
    %c0_i32_0 = arith.constant 0 : i32
    return %arg1, %c0_i32 : i32, i32
  }
  func.func @transform_3(%arg0: i32, %arg1: i32) -> (i32, i32) {
    %c0_i32 = arith.constant 0 : i32
    %c0_i32_0 = arith.constant 0 : i32
    return %arg0, %c0_i32 : i32, i32
  }
  func.func @transform_4(%arg0: i32, %arg1: i32) -> (i32, i32) {
    %c0_i32 = arith.constant 0 : i32
    %c0_i32_0 = arith.constant 0 : i32
    return %c0_i32, %arg1 : i32, i32
  }
  func.func @transform_5(%arg0: i32, %arg1: i32) -> (i32, i32) {
    %c0_i32 = arith.constant 0 : i32
    return %arg0, %arg1 : i32, i32
  }
}

</mosaic_0001>

<llo_original>
// kernel: tpu_custom_call.1
$region0: #{tpu_custom_call.1}
  #allocation0 [shape = 'u32[]', space=smem, size = 0x4, offset = 0x4, fixed_abs, tag = 'smem constant byte address 0x4 - core index']
  #allocation1 [shape = 'u32[144,128]{1,0:T(1,128)}', space=vmem, size = 0x12000, scoped, tag = 'internal scratch']
  #allocation2 [shape = 'f32[1]{0:T(128)S(6)}', space=smem, size = 0x200, scoped, tag = 'scoped memory for tpu_custom_call.1']
  %s0 = inlined_call_operand.<no memory space> [shape: f32[1], index: 0, kind: input, shape index: {}]
  %s1 = inlined_call_operand.vmem [shape: f32[256,16], index: 1, kind: input, shape index: {}]
  %s2 = inlined_call_operand.vmem [shape: f32[256,16], index: 2, kind: input, shape index: {}]
  %s3 = inlined_call_operand.vmem [shape: f32[256,1], index: 3, kind: input, shape index: {}]
  %s4 = inlined_call_operand.vmem [shape: f32[1,256], index: 4, kind: input, shape index: {}]
  %s5 = inlined_call_operand.hbm [shape: f32[256,256], index: 5, kind: output, shape index: {}]
  %s6 = sld [smem:[#allocation0]]
  $region30: #{tpu_custom_call.1} parent=0
    _
  %s8 = ssub.s32 1, %s6
  %s9 = scalar_select 0, %s8, %s6
  %10 = sst [smem:[#allocation2]] %s0
  $region1: #{tpu_custom_call.1} parent=0
    #allocation3 [shape = 'u8[262144]{0}', space=vmem, size = 0x40000, scoped, tag = 'output window, operand 0, single buffered']
    #allocation4 [shape = 's32[1]{0}', space=sflag, size = 0x4, scoped, tag = 'scoped memory for tpu_custom_call.1']
    %11 = vsyncpa [#allocation4], 0
    // Predicated region
    $region2: #{tpu_custom_call.1} parent=1 // pred_check
      _
    $region3: #{tpu_custom_call.1} parent=1 // pred_check_branch
      %13 = sbr.rel (0) target = $region5
    $region4: #{tpu_custom_call.1} parent=1 // pred_region
      _
    $region5: #{tpu_custom_call.1} parent=1 // pred_fallthru
      _
    // Predicated region
    $region6: #{tpu_custom_call.1} parent=1 // pred_check
      _
    $region7: #{tpu_custom_call.1} parent=1 // pred_check_branch
      %15 = sbr.rel (0) target = $region9
    $region8: #{tpu_custom_call.1} parent=1 // pred_region
      _
    $region9: #{tpu_custom_call.1} parent=1 // pred_fallthru
      _
    // Predicated region
    $region10: #{tpu_custom_call.1} parent=1 // pred_check
      _
    $region11: #{tpu_custom_call.1} parent=1 // pred_check_branch
      %17 = sbr.rel (0) target = $region13
    $region12: #{tpu_custom_call.1} parent=1 // pred_region
      _
    $region13: #{tpu_custom_call.1} parent=1 // pred_fallthru
      _
    // Predicated region
    $region14: #{tpu_custom_call.1} parent=1 // pred_check
      _
    $region15: #{tpu_custom_call.1} parent=1 // pred_check_branch
      %19 = sbr.rel (0) target = $region17
    $region16: #{tpu_custom_call.1} parent=1 // pred_region
      _
    $region17: #{tpu_custom_call.1} parent=1 // pred_fallthru
      _
    // Predicated region
    $region18: #{tpu_custom_call.1} parent=1 // pred_check
      _
    $region19: #{tpu_custom_call.1} parent=1 // pred_check_branch
      %21 = sbr.rel (0) target = $region21
    $region20: #{tpu_custom_call.1} parent=1 // pred_region
      _
    $region21: #{tpu_custom_call.1} parent=1 // pred_fallthru
      _
    %s22 = sld [smem:[#allocation2]]
    %v23 = vld [vmem:[%s1] sm:$0xff]
    %v24 = vld [vmem:[%s1 + $0x8] sm:$0xff]
    %v25 = vld [vmem:[%s1 + $0x10] sm:$0xff]
    %v26 = vld [vmem:[%s1 + $0x18] sm:$0xff]
    %v27 = vld [vmem:[%s1 + $0x20] sm:$0xff]
    %v28 = vld [vmem:[%s1 + $0x28] sm:$0xff]
    %v29 = vld [vmem:[%s1 + $0x30] sm:$0xff]
    %v30 = vld [vmem:[%s1 + $0x38] sm:$0xff]
    %v31 = vld [vmem:[%s1 + $0x40] sm:$0xff]
    %v32 = vld [vmem:[%s1 + $0x48] sm:$0xff]
    %v33 = vld [vmem:[%s1 + $0x50] sm:$0xff]
    %v34 = vld [vmem:[%s1 + $0x58] sm:$0xff]
    %v35 = vld [vmem:[%s1 + $0x60] sm:$0xff]
    %v36 = vld [vmem:[%s1 + $0x68] sm:$0xff]
    %v37 = vld [vmem:[%s1 + $0x70] sm:$0xff]
    %v38 = vld [vmem:[%s1 + $0x78] sm:$0xff]
    %v39 = vld [vmem:[%s1 + $0x80] sm:$0xff]
    %v40 = vld [vmem:[%s1 + $0x88] sm:$0xff]
    %v41 = vld [vmem:[%s1 + $0x90] sm:$0xff]
    %v42 = vld [vmem:[%s1 + $0x98] sm:$0xff]
    %v43 = vld [vmem:[%s1 + $0xa0] sm:$0xff]
    %v44 = vld [vmem:[%s1 + $0xa8] sm:$0xff]
    %v45 = vld [vmem:[%s1 + $0xb0] sm:$0xff]
    %v46 = vld [vmem:[%s1 + $0xb8] sm:$0xff]
    %v47 = vld [vmem:[%s1 + $0xc0] sm:$0xff]
    %v48 = vld [vmem:[%s1 + $0xc8] sm:$0xff]
    %v49 = vld [vmem:[%s1 + $0xd0] sm:$0xff]
    %v50 = vld [vmem:[%s1 + $0xd8] sm:$0xff]
    %v51 = vld [vmem:[%s1 + $0xe0] sm:$0xff]
    %v52 = vld [vmem:[%s1 + $0xe8] sm:$0xff]
    %v53 = vld [vmem:[%s1 + $0xf0] sm:$0xff]
    %v54 = vld [vmem:[%s1 + $0xf8] sm:$0xff]
    %v55 = vld [vmem:[%s2] sm:$0xff]
    %v56 = vld [vmem:[%s2 + $0x8] sm:$0xff]
    %v57 = vld [vmem:[%s2 + $0x10] sm:$0xff]
    %v58 = vld [vmem:[%s2 + $0x18] sm:$0xff]
    %v59 = vld [vmem:[%s2 + $0x20] sm:$0xff]
    %v60 = vld [vmem:[%s2 + $0x28] sm:$0xff]
    %v61 = vld [vmem:[%s2 + $0x30] sm:$0xff]
    %v62 = vld [vmem:[%s2 + $0x38] sm:$0xff]
    %v63 = vld [vmem:[%s2 + $0x40] sm:$0xff]
    %v64 = vld [vmem:[%s2 + $0x48] sm:$0xff]
    %v65 = vld [vmem:[%s2 + $0x50] sm:$0xff]
    %v66 = vld [vmem:[%s2 + $0x58] sm:$0xff]
    %v67 = vld [vmem:[%s2 + $0x60] sm:$0xff]
    %v68 = vld [vmem:[%s2 + $0x68] sm:$0xff]
    %v69 = vld [vmem:[%s2 + $0x70] sm:$0xff]
    %v70 = vld [vmem:[%s2 + $0x78] sm:$0xff]
    %v71 = vld [vmem:[%s2 + $0x80] sm:$0xff]
    %v72 = vld [vmem:[%s2 + $0x88] sm:$0xff]
    %v73 = vld [vmem:[%s2 + $0x90] sm:$0xff]
    %v74 = vld [vmem:[%s2 + $0x98] sm:$0xff]
    %v75 = vld [vmem:[%s2 + $0xa0] sm:$0xff]
    %v76 = vld [vmem:[%s2 + $0xa8] sm:$0xff]
    %v77 = vld [vmem:[%s2 + $0xb0] sm:$0xff]
    %v78 = vld [vmem:[%s2 + $0xb8] sm:$0xff]
    %v79 = vld [vmem:[%s2 + $0xc0] sm:$0xff]
    %v80 = vld [vmem:[%s2 + $0xc8] sm:$0xff]
    %v81 = vld [vmem:[%s2 + $0xd0] sm:$0xff]
    %v82 = vld [vmem:[%s2 + $0xd8] sm:$0xff]
    %v83 = vld [vmem:[%s2 + $0xe0] sm:$0xff]
    %v84 = vld [vmem:[%s2 + $0xe8] sm:$0xff]
    %v85 = vld [vmem:[%s2 + $0xf0] sm:$0xff]
    %v86 = vld [vmem:[%s2 + $0xf8] sm:$0xff]
    %vm87 = vcmask 130048
    %v89 = vsel %vm87, %v23, 0
    %v92 = vsel %vm87, %v24, 0
    %v95 = vsel %vm87, %v25, 0
    %v98 = vsel %vm87, %v26, 0
    %v101 = vsel %vm87, %v27, 0
    %v104 = vsel %vm87, %v28, 0
    %v107 = vsel %vm87, %v29, 0
    %v110 = vsel %vm87, %v30, 0
    %v113 = vsel %vm87, %v31, 0
    %v116 = vsel %vm87, %v32, 0
    %v119 = vsel %vm87, %v33, 0
    %v122 = vsel %vm87, %v34, 0
    %v125 = vsel %vm87, %v35, 0
    %v128 = vsel %vm87, %v36, 0
    %v131 = vsel %vm87, %v37, 0
    %v134 = vsel %vm87, %v38, 0
    %v137 = vsel %vm87, %v39, 0
    %v140 = vsel %vm87, %v40, 0
    %v143 = vsel %vm87, %v41, 0
    %v146 = vsel %vm87, %v42, 0
    %v149 = vsel %vm87, %v43, 0
    %v152 = vsel %vm87, %v44, 0
    %v155 = vsel %vm87, %v45, 0
    %v158 = vsel %vm87, %v46, 0
    %v161 = vsel %vm87, %v47, 0
    %v164 = vsel %vm87, %v48, 0
    %v167 = vsel %vm87, %v49, 0
    %v170 = vsel %vm87, %v50, 0
    %v173 = vsel %vm87, %v51, 0
    %v176 = vsel %vm87, %v52, 0
    %v179 = vsel %vm87, %v53, 0
    %v182 = vsel %vm87, %v54, 0
    %v185 = vsel %vm87, %v55, 0
    %v188 = vsel %vm87, %v56, 0
    %v191 = vsel %vm87, %v57, 0
    %v194 = vsel %vm87, %v58, 0
    %v197 = vsel %vm87, %v59, 0
    %v200 = vsel %vm87, %v60, 0
    %v203 = vsel %vm87, %v61, 0
    %v206 = vsel %vm87, %v62, 0
    %v209 = vsel %vm87, %v63, 0
    %v212 = vsel %vm87, %v64, 0
    %v215 = vsel %vm87, %v65, 0
    %v218 = vsel %vm87, %v66, 0
    %v221 = vsel %vm87, %v67, 0
    %v224 = vsel %vm87, %v68, 0
    %v227 = vsel %vm87, %v69, 0
    %v230 = vsel %vm87, %v70, 0
    %v233 = vsel %vm87, %v71, 0
    %v236 = vsel %vm87, %v72, 0
    %v239 = vsel %vm87, %v73, 0
    %v242 = vsel %vm87, %v74, 0
    %v245 = vsel %vm87, %v75, 0
    %v248 = vsel %vm87, %v76, 0
    %v251 = vsel %vm87, %v77, 0
    %v254 = vsel %vm87, %v78, 0
    %v257 = vsel %vm87, %v79, 0
    %v260 = vsel %vm87, %v80, 0
    %v263 = vsel %vm87, %v81, 0
    %v266 = vsel %vm87, %v82, 0
    %v269 = vsel %vm87, %v83, 0
    %v272 = vsel %vm87, %v84, 0
    %v275 = vsel %vm87, %v85, 0
    %v278 = vsel %vm87, %v86, 0
    %280 = vmatprep.subr.mxu0 0.0
    %v281 = vand.u32 %v230, 4294901760
    %282 = vmatpush1.xpose.msra.mxu0 %v281
    %283 = vmatprep.subr.mxu0 0.0
    %v284 = vand.u32 %v227, 4294901760
    %285 = vmatpush1.xpose.msra.mxu0 %v284
    %286 = vmatprep.subr.mxu0 0.0
    %v287 = vand.u32 %v224, 4294901760
    %288 = vmatpush1.xpose.msra.mxu0 %v287
    %289 = vmatprep.subr.mxu0 0.0
    %v290 = vand.u32 %v221, 4294901760
    %291 = vmatpush1.xpose.msra.mxu0 %v290
    %292 = vmatprep.subr.mxu0 0.0
    %v293 = vand.u32 %v218, 4294901760
    %294 = vmatpush1.xpose.msra.mxu0 %v293
    %295 = vmatprep.subr.mxu0 0.0
    %v296 = vand.u32 %v215, 4294901760
    %297 = vmatpush1.xpose.msra.mxu0 %v296
    %298 = vmatprep.subr.mxu0 0.0
    %v299 = vand.u32 %v212, 4294901760
    %300 = vmatpush1.xpose.msra.mxu0 %v299
    %301 = vmatprep.subr.mxu0 0.0
    %v302 = vand.u32 %v209, 4294901760
    %303 = vmatpush1.xpose.msra.mxu0 %v302
    %304 = vmatprep.subr.mxu0 0.0
    %v305 = vand.u32 %v206, 4294901760
    %306 = vmatpush1.xpose.msra.mxu0 %v305
    %307 = vmatprep.subr.mxu0 0.0
    %v308 = vand.u32 %v203, 4294901760
    %309 = vmatpush1.xpose.msra.mxu0 %v308
    %310 = vmatprep.subr.mxu0 0.0
    %v311 = vand.u32 %v200, 4294901760
    %312 = vmatpush1.xpose.msra.mxu0 %v311
    %313 = vmatprep.subr.mxu0 0.0
    %v314 = vand.u32 %v197, 4294901760
    %315 = vmatpush1.xpose.msra.mxu0 %v314
    %316 = vmatprep.subr.mxu0 0.0
    %v317 = vand.u32 %v194, 4294901760
    %318 = vmatpush1.xpose.msra.mxu0 %v317
    %319 = vmatprep.subr.mxu0 0.0
    %v320 = vand.u32 %v191, 4294901760
    %321 = vmatpush1.xpose.msra.mxu0 %v320
    %322 = vmatprep.subr.mxu0 0.0
    %v323 = vand.u32 %v188, 4294901760
    %324 = vmatpush1.xpose.msra.mxu0 %v323
    %325 = vmatprep.subr.mxu0 0.0
    %v326 = vand.u32 %v185, 4294901760
    %327 = vmatpush1.xpose.msra.mxu0 %v326
    %328 = vmatprep.subr.mxu0 0.0
    %v329 = vand.u32 %v278, 4294901760
    %330 = vmatpush2.xpose.msra.mxu0 %v329
    %331 = vmatprep.subr.mxu0 0.0
    %v332 = vand.u32 %v275, 4294901760
    %333 = vmatpush2.xpose.msra.mxu0 %v332
    %334 = vmatprep.subr.mxu0 0.0
    %v335 = vand.u32 %v272, 4294901760
    %336 = vmatpush2.xpose.msra.mxu0 %v335
    %337 = vmatprep.subr.mxu0 0.0
    %v338 = vand.u32 %v269, 4294901760
    %339 = vmatpush2.xpose.msra.mxu0 %v338
    %340 = vmatprep.subr.mxu0 0.0
    %v341 = vand.u32 %v266, 4294901760
    %342 = vmatpush2.xpose.msra.mxu0 %v341
    %343 = vmatprep.subr.mxu0 0.0
    %v344 = vand.u32 %v263, 4294901760
    %345 = vmatpush2.xpose.msra.mxu0 %v344
    %346 = vmatprep.subr.mxu0 0.0
    %v347 = vand.u32 %v260, 4294901760
    %348 = vmatpush2.xpose.msra.mxu0 %v347
    %349 = vmatprep.subr.mxu0 0.0
    %v350 = vand.u32 %v257, 4294901760
    %351 = vmatpush2.xpose.msra.mxu0 %v350
    %352 = vmatprep.subr.mxu0 0.0
    %v353 = vand.u32 %v254, 4294901760
    %354 = vmatpush2.xpose.msra.mxu0 %v353
    %355 = vmatprep.subr.mxu0 0.0
    %v356 = vand.u32 %v251, 4294901760
    %357 = vmatpush2.xpose.msra.mxu0 %v356
    %358 = vmatprep.subr.mxu0 0.0
    %v359 = vand.u32 %v248, 4294901760
    %360 = vmatpush2.xpose.msra.mxu0 %v359
    %361 = vmatprep.subr.mxu0 0.0
    %v362 = vand.u32 %v245, 4294901760
    %363 = vmatpush2.xpose.msra.mxu0 %v362
    %364 = vmatprep.subr.mxu0 0.0
    %v365 = vand.u32 %v242, 4294901760
    %366 = vmatpush2.xpose.msra.mxu0 %v365
    %367 = vmatprep.subr.mxu0 0.0
    %v368 = vand.u32 %v239, 4294901760
    %369 = vmatpush2.xpose.msra.mxu0 %v368
    %370 = vmatprep.subr.mxu0 0.0
    %v371 = vand.u32 %v236, 4294901760
    %372 = vmatpush2.xpose.msra.mxu0 %v371
    %373 = vmatprep.subr.mxu0 0.0
    %v374 = vand.u32 %v233, 4294901760
    %375 = vmatpush2.xpose.msra.mxu0 %v374
    %376 = vmatprep.mubr.f32.mxu0 0.0
    %v377 = vand.u32 %v89, 4294901760
    %v378 = vsub.f32 %v89, %v377
    %v379 = vand.u32 %v378, 4294901760
    %v380 = vsub.f32 %v378, %v379
    %v381 = vand.u32 %v380, 4294901760
    %382 = vmatmul.mubr.f32.gmra.mxu0 %v381
    %v383 = vpop.f32.mrf.mxu0
    %v384 = vadd.f32 0.0, %v383
    %v385 = vpop.f32.mrf.mxu0
    %v386 = vadd.f32 0.0, %v385
    %387 = vmatprep.mubr.f32.mxu0 0.0
    %v388 = vand.u32 %v92, 4294901760
    %v389 = vsub.f32 %v92, %v388
    %v390 = vand.u32 %v389, 4294901760
    %v391 = vsub.f32 %v389, %v390
    %v392 = vand.u32 %v391, 4294901760
    %393 = vmatmul.mubr.f32.gmra.mxu0 %v392
    %v394 = vpop.f32.mrf.mxu0
    %v395 = vadd.f32 0.0, %v394
    %v396 = vpop.f32.mrf.mxu0
    %v397 = vadd.f32 0.0, %v396
    %398 = vmatprep.mubr.f32.mxu0 0.0
    %v399 = vand.u32 %v95, 4294901760
    %v400 = vsub.f32 %v95, %v399
    %v401 = vand.u32 %v400, 4294901760
    %v402 = vsub.f32 %v400, %v401
    %v403 = vand.u32 %v402, 4294901760
    %404 = vmatmul.mubr.f32.gmra.mxu0 %v403
    %v405 = vpop.f32.mrf.mxu0
    %v406 = vadd.f32 0.0, %v405
    %v407 = vpop.f32.mrf.mxu0
    %v408 = vadd.f32 0.0, %v407
    %409 = vmatprep.mubr.f32.mxu0 0.0
    %v410 = vand.u32 %v98, 4294901760
    %v411 = vsub.f32 %v98, %v410
    %v412 = vand.u32 %v411, 4294901760
    %v413 = vsub.f32 %v411, %v412
    %v414 = vand.u32 %v413, 4294901760
    %415 = vmatmul.mubr.f32.gmra.mxu0 %v414
    %v416 = vpop.f32.mrf.mxu0
    %v417 = vadd.f32 0.0, %v416
    %v418 = vpop.f32.mrf.mxu0
    %v419 = vadd.f32 0.0, %v418
    %420 = vmatprep.mubr.f32.mxu0 0.0
    %v421 = vand.u32 %v101, 4294901760
    %v422 = vsub.f32 %v101, %v421
    %v423 = vand.u32 %v422, 4294901760
    %v424 = vsub.f32 %v422, %v423
    %v425 = vand.u32 %v424, 4294901760
    %426 = vmatmul.mubr.f32.gmra.mxu0 %v425
    %v427 = vpop.f32.mrf.mxu0
    %v428 = vadd.f32 0.0, %v427
    %v429 = vpop.f32.mrf.mxu0
    %v430 = vadd.f32 0.0, %v429
    %431 = vmatprep.mubr.f32.mxu0 0.0
    %v432 = vand.u32 %v104, 4294901760
    %v433 = vsub.f32 %v104, %v432
    %v434 = vand.u32 %v433, 4294901760
    %v435 = vsub.f32 %v433, %v434
    %v436 = vand.u32 %v435, 4294901760
    %437 = vmatmul.mubr.f32.gmra.mxu0 %v436
    %v438 = vpop.f32.mrf.mxu0
    %v439 = vadd.f32 0.0, %v438
    %v440 = vpop.f32.mrf.mxu0
    %v441 = vadd.f32 0.0, %v440
    %442 = vmatprep.mubr.f32.mxu0 0.0
    %v443 = vand.u32 %v107, 4294901760
    %v444 = vsub.f32 %v107, %v443
    %v445 = vand.u32 %v444, 4294901760
    %v446 = vsub.f32 %v444, %v445
    %v447 = vand.u32 %v446, 4294901760
    %448 = vmatmul.mubr.f32.gmra.mxu0 %v447
    %v449 = vpop.f32.mrf.mxu0
    %v450 = vadd.f32 0.0, %v449
    %v451 = vpop.f32.mrf.mxu0
    %v452 = vadd.f32 0.0, %v451
    %453 = vmatprep.mubr.f32.mxu0 0.0
    %v454 = vand.u32 %v110, 4294901760
    %v455 = vsub.f32 %v110, %v454
    %v456 = vand.u32 %v455, 4294901760
    %v457 = vsub.f32 %v455, %v456
    %v458 = vand.u32 %v457, 4294901760
    %459 = vmatmul.mubr.f32.gmra.mxu0 %v458
    %v460 = vpop.f32.mrf.mxu0
    %v461 = vadd.f32 0.0, %v460
    %v462 = vpop.f32.mrf.mxu0
    %v463 = vadd.f32 0.0, %v462
    %464 = vmatprep.mubr.f32.mxu0 0.0
    %v465 = vand.u32 %v113, 4294901760
    %v466 = vsub.f32 %v113, %v465
    %v467 = vand.u32 %v466, 4294901760
    %v468 = vsub.f32 %v466, %v467
    %v469 = vand.u32 %v468, 4294901760
    %470 = vmatmul.mubr.f32.gmra.mxu0 %v469
    %v471 = vpop.f32.mrf.mxu0
    %v472 = vadd.f32 0.0, %v471
    %v473 = vpop.f32.mrf.mxu0
    %v474 = vadd.f32 0.0, %v473
    %475 = vmatprep.mubr.f32.mxu0 0.0
    %v476 = vand.u32 %v116, 4294901760
    %v477 = vsub.f32 %v116, %v476
    %v478 = vand.u32 %v477, 4294901760
    %v479 = vsub.f32 %v477, %v478
    %v480 = vand.u32 %v479, 4294901760
    %481 = vmatmul.mubr.f32.gmra.mxu0 %v480
    %v482 = vpop.f32.mrf.mxu0
    %v483 = vadd.f32 0.0, %v482
    %v484 = vpop.f32.mrf.mxu0
    %v485 = vadd.f32 0.0, %v484
    %486 = vmatprep.mubr.f32.mxu0 0.0
    %v487 = vand.u32 %v119, 4294901760
    %v488 = vsub.f32 %v119, %v487
    %v489 = vand.u32 %v488, 4294901760
    %v490 = vsub.f32 %v488, %v489
    %v491 = vand.u32 %v490, 4294901760
    %492 = vmatmul.mubr.f32.gmra.mxu0 %v491
    %v493 = vpop.f32.mrf.mxu0
    %v494 = vadd.f32 0.0, %v493
    %v495 = vpop.f32.mrf.mxu0
    %v496 = vadd.f32 0.0, %v495
    %497 = vmatprep.mubr.f32.mxu0 0.0
    %v498 = vand.u32 %v122, 4294901760
    %v499 = vsub.f32 %v122, %v498
    %v500 = vand.u32 %v499, 4294901760
    %v501 = vsub.f32 %v499, %v500
    %v502 = vand.u32 %v501, 4294901760
    %503 = vmatmul.mubr.f32.gmra.mxu0 %v502
    %v504 = vpop.f32.mrf.mxu0
    %v505 = vadd.f32 0.0, %v504
    %v506 = vpop.f32.mrf.mxu0
    %v507 = vadd.f32 0.0, %v506
    %508 = vmatprep.mubr.f32.mxu0 0.0
    %v509 = vand.u32 %v125, 4294901760
    %v510 = vsub.f32 %v125, %v509
    %v511 = vand.u32 %v510, 4294901760
    %v512 = vsub.f32 %v510, %v511
    %v513 = vand.u32 %v512, 4294901760
    %514 = vmatmul.mubr.f32.gmra.mxu0 %v513
    %v515 = vpop.f32.mrf.mxu0
    %v516 = vadd.f32 0.0, %v515
    %v517 = vpop.f32.mrf.mxu0
    %v518 = vadd.f32 0.0, %v517
    %519 = vmatprep.mubr.f32.mxu0 0.0
    %v520 = vand.u32 %v128, 4294901760
    %v521 = vsub.f32 %v128, %v520
    %v522 = vand.u32 %v521, 4294901760
    %v523 = vsub.f32 %v521, %v522
    %v524 = vand.u32 %v523, 4294901760
    %525 = vmatmul.mubr.f32.gmra.mxu0 %v524
    %v526 = vpop.f32.mrf.mxu0
    %v527 = vadd.f32 0.0, %v526
    %v528 = vpop.f32.mrf.mxu0
    %v529 = vadd.f32 0.0, %v528
    %530 = vmatprep.mubr.f32.mxu0 0.0
    %v531 = vand.u32 %v131, 4294901760
    %v532 = vsub.f32 %v131, %v531
    %v533 = vand.u32 %v532, 4294901760
    %v534 = vsub.f32 %v532, %v533
    %v535 = vand.u32 %v534, 4294901760
    %536 = vmatmul.mubr.f32.gmra.mxu0 %v535
    %v537 = vpop.f32.mrf.mxu0
    %v538 = vadd.f32 0.0, %v537
    %v539 = vpop.f32.mrf.mxu0
    %v540 = vadd.f32 0.0, %v539
    %541 = vmatprep.mubr.f32.mxu0 0.0
    %v542 = vand.u32 %v134, 4294901760
    %v543 = vsub.f32 %v134, %v542
    %v544 = vand.u32 %v543, 4294901760
    %v545 = vsub.f32 %v543, %v544
    %v546 = vand.u32 %v545, 4294901760
    %547 = vmatmul.mubr.f32.gmra.mxu0 %v546
    %v548 = vpop.f32.mrf.mxu0
    %v549 = vadd.f32 0.0, %v548
    %v550 = vpop.f32.mrf.mxu0
    %v551 = vadd.f32 0.0, %v550
    %552 = vmatprep.mubr.f32.mxu0 0.0
    %v553 = vand.u32 %v137, 4294901760
    %v554 = vsub.f32 %v137, %v553
    %v555 = vand.u32 %v554, 4294901760
    %v556 = vsub.f32 %v554, %v555
    %v557 = vand.u32 %v556, 4294901760
    %558 = vmatmul.mubr.f32.gmra.mxu0 %v557
    %v559 = vpop.f32.mrf.mxu0
    %v560 = vadd.f32 0.0, %v559
    %v561 = vpop.f32.mrf.mxu0
    %v562 = vadd.f32 0.0, %v561
    %563 = vmatprep.mubr.f32.mxu0 0.0
    %v564 = vand.u32 %v140, 4294901760
    %v565 = vsub.f32 %v140, %v564
    %v566 = vand.u32 %v565, 4294901760
    %v567 = vsub.f32 %v565, %v566
    %v568 = vand.u32 %v567, 4294901760
    %569 = vmatmul.mubr.f32.gmra.mxu0 %v568
    %v570 = vpop.f32.mrf.mxu0
    %v571 = vadd.f32 0.0, %v570
    %v572 = vpop.f32.mrf.mxu0
    %v573 = vadd.f32 0.0, %v572
    %574 = vmatprep.mubr.f32.mxu0 0.0
    %v575 = vand.u32 %v143, 4294901760
    %v576 = vsub.f32 %v143, %v575
    %v577 = vand.u32 %v576, 4294901760
    %v578 = vsub.f32 %v576, %v577
    %v579 = vand.u32 %v578, 4294901760
    %580 = vmatmul.mubr.f32.gmra.mxu0 %v579
    %v581 = vpop.f32.mrf.mxu0
    %v582 = vadd.f32 0.0, %v581
    %v583 = vpop.f32.mrf.mxu0
    %v584 = vadd.f32 0.0, %v583
    %585 = vmatprep.mubr.f32.mxu0 0.0
    %v586 = vand.u32 %v146, 4294901760
    %v587 = vsub.f32 %v146, %v586
    %v588 = vand.u32 %v587, 4294901760
    %v589 = vsub.f32 %v587, %v588
    %v590 = vand.u32 %v589, 4294901760
    %591 = vmatmul.mubr.f32.gmra.mxu0 %v590
    %v592 = vpop.f32.mrf.mxu0
    %v593 = vadd.f32 0.0, %v592
    %v594 = vpop.f32.mrf.mxu0
    %v595 = vadd.f32 0.0, %v594
    %596 = vmatprep.mubr.f32.mxu0 0.0
    %v597 = vand.u32 %v149, 4294901760
    %v598 = vsub.f32 %v149, %v597
    %v599 = vand.u32 %v598, 4294901760
    %v600 = vsub.f32 %v598, %v599
    %v601 = vand.u32 %v600, 4294901760
    %602 = vmatmul.mubr.f32.gmra.mxu0 %v601
    %v603 = vpop.f32.mrf.mxu0
    %v604 = vadd.f32 0.0, %v603
    %v605 = vpop.f32.mrf.mxu0
    %v606 = vadd.f32 0.0, %v605
    %607 = vmatprep.mubr.f32.mxu0 0.0
    %v608 = vand.u32 %v152, 4294901760
    %v609 = vsub.f32 %v152, %v608
    %v610 = vand.u32 %v609, 4294901760
    %v611 = vsub.f32 %v609, %v610
    %v612 = vand.u32 %v611, 4294901760
    %613 = vmatmul.mubr.f32.gmra.mxu0 %v612
    %v614 = vpop.f32.mrf.mxu0
    %v615 = vadd.f32 0.0, %v614
    %v616 = vpop.f32.mrf.mxu0
    %v617 = vadd.f32 0.0, %v616
    %618 = vmatprep.mubr.f32.mxu0 0.0
    %v619 = vand.u32 %v155, 4294901760
    %v620 = vsub.f32 %v155, %v619
    %v621 = vand.u32 %v620, 4294901760
    %v622 = vsub.f32 %v620, %v621
    %v623 = vand.u32 %v622, 4294901760
    %624 = vmatmul.mubr.f32.gmra.mxu0 %v623
    %v625 = vpop.f32.mrf.mxu0
    %v626 = vadd.f32 0.0, %v625
    %v627 = vpop.f32.mrf.mxu0
    %v628 = vadd.f32 0.0, %v627
    %629 = vmatprep.mubr.f32.mxu0 0.0
    %v630 = vand.u32 %v158, 4294901760
    %v631 = vsub.f32 %v158, %v630
    %v632 = vand.u32 %v631, 4294901760
    %v633 = vsub.f32 %v631, %v632
    %v634 = vand.u32 %v633, 4294901760
    %635 = vmatmul.mubr.f32.gmra.mxu0 %v634
    %v636 = vpop.f32.mrf.mxu0
    %v637 = vadd.f32 0.0, %v636
    %v638 = vpop.f32.mrf.mxu0
    %v639 = vadd.f32 0.0, %v638
    %640 = vmatprep.mubr.f32.mxu0 0.0
    %v641 = vand.u32 %v161, 4294901760
    %v642 = vsub.f32 %v161, %v641
    %v643 = vand.u32 %v642, 4294901760
    %v644 = vsub.f32 %v642, %v643
    %v645 = vand.u32 %v644, 4294901760
    %646 = vmatmul.mubr.f32.gmra.mxu0 %v645
    %v647 = vpop.f32.mrf.mxu0
    %v648 = vadd.f32 0.0, %v647
    %v649 = vpop.f32.mrf.mxu0
    %v650 = vadd.f32 0.0, %v649
    %651 = vmatprep.mubr.f32.mxu0 0.0
    %v652 = vand.u32 %v164, 4294901760
    %v653 = vsub.f32 %v164, %v652
    %v654 = vand.u32 %v653, 4294901760
    %v655 = vsub.f32 %v653, %v654
    %v656 = vand.u32 %v655, 4294901760
    %657 = vmatmul.mubr.f32.gmra.mxu0 %v656
    %v658 = vpop.f32.mrf.mxu0
    %v659 = vadd.f32 0.0, %v658
    %v660 = vpop.f32.mrf.mxu0
    %v661 = vadd.f32 0.0, %v660
    %662 = vmatprep.mubr.f32.mxu0 0.0
    %v663 = vand.u32 %v167, 4294901760
    %v664 = vsub.f32 %v167, %v663
    %v665 = vand.u32 %v664, 4294901760
    %v666 = vsub.f32 %v664, %v665
    %v667 = vand.u32 %v666, 4294901760
    %668 = vmatmul.mubr.f32.gmra.mxu0 %v667
    %v669 = vpop.f32.mrf.mxu0
    %v670 = vadd.f32 0.0, %v669
    %v671 = vpop.f32.mrf.mxu0
    %v672 = vadd.f32 0.0, %v671
    %673 = vmatprep.mubr.f32.mxu0 0.0
    %v674 = vand.u32 %v170, 4294901760
    %v675 = vsub.f32 %v170, %v674
    %v676 = vand.u32 %v675, 4294901760
    %v677 = vsub.f32 %v675, %v676
    %v678 = vand.u32 %v677, 4294901760
    %679 = vmatmul.mubr.f32.gmra.mxu0 %v678
    %v680 = vpop.f32.mrf.mxu0
    %v681 = vadd.f32 0.0, %v680
    %v682 = vpop.f32.mrf.mxu0
    %v683 = vadd.f32 0.0, %v682
    %684 = vmatprep.mubr.f32.mxu0 0.0
    %v685 = vand.u32 %v173, 4294901760
    %v686 = vsub.f32 %v173, %v685
    %v687 = vand.u32 %v686, 4294901760
    %v688 = vsub.f32 %v686, %v687
    %v689 = vand.u32 %v688, 4294901760
    %690 = vmatmul.mubr.f32.gmra.mxu0 %v689
    %v691 = vpop.f32.mrf.mxu0
    %v692 = vadd.f32 0.0, %v691
    %v693 = vpop.f32.mrf.mxu0
    %v694 = vadd.f32 0.0, %v693
    %695 = vmatprep.mubr.f32.mxu0 0.0
    %v696 = vand.u32 %v176, 4294901760
    %v697 = vsub.f32 %v176, %v696
    %v698 = vand.u32 %v697, 4294901760
    %v699 = vsub.f32 %v697, %v698
    %v700 = vand.u32 %v699, 4294901760
    %701 = vmatmul.mubr.f32.gmra.mxu0 %v700
    %v702 = vpop.f32.mrf.mxu0
    %v703 = vadd.f32 0.0, %v702
    %v704 = vpop.f32.mrf.mxu0
    %v705 = vadd.f32 0.0, %v704
    %706 = vmatprep.mubr.f32.mxu0 0.0
    %v707 = vand.u32 %v179, 4294901760
    %v708 = vsub.f32 %v179, %v707
    %v709 = vand.u32 %v708, 4294901760
    %v710 = vsub.f32 %v708, %v709
    %v711 = vand.u32 %v710, 4294901760
    %712 = vmatmul.mubr.f32.gmra.mxu0 %v711
    %v713 = vpop.f32.mrf.mxu0
    %v714 = vadd.f32 0.0, %v713
    %v715 = vpop.f32.mrf.mxu0
    %v716 = vadd.f32 0.0, %v715
    %717 = vmatprep.mubr.f32.mxu0 0.0
    %v718 = vand.u32 %v182, 4294901760
    %v719 = vsub.f32 %v182, %v718
    %v720 = vand.u32 %v719, 4294901760
    %v721 = vsub.f32 %v719, %v720
    %v722 = vand.u32 %v721, 4294901760
    %723 = vmatmul.mubr.f32.gmra.mxu0 %v722
    %v724 = vpop.f32.mrf.mxu0
    %v725 = vadd.f32 0.0, %v724
    %v726 = vpop.f32.mrf.mxu0
    %v727 = vadd.f32 0.0, %v726
    %728 = vdwg.mxu0
    %729 = vmatprep.subr.mxu0 0.0
    %v730 = vand.u32 %v230, 4294901760
    %v731 = vsub.f32 %v230, %v730
    %v732 = vand.u32 %v731, 4294901760
    %v733 = vsub.f32 %v731, %v732
    %v734 = vand.u32 %v733, 4294901760
    %735 = vmatpush1.xpose.msra.mxu0 %v734
    %736 = vmatprep.subr.mxu0 0.0
    %v737 = vand.u32 %v227, 4294901760
    %v738 = vsub.f32 %v227, %v737
    %v739 = vand.u32 %v738, 4294901760
    %v740 = vsub.f32 %v738, %v739
    %v741 = vand.u32 %v740, 4294901760
    %742 = vmatpush1.xpose.msra.mxu0 %v741
    %743 = vmatprep.subr.mxu0 0.0
    %v744 = vand.u32 %v224, 4294901760
    %v745 = vsub.f32 %v224, %v744
    %v746 = vand.u32 %v745, 4294901760
    %v747 = vsub.f32 %v745, %v746
    %v748 = vand.u32 %v747, 4294901760
    %749 = vmatpush1.xpose.msra.mxu0 %v748
    %750 = vmatprep.subr.mxu0 0.0
    %v751 = vand.u32 %v221, 4294901760
    %v752 = vsub.f32 %v221, %v751
    %v753 = vand.u32 %v752, 4294901760
    %v754 = vsub.f32 %v752, %v753
    %v755 = vand.u32 %v754, 4294901760
    %756 = vmatpush1.xpose.msra.mxu0 %v755
    %757 = vmatprep.subr.mxu0 0.0
    %v758 = vand.u32 %v218, 4294901760
    %v759 = vsub.f32 %v218, %v758
    %v760 = vand.u32 %v759, 4294901760
    %v761 = vsub.f32 %v759, %v760
    %v762 = vand.u32 %v761, 4294901760
    %763 = vmatpush1.xpose.msra.mxu0 %v762
    %764 = vmatprep.subr.mxu0 0.0
    %v765 = vand.u32 %v215, 4294901760
    %v766 = vsub.f32 %v215, %v765
    %v767 = vand.u32 %v766, 4294901760
    %v768 = vsub.f32 %v766, %v767
    %v769 = vand.u32 %v768, 4294901760
    %770 = vmatpush1.xpose.msra.mxu0 %v769
    %771 = vmatprep.subr.mxu0 0.0
    %v772 = vand.u32 %v212, 4294901760
    %v773 = vsub.f32 %v212, %v772
    %v774 = vand.u32 %v773, 4294901760
    %v775 = vsub.f32 %v773, %v774
    %v776 = vand.u32 %v775, 4294901760
    %777 = vmatpush1.xpose.msra.mxu0 %v776
    %778 = vmatprep.subr.mxu0 0.0
    %v779 = vand.u32 %v209, 4294901760
    %v780 = vsub.f32 %v209, %v779
    %v781 = vand.u32 %v780, 4294901760
    %v782 = vsub.f32 %v780, %v781
    %v783 = vand.u32 %v782, 4294901760
    %784 = vmatpush1.xpose.msra.mxu0 %v783
    %785 = vmatprep.subr.mxu0 0.0
    %v786 = vand.u32 %v206, 4294901760
    %v787 = vsub.f32 %v206, %v786
    %v788 = vand.u32 %v787, 4294901760
    %v789 = vsub.f32 %v787, %v788
    %v790 = vand.u32 %v789, 4294901760
    %791 = vmatpush1.xpose.msra.mxu0 %v790
    %792 = vmatprep.subr.mxu0 0.0
    %v793 = vand.u32 %v203, 4294901760
    %v794 = vsub.f32 %v203, %v793
    %v795 = vand.u32 %v794, 4294901760
    %v796 = vsub.f32 %v794, %v795
    %v797 = vand.u32 %v796, 4294901760
    %798 = vmatpush1.xpose.msra.mxu0 %v797
    %799 = vmatprep.subr.mxu0 0.0
    %v800 = vand.u32 %v200, 4294901760
    %v801 = vsub.f32 %v200, %v800
    %v802 = vand.u32 %v801, 4294901760
    %v803 = vsub.f32 %v801, %v802
    %v804 = vand.u32 %v803, 4294901760
    %805 = vmatpush1.xpose.msra.mxu0 %v804
    %806 = vmatprep.subr.mxu0 0.0
    %v807 = vand.u32 %v197, 4294901760
    %v808 = vsub.f32 %v197, %v807
    %v809 = vand.u32 %v808, 4294901760
    %v810 = vsub.f32 %v808, %v809
    %v811 = vand.u32 %v810, 4294901760
    %812 = vmatpush1.xpose.msra.mxu0 %v811
    %813 = vmatprep.subr.mxu0 0.0
    %v814 = vand.u32 %v194, 4294901760
    %v815 = vsub.f32 %v194, %v814
    %v816 = vand.u32 %v815, 4294901760
    %v817 = vsub.f32 %v815, %v816
    %v818 = vand.u32 %v817, 4294901760
    %819 = vmatpush1.xpose.msra.mxu0 %v818
    %820 = vmatprep.subr.mxu0 0.0
    %v821 = vand.u32 %v191, 4294901760
    %v822 = vsub.f32 %v191, %v821
    %v823 = vand.u32 %v822, 4294901760
    %v824 = vsub.f32 %v822, %v823
    %v825 = vand.u32 %v824, 4294901760
    %826 = vmatpush1.xpose.msra.mxu0 %v825
    %827 = vmatprep.subr.mxu0 0.0
    %v828 = vand.u32 %v188, 4294901760
    %v829 = vsub.f32 %v188, %v828
    %v830 = vand.u32 %v829, 4294901760
    %v831 = vsub.f32 %v829, %v830
    %v832 = vand.u32 %v831, 4294901760
    %833 = vmatpush1.xpose.msra.mxu0 %v832
    %834 = vmatprep.subr.mxu0 0.0
    %v835 = vand.u32 %v185, 4294901760
    %v836 = vsub.f32 %v185, %v835
    %v837 = vand.u32 %v836, 4294901760
    %v838 = vsub.f32 %v836, %v837
    %v839 = vand.u32 %v838, 4294901760
    %840 = vmatpush1.xpose.msra.mxu0 %v839
    %841 = vmatprep.subr.mxu0 0.0
    %v842 = vand.u32 %v278, 4294901760
    %v843 = vsub.f32 %v278, %v842
    %v844 = vand.u32 %v843, 4294901760
    %v845 = vsub.f32 %v843, %v844
    %v846 = vand.u32 %v845, 4294901760
    %847 = vmatpush2.xpose.msra.mxu0 %v846
    %848 = vmatprep.subr.mxu0 0.0
    %v849 = vand.u32 %v275, 4294901760
    %v850 = vsub.f32 %v275, %v849
    %v851 = vand.u32 %v850, 4294901760
    %v852 = vsub.f32 %v850, %v851
    %v853 = vand.u32 %v852, 4294901760
    %854 = vmatpush2.xpose.msra.mxu0 %v853
    %855 = vmatprep.subr.mxu0 0.0
    %v856 = vand.u32 %v272, 4294901760
    %v857 = vsub.f32 %v272, %v856
    %v858 = vand.u32 %v857, 4294901760
    %v859 = vsub.f32 %v857, %v858
    %v860 = vand.u32 %v859, 4294901760
    %861 = vmatpush2.xpose.msra.mxu0 %v860
    %862 = vmatprep.subr.mxu0 0.0
    %v863 = vand.u32 %v269, 4294901760
    %v864 = vsub.f32 %v269, %v863
    %v865 = vand.u32 %v864, 4294901760
    %v866 = vsub.f32 %v864, %v865
    %v867 = vand.u32 %v866, 4294901760
    %868 = vmatpush2.xpose.msra.mxu0 %v867
    %869 = vmatprep.subr.mxu0 0.0
    %v870 = vand.u32 %v266, 4294901760
    %v871 = vsub.f32 %v266, %v870
    %v872 = vand.u32 %v871, 4294901760
    %v873 = vsub.f32 %v871, %v872
    %v874 = vand.u32 %v873, 4294901760
    %875 = vmatpush2.xpose.msra.mxu0 %v874
    %876 = vmatprep.subr.mxu0 0.0
    %v877 = vand.u32 %v263, 4294901760
    %v878 = vsub.f32 %v263, %v877
    %v879 = vand.u32 %v878, 4294901760
    %v880 = vsub.f32 %v878, %v879
    %v881 = vand.u32 %v880, 4294901760
    %882 = vmatpush2.xpose.msra.mxu0 %v881
    %883 = vmatprep.subr.mxu0 0.0
    %v884 = vand.u32 %v260, 4294901760
    %v885 = vsub.f32 %v260, %v884
    %v886 = vand.u32 %v885, 4294901760
    %v887 = vsub.f32 %v885, %v886
    %v888 = vand.u32 %v887, 4294901760
    %889 = vmatpush2.xpose.msra.mxu0 %v888
    %890 = vmatprep.subr.mxu0 0.0
    %v891 = vand.u32 %v257, 4294901760
    %v892 = vsub.f32 %v257, %v891
    %v893 = vand.u32 %v892, 4294901760
    %v894 = vsub.f32 %v892, %v893
    %v895 = vand.u32 %v894, 4294901760
    %896 = vmatpush2.xpose.msra.mxu0 %v895
    %897 = vmatprep.subr.mxu0 0.0
    %v898 = vand.u32 %v254, 4294901760
    %v899 = vsub.f32 %v254, %v898
    %v900 = vand.u32 %v899, 4294901760
    %v901 = vsub.f32 %v899, %v900
    %v902 = vand.u32 %v901, 4294901760
    %903 = vmatpush2.xpose.msra.mxu0 %v902
    %904 = vmatprep.subr.mxu0 0.0
    %v905 = vand.u32 %v251, 4294901760
    %v906 = vsub.f32 %v251, %v905
    %v907 = vand.u32 %v906, 4294901760
    %v908 = vsub.f32 %v906, %v907
    %v909 = vand.u32 %v908, 4294901760
    %910 = vmatpush2.xpose.msra.mxu0 %v909
    %911 = vmatprep.subr.mxu0 0.0
    %v912 = vand.u32 %v248, 4294901760
    %v913 = vsub.f32 %v248, %v912
    %v914 = vand.u32 %v913, 4294901760
    %v915 = vsub.f32 %v913, %v914
    %v916 = vand.u32 %v915, 4294901760
    %917 = vmatpush2.xpose.msra.mxu0 %v916
    %918 = vmatprep.subr.mxu0 0.0
    %v919 = vand.u32 %v245, 4294901760
    %v920 = vsub.f32 %v245, %v919
    %v921 = vand.u32 %v920, 4294901760
    %v922 = vsub.f32 %v920, %v921
    %v923 = vand.u32 %v922, 4294901760
    %924 = vmatpush2.xpose.msra.mxu0 %v923
    %925 = vmatprep.subr.mxu0 0.0
    %v926 = vand.u32 %v242, 4294901760
    %v927 = vsub.f32 %v242, %v926
    %v928 = vand.u32 %v927, 4294901760
    %v929 = vsub.f32 %v927, %v928
    %v930 = vand.u32 %v929, 4294901760
    %931 = vmatpush2.xpose.msra.mxu0 %v930
    %932 = vmatprep.subr.mxu0 0.0
    %v933 = vand.u32 %v239, 4294901760
    %v934 = vsub.f32 %v239, %v933
    %v935 = vand.u32 %v934, 4294901760
    %v936 = vsub.f32 %v934, %v935
    %v937 = vand.u32 %v936, 4294901760
    %938 = vmatpush2.xpose.msra.mxu0 %v937
    %939 = vmatprep.subr.mxu0 0.0
    %v940 = vand.u32 %v236, 4294901760
    %v941 = vsub.f32 %v236, %v940
    %v942 = vand.u32 %v941, 4294901760
    %v943 = vsub.f32 %v941, %v942
    %v944 = vand.u32 %v943, 4294901760
    %945 = vmatpush2.xpose.msra.mxu0 %v944
    %946 = vmatprep.subr.mxu0 0.0
    %v947 = vand.u32 %v233, 4294901760
    %v948 = vsub.f32 %v233, %v947
    %v949 = vand.u32 %v948, 4294901760
    %v950 = vsub.f32 %v948, %v949
    %v951 = vand.u32 %v950, 4294901760
    %952 = vmatpush2.xpose.msra.mxu0 %v951
    %953 = vmatprep.mubr.f32.mxu0 0.0
    %v954 = vand.u32 %v89, 4294901760
    %955 = vmatmul.mubr.f32.gmra.mxu0 %v954
    %v956 = vpop.f32.mrf.mxu0
    %v957 = vadd.f32 %v384, %v956
    %v958 = vpop.f32.mrf.mxu0
    %v959 = vadd.f32 %v386, %v958
    %960 = vmatprep.mubr.f32.mxu0 0.0
    %v961 = vand.u32 %v92, 4294901760
    %962 = vmatmul.mubr.f32.gmra.mxu0 %v961
    %v963 = vpop.f32.mrf.mxu0
    %v964 = vadd.f32 %v395, %v963
    %v965 = vpop.f32.mrf.mxu0
    %v966 = vadd.f32 %v397, %v965
    %967 = vmatprep.mubr.f32.mxu0 0.0
    %v968 = vand.u32 %v95, 4294901760
    %969 = vmatmul.mubr.f32.gmra.mxu0 %v968
    %v970 = vpop.f32.mrf.mxu0
    %v971 = vadd.f32 %v406, %v970
    %v972 = vpop.f32.mrf.mxu0
    %v973 = vadd.f32 %v408, %v972
    %974 = vmatprep.mubr.f32.mxu0 0.0
    %v975 = vand.u32 %v98, 4294901760
    %976 = vmatmul.mubr.f32.gmra.mxu0 %v975
    %v977 = vpop.f32.mrf.mxu0
    %v978 = vadd.f32 %v417, %v977
    %v979 = vpop.f32.mrf.mxu0
    %v980 = vadd.f32 %v419, %v979
    %981 = vmatprep.mubr.f32.mxu0 0.0
    %v982 = vand.u32 %v101, 4294901760
    %983 = vmatmul.mubr.f32.gmra.mxu0 %v982
    %v984 = vpop.f32.mrf.mxu0
    %v985 = vadd.f32 %v428, %v984
    %v986 = vpop.f32.mrf.mxu0
    %v987 = vadd.f32 %v430, %v986
    %988 = vmatprep.mubr.f32.mxu0 0.0
    %v989 = vand.u32 %v104, 4294901760
    %990 = vmatmul.mubr.f32.gmra.mxu0 %v989
    %v991 = vpop.f32.mrf.mxu0
    %v992 = vadd.f32 %v439, %v991
    %v993 = vpop.f32.mrf.mxu0
    %v994 = vadd.f32 %v441, %v993
    %995 = vmatprep.mubr.f32.mxu0 0.0
    %v996 = vand.u32 %v107, 4294901760
    %997 = vmatmul.mubr.f32.gmra.mxu0 %v996
    %v998 = vpop.f32.mrf.mxu0
    %v999 = vadd.f32 %v450, %v998
    %v1000 = vpop.f32.mrf.mxu0
    %v1001 = vadd.f32 %v452, %v1000
    %1002 = vmatprep.mubr.f32.mxu0 0.0
    %v1003 = vand.u32 %v110, 4294901760
    %1004 = vmatmul.mubr.f32.gmra.mxu0 %v1003
    %v1005 = vpop.f32.mrf.mxu0
    %v1006 = vadd.f32 %v461, %v1005
    %v1007 = vpop.f32.mrf.mxu0
    %v1008 = vadd.f32 %v463, %v1007
    %1009 = vmatprep.mubr.f32.mxu0 0.0
    %v1010 = vand.u32 %v113, 4294901760
    %1011 = vmatmul.mubr.f32.gmra.mxu0 %v1010
    %v1012 = vpop.f32.mrf.mxu0
    %v1013 = vadd.f32 %v472, %v1012
    %v1014 = vpop.f32.mrf.mxu0
    %v1015 = vadd.f32 %v474, %v1014
    %1016 = vmatprep.mubr.f32.mxu0 0.0
    %v1017 = vand.u32 %v116, 4294901760
    %1018 = vmatmul.mubr.f32.gmra.mxu0 %v1017
    %v1019 = vpop.f32.mrf.mxu0
    %v1020 = vadd.f32 %v483, %v1019
    %v1021 = vpop.f32.mrf.mxu0
    %v1022 = vadd.f32 %v485, %v1021
    %1023 = vmatprep.mubr.f32.mxu0 0.0
    %v1024 = vand.u32 %v119, 4294901760
    %1025 = vmatmul.mubr.f32.gmra.mxu0 %v1024
    %v1026 = vpop.f32.mrf.mxu0
    %v1027 = vadd.f32 %v494, %v1026
    %v1028 = vpop.f32.mrf.mxu0
    %v1029 = vadd.f32 %v496, %v1028
    %1030 = vmatprep.mubr.f32.mxu0 0.0
    %v1031 = vand.u32 %v122, 4294901760
    %1032 = vmatmul.mubr.f32.gmra.mxu0 %v1031
    %v1033 = vpop.f32.mrf.mxu0
    %v1034 = vadd.f32 %v505, %v1033
    %v1035 = vpop.f32.mrf.mxu0
    %v1036 = vadd.f32 %v507, %v1035
    %1037 = vmatprep.mubr.f32.mxu0 0.0
    %v1038 = vand.u32 %v125, 4294901760
    %1039 = vmatmul.mubr.f32.gmra.mxu0 %v1038
    %v1040 = vpop.f32.mrf.mxu0
    %v1041 = vadd.f32 %v516, %v1040
    %v1042 = vpop.f32.mrf.mxu0
    %v1043 = vadd.f32 %v518, %v1042
    %1044 = vmatprep.mubr.f32.mxu0 0.0
    %v1045 = vand.u32 %v128, 4294901760
    %1046 = vmatmul.mubr.f32.gmra.mxu0 %v1045
    %v1047 = vpop.f32.mrf.mxu0
    %v1048 = vadd.f32 %v527, %v1047
    %v1049 = vpop.f32.mrf.mxu0
    %v1050 = vadd.f32 %v529, %v1049
    %1051 = vmatprep.mubr.f32.mxu0 0.0
    %v1052 = vand.u32 %v131, 4294901760
    %1053 = vmatmul.mubr.f32.gmra.mxu0 %v1052
    %v1054 = vpop.f32.mrf.mxu0
    %v1055 = vadd.f32 %v538, %v1054
    %v1056 = vpop.f32.mrf.mxu0
    %v1057 = vadd.f32 %v540, %v1056
    %1058 = vmatprep.mubr.f32.mxu0 0.0
    %v1059 = vand.u32 %v134, 4294901760
    %1060 = vmatmul.mubr.f32.gmra.mxu0 %v1059
    %v1061 = vpop.f32.mrf.mxu0
    %v1062 = vadd.f32 %v549, %v1061
    %v1063 = vpop.f32.mrf.mxu0
    %v1064 = vadd.f32 %v551, %v1063
    %1065 = vmatprep.mubr.f32.mxu0 0.0
    %v1066 = vand.u32 %v137, 4294901760
    %1067 = vmatmul.mubr.f32.gmra.mxu0 %v1066
    %v1068 = vpop.f32.mrf.mxu0
    %v1069 = vadd.f32 %v560, %v1068
    %v1070 = vpop.f32.mrf.mxu0
    %v1071 = vadd.f32 %v562, %v1070
    %1072 = vmatprep.mubr.f32.mxu0 0.0
    %v1073 = vand.u32 %v140, 4294901760
    %1074 = vmatmul.mubr.f32.gmra.mxu0 %v1073
    %v1075 = vpop.f32.mrf.mxu0
    %v1076 = vadd.f32 %v571, %v1075
    %v1077 = vpop.f32.mrf.mxu0
    %v1078 = vadd.f32 %v573, %v1077
    %1079 = vmatprep.mubr.f32.mxu0 0.0
    %v1080 = vand.u32 %v143, 4294901760
    %1081 = vmatmul.mubr.f32.gmra.mxu0 %v1080
    %v1082 = vpop.f32.mrf.mxu0
    %v1083 = vadd.f32 %v582, %v1082
    %v1084 = vpop.f32.mrf.mxu0
    %v1085 = vadd.f32 %v584, %v1084
    %1086 = vmatprep.mubr.f32.mxu0 0.0
    %v1087 = vand.u32 %v146, 4294901760
    %1088 = vmatmul.mubr.f32.gmra.mxu0 %v1087
    %v1089 = vpop.f32.mrf.mxu0
    %v1090 = vadd.f32 %v593, %v1089
    %v1091 = vpop.f32.mrf.mxu0
    %v1092 = vadd.f32 %v595, %v1091
    %1093 = vmatprep.mubr.f32.mxu0 0.0
    %v1094 = vand.u32 %v149, 4294901760
    %1095 = vmatmul.mubr.f32.gmra.mxu0 %v1094
    %v1096 = vpop.f32.mrf.mxu0
    %v1097 = vadd.f32 %v604, %v1096
    %v1098 = vpop.f32.mrf.mxu0
    %v1099 = vadd.f32 %v606, %v1098
    %1100 = vmatprep.mubr.f32.mxu0 0.0
    %v1101 = vand.u32 %v152, 4294901760
    %1102 = vmatmul.mubr.f32.gmra.mxu0 %v1101
    %v1103 = vpop.f32.mrf.mxu0
    %v1104 = vadd.f32 %v615, %v1103
    %v1105 = vpop.f32.mrf.mxu0
    %v1106 = vadd.f32 %v617, %v1105
    %1107 = vmatprep.mubr.f32.mxu0 0.0
    %v1108 = vand.u32 %v155, 4294901760
    %1109 = vmatmul.mubr.f32.gmra.mxu0 %v1108
    %v1110 = vpop.f32.mrf.mxu0
    %v1111 = vadd.f32 %v626, %v1110
    %v1112 = vpop.f32.mrf.mxu0
    %v1113 = vadd.f32 %v628, %v1112
    %1114 = vmatprep.mubr.f32.mxu0 0.0
    %v1115 = vand.u32 %v158, 4294901760
    %1116 = vmatmul.mubr.f32.gmra.mxu0 %v1115
    %v1117 = vpop.f32.mrf.mxu0
    %v1118 = vadd.f32 %v637, %v1117
    %v1119 = vpop.f32.mrf.mxu0
    %v1120 = vadd.f32 %v639, %v1119
    %1121 = vmatprep.mubr.f32.mxu0 0.0
    %v1122 = vand.u32 %v161, 4294901760
    %1123 = vmatmul.mubr.f32.gmra.mxu0 %v1122
    %v1124 = vpop.f32.mrf.mxu0
    %v1125 = vadd.f32 %v648, %v1124
    %v1126 = vpop.f32.mrf.mxu0
    %v1127 = vadd.f32 %v650, %v1126
    %1128 = vmatprep.mubr.f32.mxu0 0.0
    %v1129 = vand.u32 %v164, 4294901760
    %1130 = vmatmul.mubr.f32.gmra.mxu0 %v1129
    %v1131 = vpop.f32.mrf.mxu0
    %v1132 = vadd.f32 %v659, %v1131
    %v1133 = vpop.f32.mrf.mxu0
    %v1134 = vadd.f32 %v661, %v1133
    %1135 = vmatprep.mubr.f32.mxu0 0.0
    %v1136 = vand.u32 %v167, 4294901760
    %1137 = vmatmul.mubr.f32.gmra.mxu0 %v1136
    %v1138 = vpop.f32.mrf.mxu0
    %v1139 = vadd.f32 %v670, %v1138
    %v1140 = vpop.f32.mrf.mxu0
    %v1141 = vadd.f32 %v672, %v1140
    %1142 = vmatprep.mubr.f32.mxu0 0.0
    %v1143 = vand.u32 %v170, 4294901760
    %1144 = vmatmul.mubr.f32.gmra.mxu0 %v1143
    %v1145 = vpop.f32.mrf.mxu0
    %v1146 = vadd.f32 %v681, %v1145
    %v1147 = vpop.f32.mrf.mxu0
    %v1148 = vadd.f32 %v683, %v1147
    %1149 = vmatprep.mubr.f32.mxu0 0.0
    %v1150 = vand.u32 %v173, 4294901760
    %1151 = vmatmul.mubr.f32.gmra.mxu0 %v1150
    %v1152 = vpop.f32.mrf.mxu0
    %v1153 = vadd.f32 %v692, %v1152
    %v1154 = vpop.f32.mrf.mxu0
    %v1155 = vadd.f32 %v694, %v1154
    %1156 = vmatprep.mubr.f32.mxu0 0.0
    %v1157 = vand.u32 %v176, 4294901760
    %1158 = vmatmul.mubr.f32.gmra.mxu0 %v1157
    %v1159 = vpop.f32.mrf.mxu0
    %v1160 = vadd.f32 %v703, %v1159
    %v1161 = vpop.f32.mrf.mxu0
    %v1162 = vadd.f32 %v705, %v1161
    %1163 = vmatprep.mubr.f32.mxu0 0.0
    %v1164 = vand.u32 %v179, 4294901760
    %1165 = vmatmul.mubr.f32.gmra.mxu0 %v1164
    %v1166 = vpop.f32.mrf.mxu0
    %v1167 = vadd.f32 %v714, %v1166
    %v1168 = vpop.f32.mrf.mxu0
    %v1169 = vadd.f32 %v716, %v1168
    %1170 = vmatprep.mubr.f32.mxu0 0.0
    %v1171 = vand.u32 %v182, 4294901760
    %1172 = vmatmul.mubr.f32.gmra.mxu0 %v1171
    %v1173 = vpop.f32.mrf.mxu0
    %v1174 = vadd.f32 %v725, %v1173
    %v1175 = vpop.f32.mrf.mxu0
    %v1176 = vadd.f32 %v727, %v1175
    %1177 = vdwg.mxu0
    %1178 = vmatprep.subr.mxu0 0.0
    %v1179 = vand.u32 %v230, 4294901760
    %v1180 = vsub.f32 %v230, %v1179
    %1181 = vmatpush1.xpose.msra.mxu0 %v1180
    %1182 = vmatprep.subr.mxu0 0.0
    %v1183 = vand.u32 %v227, 4294901760
    %v1184 = vsub.f32 %v227, %v1183
    %1185 = vmatpush1.xpose.msra.mxu0 %v1184
    %1186 = vmatprep.subr.mxu0 0.0
    %v1187 = vand.u32 %v224, 4294901760
    %v1188 = vsub.f32 %v224, %v1187
    %1189 = vmatpush1.xpose.msra.mxu0 %v1188
    %1190 = vmatprep.subr.mxu0 0.0
    %v1191 = vand.u32 %v221, 4294901760
    %v1192 = vsub.f32 %v221, %v1191
    %1193 = vmatpush1.xpose.msra.mxu0 %v1192
    %1194 = vmatprep.subr.mxu0 0.0
    %v1195 = vand.u32 %v218, 4294901760
    %v1196 = vsub.f32 %v218, %v1195
    %1197 = vmatpush1.xpose.msra.mxu0 %v1196
    %1198 = vmatprep.subr.mxu0 0.0
    %v1199 = vand.u32 %v215, 4294901760
    %v1200 = vsub.f32 %v215, %v1199
    %1201 = vmatpush1.xpose.msra.mxu0 %v1200
    %1202 = vmatprep.subr.mxu0 0.0
    %v1203 = vand.u32 %v212, 4294901760
    %v1204 = vsub.f32 %v212, %v1203
    %1205 = vmatpush1.xpose.msra.mxu0 %v1204
    %1206 = vmatprep.subr.mxu0 0.0
    %v1207 = vand.u32 %v209, 4294901760
    %v1208 = vsub.f32 %v209, %v1207
    %1209 = vmatpush1.xpose.msra.mxu0 %v1208
    %1210 = vmatprep.subr.mxu0 0.0
    %v1211 = vand.u32 %v206, 4294901760
    %v1212 = vsub.f32 %v206, %v1211
    %1213 = vmatpush1.xpose.msra.mxu0 %v1212
    %1214 = vmatprep.subr.mxu0 0.0
    %v1215 = vand.u32 %v203, 4294901760
    %v1216 = vsub.f32 %v203, %v1215
    %1217 = vmatpush1.xpose.msra.mxu0 %v1216
    %1218 = vmatprep.subr.mxu0 0.0
    %v1219 = vand.u32 %v200, 4294901760
    %v1220 = vsub.f32 %v200, %v1219
    %1221 = vmatpush1.xpose.msra.mxu0 %v1220
    %1222 = vmatprep.subr.mxu0 0.0
    %v1223 = vand.u32 %v197, 4294901760
    %v1224 = vsub.f32 %v197, %v1223
    %1225 = vmatpush1.xpose.msra.mxu0 %v1224
    %1226 = vmatprep.subr.mxu0 0.0
    %v1227 = vand.u32 %v194, 4294901760
    %v1228 = vsub.f32 %v194, %v1227
    %1229 = vmatpush1.xpose.msra.mxu0 %v1228
    %1230 = vmatprep.subr.mxu0 0.0
    %v1231 = vand.u32 %v191, 4294901760
    %v1232 = vsub.f32 %v191, %v1231
    %1233 = vmatpush1.xpose.msra.mxu0 %v1232
    %1234 = vmatprep.subr.mxu0 0.0
    %v1235 = vand.u32 %v188, 4294901760
    %v1236 = vsub.f32 %v188, %v1235
    %1237 = vmatpush1.xpose.msra.mxu0 %v1236
    %1238 = vmatprep.subr.mxu0 0.0
    %v1239 = vand.u32 %v185, 4294901760
    %v1240 = vsub.f32 %v185, %v1239
    %1241 = vmatpush1.xpose.msra.mxu0 %v1240
    %1242 = vmatprep.subr.mxu0 0.0
    %v1243 = vand.u32 %v278, 4294901760
    %v1244 = vsub.f32 %v278, %v1243
    %1245 = vmatpush2.xpose.msra.mxu0 %v1244
    %1246 = vmatprep.subr.mxu0 0.0
    %v1247 = vand.u32 %v275, 4294901760
    %v1248 = vsub.f32 %v275, %v1247
    %1249 = vmatpush2.xpose.msra.mxu0 %v1248
    %1250 = vmatprep.subr.mxu0 0.0
    %v1251 = vand.u32 %v272, 4294901760
    %v1252 = vsub.f32 %v272, %v1251
    %1253 = vmatpush2.xpose.msra.mxu0 %v1252
    %1254 = vmatprep.subr.mxu0 0.0
    %v1255 = vand.u32 %v269, 4294901760
    %v1256 = vsub.f32 %v269, %v1255
    %1257 = vmatpush2.xpose.msra.mxu0 %v1256
    %1258 = vmatprep.subr.mxu0 0.0
    %v1259 = vand.u32 %v266, 4294901760
    %v1260 = vsub.f32 %v266, %v1259
    %1261 = vmatpush2.xpose.msra.mxu0 %v1260
    %1262 = vmatprep.subr.mxu0 0.0
    %v1263 = vand.u32 %v263, 4294901760
    %v1264 = vsub.f32 %v263, %v1263
    %1265 = vmatpush2.xpose.msra.mxu0 %v1264
    %1266 = vmatprep.subr.mxu0 0.0
    %v1267 = vand.u32 %v260, 4294901760
    %v1268 = vsub.f32 %v260, %v1267
    %1269 = vmatpush2.xpose.msra.mxu0 %v1268
    %1270 = vmatprep.subr.mxu0 0.0
    %v1271 = vand.u32 %v257, 4294901760
    %v1272 = vsub.f32 %v257, %v1271
    %1273 = vmatpush2.xpose.msra.mxu0 %v1272
    %1274 = vmatprep.subr.mxu0 0.0
    %v1275 = vand.u32 %v254, 4294901760
    %v1276 = vsub.f32 %v254, %v1275
    %1277 = vmatpush2.xpose.msra.mxu0 %v1276
    %1278 = vmatprep.subr.mxu0 0.0
    %v1279 = vand.u32 %v251, 4294901760
    %v1280 = vsub.f32 %v251, %v1279
    %1281 = vmatpush2.xpose.msra.mxu0 %v1280
    %1282 = vmatprep.subr.mxu0 0.0
    %v1283 = vand.u32 %v248, 4294901760
    %v1284 = vsub.f32 %v248, %v1283
    %1285 = vmatpush2.xpose.msra.mxu0 %v1284
    %1286 = vmatprep.subr.mxu0 0.0
    %v1287 = vand.u32 %v245, 4294901760
    %v1288 = vsub.f32 %v245, %v1287
    %1289 = vmatpush2.xpose.msra.mxu0 %v1288
    %1290 = vmatprep.subr.mxu0 0.0
    %v1291 = vand.u32 %v242, 4294901760
    %v1292 = vsub.f32 %v242, %v1291
    %1293 = vmatpush2.xpose.msra.mxu0 %v1292
    %1294 = vmatprep.subr.mxu0 0.0
    %v1295 = vand.u32 %v239, 4294901760
    %v1296 = vsub.f32 %v239, %v1295
    %1297 = vmatpush2.xpose.msra.mxu0 %v1296
    %1298 = vmatprep.subr.mxu0 0.0
    %v1299 = vand.u32 %v236, 4294901760
    %v1300 = vsub.f32 %v236, %v1299
    %1301 = vmatpush2.xpose.msra.mxu0 %v1300
    %1302 = vmatprep.subr.mxu0 0.0
    %v1303 = vand.u32 %v233, 4294901760
    %v1304 = vsub.f32 %v233, %v1303
    %1305 = vmatpush2.xpose.msra.mxu0 %v1304
    %1306 = vmatprep.mubr.f32.mxu0 0.0
    %v1307 = vand.u32 %v89, 4294901760
    %v1308 = vsub.f32 %v89, %v1307
    %1309 = vmatmul.mubr.f32.gmra.mxu0 %v1308
    %v1310 = vpop.f32.mrf.mxu0
    %v1311 = vadd.f32 %v957, %v1310
    %v1312 = vpop.f32.mrf.mxu0
    %v1313 = vadd.f32 %v959, %v1312
    %1314 = vmatprep.mubr.f32.mxu0 0.0
    %v1315 = vand.u32 %v92, 4294901760
    %v1316 = vsub.f32 %v92, %v1315
    %1317 = vmatmul.mubr.f32.gmra.mxu0 %v1316
    %v1318 = vpop.f32.mrf.mxu0
    %v1319 = vadd.f32 %v964, %v1318
    %v1320 = vpop.f32.mrf.mxu0
    %v1321 = vadd.f32 %v966, %v1320
    %1322 = vmatprep.mubr.f32.mxu0 0.0
    %v1323 = vand.u32 %v95, 4294901760
    %v1324 = vsub.f32 %v95, %v1323
    %1325 = vmatmul.mubr.f32.gmra.mxu0 %v1324
    %v1326 = vpop.f32.mrf.mxu0
    %v1327 = vadd.f32 %v971, %v1326
    %v1328 = vpop.f32.mrf.mxu0
    %v1329 = vadd.f32 %v973, %v1328
    %1330 = vmatprep.mubr.f32.mxu0 0.0
    %v1331 = vand.u32 %v98, 4294901760
    %v1332 = vsub.f32 %v98, %v1331
    %1333 = vmatmul.mubr.f32.gmra.mxu0 %v1332
    %v1334 = vpop.f32.mrf.mxu0
    %v1335 = vadd.f32 %v978, %v1334
    %v1336 = vpop.f32.mrf.mxu0
    %v1337 = vadd.f32 %v980, %v1336
    %1338 = vmatprep.mubr.f32.mxu0 0.0
    %v1339 = vand.u32 %v101, 4294901760
    %v1340 = vsub.f32 %v101, %v1339
    %1341 = vmatmul.mubr.f32.gmra.mxu0 %v1340
    %v1342 = vpop.f32.mrf.mxu0
    %v1343 = vadd.f32 %v985, %v1342
    %v1344 = vpop.f32.mrf.mxu0
    %v1345 = vadd.f32 %v987, %v1344
    %1346 = vmatprep.mubr.f32.mxu0 0.0
    %v1347 = vand.u32 %v104, 4294901760
    %v1348 = vsub.f32 %v104, %v1347
    %1349 = vmatmul.mubr.f32.gmra.mxu0 %v1348
    %v1350 = vpop.f32.mrf.mxu0
    %v1351 = vadd.f32 %v992, %v1350
    %v1352 = vpop.f32.mrf.mxu0
    %v1353 = vadd.f32 %v994, %v1352
    %1354 = vmatprep.mubr.f32.mxu0 0.0
    %v1355 = vand.u32 %v107, 4294901760
    %v1356 = vsub.f32 %v107, %v1355
    %1357 = vmatmul.mubr.f32.gmra.mxu0 %v1356
    %v1358 = vpop.f32.mrf.mxu0
    %v1359 = vadd.f32 %v999, %v1358
    %v1360 = vpop.f32.mrf.mxu0
    %v1361 = vadd.f32 %v1001, %v1360
    %1362 = vmatprep.mubr.f32.mxu0 0.0
    %v1363 = vand.u32 %v110, 4294901760
    %v1364 = vsub.f32 %v110, %v1363
    %1365 = vmatmul.mubr.f32.gmra.mxu0 %v1364
    %v1366 = vpop.f32.mrf.mxu0
    %v1367 = vadd.f32 %v1006, %v1366
    %v1368 = vpop.f32.mrf.mxu0
    %v1369 = vadd.f32 %v1008, %v1368
    %1370 = vmatprep.mubr.f32.mxu0 0.0
    %v1371 = vand.u32 %v113, 4294901760
    %v1372 = vsub.f32 %v113, %v1371
    %1373 = vmatmul.mubr.f32.gmra.mxu0 %v1372
    %v1374 = vpop.f32.mrf.mxu0
    %v1375 = vadd.f32 %v1013, %v1374
    %v1376 = vpop.f32.mrf.mxu0
    %v1377 = vadd.f32 %v1015, %v1376
    %1378 = vmatprep.mubr.f32.mxu0 0.0
    %v1379 = vand.u32 %v116, 4294901760
    %v1380 = vsub.f32 %v116, %v1379
    %1381 = vmatmul.mubr.f32.gmra.mxu0 %v1380
    %v1382 = vpop.f32.mrf.mxu0
    %v1383 = vadd.f32 %v1020, %v1382
    %v1384 = vpop.f32.mrf.mxu0
    %v1385 = vadd.f32 %v1022, %v1384
    %1386 = vmatprep.mubr.f32.mxu0 0.0
    %v1387 = vand.u32 %v119, 4294901760
    %v1388 = vsub.f32 %v119, %v1387
    %1389 = vmatmul.mubr.f32.gmra.mxu0 %v1388
    %v1390 = vpop.f32.mrf.mxu0
    %v1391 = vadd.f32 %v1027, %v1390
    %v1392 = vpop.f32.mrf.mxu0
    %v1393 = vadd.f32 %v1029, %v1392
    %1394 = vmatprep.mubr.f32.mxu0 0.0
    %v1395 = vand.u32 %v122, 4294901760
    %v1396 = vsub.f32 %v122, %v1395
    %1397 = vmatmul.mubr.f32.gmra.mxu0 %v1396
    %v1398 = vpop.f32.mrf.mxu0
    %v1399 = vadd.f32 %v1034, %v1398
    %v1400 = vpop.f32.mrf.mxu0
    %v1401 = vadd.f32 %v1036, %v1400
    %1402 = vmatprep.mubr.f32.mxu0 0.0
    %v1403 = vand.u32 %v125, 4294901760
    %v1404 = vsub.f32 %v125, %v1403
    %1405 = vmatmul.mubr.f32.gmra.mxu0 %v1404
    %v1406 = vpop.f32.mrf.mxu0
    %v1407 = vadd.f32 %v1041, %v1406
    %v1408 = vpop.f32.mrf.mxu0
    %v1409 = vadd.f32 %v1043, %v1408
    %1410 = vmatprep.mubr.f32.mxu0 0.0
    %v1411 = vand.u32 %v128, 4294901760
    %v1412 = vsub.f32 %v128, %v1411
    %1413 = vmatmul.mubr.f32.gmra.mxu0 %v1412
    %v1414 = vpop.f32.mrf.mxu0
    %v1415 = vadd.f32 %v1048, %v1414
    %v1416 = vpop.f32.mrf.mxu0
    %v1417 = vadd.f32 %v1050, %v1416
    %1418 = vmatprep.mubr.f32.mxu0 0.0
    %v1419 = vand.u32 %v131, 4294901760
    %v1420 = vsub.f32 %v131, %v1419
    %1421 = vmatmul.mubr.f32.gmra.mxu0 %v1420
    %v1422 = vpop.f32.mrf.mxu0
    %v1423 = vadd.f32 %v1055, %v1422
    %v1424 = vpop.f32.mrf.mxu0
    %v1425 = vadd.f32 %v1057, %v1424
    %1426 = vmatprep.mubr.f32.mxu0 0.0
    %v1427 = vand.u32 %v134, 4294901760
    %v1428 = vsub.f32 %v134, %v1427
    %1429 = vmatmul.mubr.f32.gmra.mxu0 %v1428
    %v1430 = vpop.f32.mrf.mxu0
    %v1431 = vadd.f32 %v1062, %v1430
    %v1432 = vpop.f32.mrf.mxu0
    %v1433 = vadd.f32 %v1064, %v1432
    %1434 = vmatprep.mubr.f32.mxu0 0.0
    %v1435 = vand.u32 %v137, 4294901760
    %v1436 = vsub.f32 %v137, %v1435
    %1437 = vmatmul.mubr.f32.gmra.mxu0 %v1436
    %v1438 = vpop.f32.mrf.mxu0
    %v1439 = vadd.f32 %v1069, %v1438
    %v1440 = vpop.f32.mrf.mxu0
    %v1441 = vadd.f32 %v1071, %v1440
    %1442 = vmatprep.mubr.f32.mxu0 0.0
    %v1443 = vand.u32 %v140, 4294901760
    %v1444 = vsub.f32 %v140, %v1443
    %1445 = vmatmul.mubr.f32.gmra.mxu0 %v1444
    %v1446 = vpop.f32.mrf.mxu0
    %v1447 = vadd.f32 %v1076, %v1446
    %v1448 = vpop.f32.mrf.mxu0
    %v1449 = vadd.f32 %v1078, %v1448
    %1450 = vmatprep.mubr.f32.mxu0 0.0
    %v1451 = vand.u32 %v143, 4294901760
    %v1452 = vsub.f32 %v143, %v1451
    %1453 = vmatmul.mubr.f32.gmra.mxu0 %v1452
    %v1454 = vpop.f32.mrf.mxu0
    %v1455 = vadd.f32 %v1083, %v1454
    %v1456 = vpop.f32.mrf.mxu0
    %v1457 = vadd.f32 %v1085, %v1456
    %1458 = vmatprep.mubr.f32.mxu0 0.0
    %v1459 = vand.u32 %v146, 4294901760
    %v1460 = vsub.f32 %v146, %v1459
    %1461 = vmatmul.mubr.f32.gmra.mxu0 %v1460
    %v1462 = vpop.f32.mrf.mxu0
    %v1463 = vadd.f32 %v1090, %v1462
    %v1464 = vpop.f32.mrf.mxu0
    %v1465 = vadd.f32 %v1092, %v1464
    %1466 = vmatprep.mubr.f32.mxu0 0.0
    %v1467 = vand.u32 %v149, 4294901760
    %v1468 = vsub.f32 %v149, %v1467
    %1469 = vmatmul.mubr.f32.gmra.mxu0 %v1468
    %v1470 = vpop.f32.mrf.mxu0
    %v1471 = vadd.f32 %v1097, %v1470
    %v1472 = vpop.f32.mrf.mxu0
    %v1473 = vadd.f32 %v1099, %v1472
    %1474 = vmatprep.mubr.f32.mxu0 0.0
    %v1475 = vand.u32 %v152, 4294901760
    %v1476 = vsub.f32 %v152, %v1475
    %1477 = vmatmul.mubr.f32.gmra.mxu0 %v1476
    %v1478 = vpop.f32.mrf.mxu0
    %v1479 = vadd.f32 %v1104, %v1478
    %v1480 = vpop.f32.mrf.mxu0
    %v1481 = vadd.f32 %v1106, %v1480
    %1482 = vmatprep.mubr.f32.mxu0 0.0
    %v1483 = vand.u32 %v155, 4294901760
    %v1484 = vsub.f32 %v155, %v1483
    %1485 = vmatmul.mubr.f32.gmra.mxu0 %v1484
    %v1486 = vpop.f32.mrf.mxu0
    %v1487 = vadd.f32 %v1111, %v1486
    %v1488 = vpop.f32.mrf.mxu0
    %v1489 = vadd.f32 %v1113, %v1488
    %1490 = vmatprep.mubr.f32.mxu0 0.0
    %v1491 = vand.u32 %v158, 4294901760
    %v1492 = vsub.f32 %v158, %v1491
    %1493 = vmatmul.mubr.f32.gmra.mxu0 %v1492
    %v1494 = vpop.f32.mrf.mxu0
    %v1495 = vadd.f32 %v1118, %v1494
    %v1496 = vpop.f32.mrf.mxu0
    %v1497 = vadd.f32 %v1120, %v1496
    %1498 = vmatprep.mubr.f32.mxu0 0.0
    %v1499 = vand.u32 %v161, 4294901760
    %v1500 = vsub.f32 %v161, %v1499
    %1501 = vmatmul.mubr.f32.gmra.mxu0 %v1500
    %v1502 = vpop.f32.mrf.mxu0
    %v1503 = vadd.f32 %v1125, %v1502
    %v1504 = vpop.f32.mrf.mxu0
    %v1505 = vadd.f32 %v1127, %v1504
    %1506 = vmatprep.mubr.f32.mxu0 0.0
    %v1507 = vand.u32 %v164, 4294901760
    %v1508 = vsub.f32 %v164, %v1507
    %1509 = vmatmul.mubr.f32.gmra.mxu0 %v1508
    %v1510 = vpop.f32.mrf.mxu0
    %v1511 = vadd.f32 %v1132, %v1510
    %v1512 = vpop.f32.mrf.mxu0
    %v1513 = vadd.f32 %v1134, %v1512
    %1514 = vmatprep.mubr.f32.mxu0 0.0
    %v1515 = vand.u32 %v167, 4294901760
    %v1516 = vsub.f32 %v167, %v1515
    %1517 = vmatmul.mubr.f32.gmra.mxu0 %v1516
    %v1518 = vpop.f32.mrf.mxu0
    %v1519 = vadd.f32 %v1139, %v1518
    %v1520 = vpop.f32.mrf.mxu0
    %v1521 = vadd.f32 %v1141, %v1520
    %1522 = vmatprep.mubr.f32.mxu0 0.0
    %v1523 = vand.u32 %v170, 4294901760
    %v1524 = vsub.f32 %v170, %v1523
    %1525 = vmatmul.mubr.f32.gmra.mxu0 %v1524
    %v1526 = vpop.f32.mrf.mxu0
    %v1527 = vadd.f32 %v1146, %v1526
    %v1528 = vpop.f32.mrf.mxu0
    %v1529 = vadd.f32 %v1148, %v1528
    %1530 = vmatprep.mubr.f32.mxu0 0.0
    %v1531 = vand.u32 %v173, 4294901760
    %v1532 = vsub.f32 %v173, %v1531
    %1533 = vmatmul.mubr.f32.gmra.mxu0 %v1532
    %v1534 = vpop.f32.mrf.mxu0
    %v1535 = vadd.f32 %v1153, %v1534
    %v1536 = vpop.f32.mrf.mxu0
    %v1537 = vadd.f32 %v1155, %v1536
    %1538 = vmatprep.mubr.f32.mxu0 0.0
    %v1539 = vand.u32 %v176, 4294901760
    %v1540 = vsub.f32 %v176, %v1539
    %1541 = vmatmul.mubr.f32.gmra.mxu0 %v1540
    %v1542 = vpop.f32.mrf.mxu0
    %v1543 = vadd.f32 %v1160, %v1542
    %v1544 = vpop.f32.mrf.mxu0
    %v1545 = vadd.f32 %v1162, %v1544
    %1546 = vmatprep.mubr.f32.mxu0 0.0
    %v1547 = vand.u32 %v179, 4294901760
    %v1548 = vsub.f32 %v179, %v1547
    %1549 = vmatmul.mubr.f32.gmra.mxu0 %v1548
    %v1550 = vpop.f32.mrf.mxu0
    %v1551 = vadd.f32 %v1167, %v1550
    %v1552 = vpop.f32.mrf.mxu0
    %v1553 = vadd.f32 %v1169, %v1552
    %1554 = vmatprep.mubr.f32.mxu0 0.0
    %v1555 = vand.u32 %v182, 4294901760
    %v1556 = vsub.f32 %v182, %v1555
    %1557 = vmatmul.mubr.f32.gmra.mxu0 %v1556
    %v1558 = vpop.f32.mrf.mxu0
    %v1559 = vadd.f32 %v1174, %v1558
    %v1560 = vpop.f32.mrf.mxu0
    %v1561 = vadd.f32 %v1176, %v1560
    %1562 = vdwg.mxu0
    %1563 = vmatprep.subr.mxu0 0.0
    %v1564 = vand.u32 %v230, 4294901760
    %1565 = vmatpush1.xpose.msra.mxu0 %v1564
    %1566 = vmatprep.subr.mxu0 0.0
    %v1567 = vand.u32 %v227, 4294901760
    %1568 = vmatpush1.xpose.msra.mxu0 %v1567
    %1569 = vmatprep.subr.mxu0 0.0
    %v1570 = vand.u32 %v224, 4294901760
    %1571 = vmatpush1.xpose.msra.mxu0 %v1570
    %1572 = vmatprep.subr.mxu0 0.0
    %v1573 = vand.u32 %v221, 4294901760
    %1574 = vmatpush1.xpose.msra.mxu0 %v1573
    %1575 = vmatprep.subr.mxu0 0.0
    %v1576 = vand.u32 %v218, 4294901760
    %1577 = vmatpush1.xpose.msra.mxu0 %v1576
    %1578 = vmatprep.subr.mxu0 0.0
    %v1579 = vand.u32 %v215, 4294901760
    %1580 = vmatpush1.xpose.msra.mxu0 %v1579
    %1581 = vmatprep.subr.mxu0 0.0
    %v1582 = vand.u32 %v212, 4294901760
    %1583 = vmatpush1.xpose.msra.mxu0 %v1582
    %1584 = vmatprep.subr.mxu0 0.0
    %v1585 = vand.u32 %v209, 4294901760
    %1586 = vmatpush1.xpose.msra.mxu0 %v1585
    %1587 = vmatprep.subr.mxu0 0.0
    %v1588 = vand.u32 %v206, 4294901760
    %1589 = vmatpush1.xpose.msra.mxu0 %v1588
    %1590 = vmatprep.subr.mxu0 0.0
    %v1591 = vand.u32 %v203, 4294901760
    %1592 = vmatpush1.xpose.msra.mxu0 %v1591
    %1593 = vmatprep.subr.mxu0 0.0
    %v1594 = vand.u32 %v200, 4294901760
    %1595 = vmatpush1.xpose.msra.mxu0 %v1594
    %1596 = vmatprep.subr.mxu0 0.0
    %v1597 = vand.u32 %v197, 4294901760
    %1598 = vmatpush1.xpose.msra.mxu0 %v1597
    %1599 = vmatprep.subr.mxu0 0.0
    %v1600 = vand.u32 %v194, 4294901760
    %1601 = vmatpush1.xpose.msra.mxu0 %v1600
    %1602 = vmatprep.subr.mxu0 0.0
    %v1603 = vand.u32 %v191, 4294901760
    %1604 = vmatpush1.xpose.msra.mxu0 %v1603
    %1605 = vmatprep.subr.mxu0 0.0
    %v1606 = vand.u32 %v188, 4294901760
    %1607 = vmatpush1.xpose.msra.mxu0 %v1606
    %1608 = vmatprep.subr.mxu0 0.0
    %v1609 = vand.u32 %v185, 4294901760
    %1610 = vmatpush1.xpose.msra.mxu0 %v1609
    %1611 = vmatprep.subr.mxu0 0.0
    %v1612 = vand.u32 %v278, 4294901760
    %1613 = vmatpush2.xpose.msra.mxu0 %v1612
    %1614 = vmatprep.subr.mxu0 0.0
    %v1615 = vand.u32 %v275, 4294901760
    %1616 = vmatpush2.xpose.msra.mxu0 %v1615
    %1617 = vmatprep.subr.mxu0 0.0
    %v1618 = vand.u32 %v272, 4294901760
    %1619 = vmatpush2.xpose.msra.mxu0 %v1618
    %1620 = vmatprep.subr.mxu0 0.0
    %v1621 = vand.u32 %v269, 4294901760
    %1622 = vmatpush2.xpose.msra.mxu0 %v1621
    %1623 = vmatprep.subr.mxu0 0.0
    %v1624 = vand.u32 %v266, 4294901760
    %1625 = vmatpush2.xpose.msra.mxu0 %v1624
    %1626 = vmatprep.subr.mxu0 0.0
    %v1627 = vand.u32 %v263, 4294901760
    %1628 = vmatpush2.xpose.msra.mxu0 %v1627
    %1629 = vmatprep.subr.mxu0 0.0
    %v1630 = vand.u32 %v260, 4294901760
    %1631 = vmatpush2.xpose.msra.mxu0 %v1630
    %1632 = vmatprep.subr.mxu0 0.0
    %v1633 = vand.u32 %v257, 4294901760
    %1634 = vmatpush2.xpose.msra.mxu0 %v1633
    %1635 = vmatprep.subr.mxu0 0.0
    %v1636 = vand.u32 %v254, 4294901760
    %1637 = vmatpush2.xpose.msra.mxu0 %v1636
    %1638 = vmatprep.subr.mxu0 0.0
    %v1639 = vand.u32 %v251, 4294901760
    %1640 = vmatpush2.xpose.msra.mxu0 %v1639
    %1641 = vmatprep.subr.mxu0 0.0
    %v1642 = vand.u32 %v248, 4294901760
    %1643 = vmatpush2.xpose.msra.mxu0 %v1642
    %1644 = vmatprep.subr.mxu0 0.0
    %v1645 = vand.u32 %v245, 4294901760
    %1646 = vmatpush2.xpose.msra.mxu0 %v1645
    %1647 = vmatprep.subr.mxu0 0.0
    %v1648 = vand.u32 %v242, 4294901760
    %1649 = vmatpush2.xpose.msra.mxu0 %v1648
    %1650 = vmatprep.subr.mxu0 0.0
    %v1651 = vand.u32 %v239, 4294901760
    %1652 = vmatpush2.xpose.msra.mxu0 %v1651
    %1653 = vmatprep.subr.mxu0 0.0
    %v1654 = vand.u32 %v236, 4294901760
    %1655 = vmatpush2.xpose.msra.mxu0 %v1654
    %1656 = vmatprep.subr.mxu0 0.0
    %v1657 = vand.u32 %v233, 4294901760
    %1658 = vmatpush2.xpose.msra.mxu0 %v1657
    %1659 = vmatprep.mubr.f32.mxu0 0.0
    %v1660 = vand.u32 %v89, 4294901760
    %v1661 = vsub.f32 %v89, %v1660
    %v1662 = vand.u32 %v1661, 4294901760
    %1663 = vmatmul.mubr.f32.gmra.mxu0 %v1662
    %v1664 = vpop.f32.mrf.mxu0
    %v1665 = vadd.f32 %v1311, %v1664
    %v1666 = vpop.f32.mrf.mxu0
    %v1667 = vadd.f32 %v1313, %v1666
    %1668 = vmatprep.mubr.f32.mxu0 0.0
    %v1669 = vand.u32 %v92, 4294901760
    %v1670 = vsub.f32 %v92, %v1669
    %v1671 = vand.u32 %v1670, 4294901760
    %1672 = vmatmul.mubr.f32.gmra.mxu0 %v1671
    %v1673 = vpop.f32.mrf.mxu0
    %v1674 = vadd.f32 %v1319, %v1673
    %v1675 = vpop.f32.mrf.mxu0
    %v1676 = vadd.f32 %v1321, %v1675
    %1677 = vmatprep.mubr.f32.mxu0 0.0
    %v1678 = vand.u32 %v95, 4294901760
    %v1679 = vsub.f32 %v95, %v1678
    %v1680 = vand.u32 %v1679, 4294901760
    %1681 = vmatmul.mubr.f32.gmra.mxu0 %v1680
    %v1682 = vpop.f32.mrf.mxu0
    %v1683 = vadd.f32 %v1327, %v1682
    %v1684 = vpop.f32.mrf.mxu0
    %v1685 = vadd.f32 %v1329, %v1684
    %1686 = vmatprep.mubr.f32.mxu0 0.0
    %v1687 = vand.u32 %v98, 4294901760
    %v1688 = vsub.f32 %v98, %v1687
    %v1689 = vand.u32 %v1688, 4294901760
    %1690 = vmatmul.mubr.f32.gmra.mxu0 %v1689
    %v1691 = vpop.f32.mrf.mxu0
    %v1692 = vadd.f32 %v1335, %v1691
    %v1693 = vpop.f32.mrf.mxu0
    %v1694 = vadd.f32 %v1337, %v1693
    %1695 = vmatprep.mubr.f32.mxu0 0.0
    %v1696 = vand.u32 %v101, 4294901760
    %v1697 = vsub.f32 %v101, %v1696
    %v1698 = vand.u32 %v1697, 4294901760
    %1699 = vmatmul.mubr.f32.gmra.mxu0 %v1698
    %v1700 = vpop.f32.mrf.mxu0
    %v1701 = vadd.f32 %v1343, %v1700
    %v1702 = vpop.f32.mrf.mxu0
    %v1703 = vadd.f32 %v1345, %v1702
    %1704 = vmatprep.mubr.f32.mxu0 0.0
    %v1705 = vand.u32 %v104, 4294901760
    %v1706 = vsub.f32 %v104, %v1705
    %v1707 = vand.u32 %v1706, 4294901760
    %1708 = vmatmul.mubr.f32.gmra.mxu0 %v1707
    %v1709 = vpop.f32.mrf.mxu0
    %v1710 = vadd.f32 %v1351, %v1709
    %v1711 = vpop.f32.mrf.mxu0
    %v1712 = vadd.f32 %v1353, %v1711
    %1713 = vmatprep.mubr.f32.mxu0 0.0
    %v1714 = vand.u32 %v107, 4294901760
    %v1715 = vsub.f32 %v107, %v1714
    %v1716 = vand.u32 %v1715, 4294901760
    %1717 = vmatmul.mubr.f32.gmra.mxu0 %v1716
    %v1718 = vpop.f32.mrf.mxu0
    %v1719 = vadd.f32 %v1359, %v1718
    %v1720 = vpop.f32.mrf.mxu0
    %v1721 = vadd.f32 %v1361, %v1720
    %1722 = vmatprep.mubr.f32.mxu0 0.0
    %v1723 = vand.u32 %v110, 4294901760
    %v1724 = vsub.f32 %v110, %v1723
    %v1725 = vand.u32 %v1724, 4294901760
    %1726 = vmatmul.mubr.f32.gmra.mxu0 %v1725
    %v1727 = vpop.f32.mrf.mxu0
    %v1728 = vadd.f32 %v1367, %v1727
    %v1729 = vpop.f32.mrf.mxu0
    %v1730 = vadd.f32 %v1369, %v1729
    %1731 = vmatprep.mubr.f32.mxu0 0.0
    %v1732 = vand.u32 %v113, 4294901760
    %v1733 = vsub.f32 %v113, %v1732
    %v1734 = vand.u32 %v1733, 4294901760
    %1735 = vmatmul.mubr.f32.gmra.mxu0 %v1734
    %v1736 = vpop.f32.mrf.mxu0
    %v1737 = vadd.f32 %v1375, %v1736
    %v1738 = vpop.f32.mrf.mxu0
    %v1739 = vadd.f32 %v1377, %v1738
    %1740 = vmatprep.mubr.f32.mxu0 0.0
    %v1741 = vand.u32 %v116, 4294901760
    %v1742 = vsub.f32 %v116, %v1741
    %v1743 = vand.u32 %v1742, 4294901760
    %1744 = vmatmul.mubr.f32.gmra.mxu0 %v1743
    %v1745 = vpop.f32.mrf.mxu0
    %v1746 = vadd.f32 %v1383, %v1745
    %v1747 = vpop.f32.mrf.mxu0
    %v1748 = vadd.f32 %v1385, %v1747
    %1749 = vmatprep.mubr.f32.mxu0 0.0
    %v1750 = vand.u32 %v119, 4294901760
    %v1751 = vsub.f32 %v119, %v1750
    %v1752 = vand.u32 %v1751, 4294901760
    %1753 = vmatmul.mubr.f32.gmra.mxu0 %v1752
    %v1754 = vpop.f32.mrf.mxu0
    %v1755 = vadd.f32 %v1391, %v1754
    %v1756 = vpop.f32.mrf.mxu0
    %v1757 = vadd.f32 %v1393, %v1756
    %1758 = vmatprep.mubr.f32.mxu0 0.0
    %v1759 = vand.u32 %v122, 4294901760
    %v1760 = vsub.f32 %v122, %v1759
    %v1761 = vand.u32 %v1760, 4294901760
    %1762 = vmatmul.mubr.f32.gmra.mxu0 %v1761
    %v1763 = vpop.f32.mrf.mxu0
    %v1764 = vadd.f32 %v1399, %v1763
    %v1765 = vpop.f32.mrf.mxu0
    %v1766 = vadd.f32 %v1401, %v1765
    %1767 = vmatprep.mubr.f32.mxu0 0.0
    %v1768 = vand.u32 %v125, 4294901760
    %v1769 = vsub.f32 %v125, %v1768
    %v1770 = vand.u32 %v1769, 4294901760
    %1771 = vmatmul.mubr.f32.gmra.mxu0 %v1770
    %v1772 = vpop.f32.mrf.mxu0
    %v1773 = vadd.f32 %v1407, %v1772
    %v1774 = vpop.f32.mrf.mxu0
    %v1775 = vadd.f32 %v1409, %v1774
    %1776 = vmatprep.mubr.f32.mxu0 0.0
    %v1777 = vand.u32 %v128, 4294901760
    %v1778 = vsub.f32 %v128, %v1777
    %v1779 = vand.u32 %v1778, 4294901760
    %1780 = vmatmul.mubr.f32.gmra.mxu0 %v1779
    %v1781 = vpop.f32.mrf.mxu0
    %v1782 = vadd.f32 %v1415, %v1781
    %v1783 = vpop.f32.mrf.mxu0
    %v1784 = vadd.f32 %v1417, %v1783
    %1785 = vmatprep.mubr.f32.mxu0 0.0
    %v1786 = vand.u32 %v131, 4294901760
    %v1787 = vsub.f32 %v131, %v1786
    %v1788 = vand.u32 %v1787, 4294901760
    %1789 = vmatmul.mubr.f32.gmra.mxu0 %v1788
    %v1790 = vpop.f32.mrf.mxu0
    %v1791 = vadd.f32 %v1423, %v1790
    %v1792 = vpop.f32.mrf.mxu0
    %v1793 = vadd.f32 %v1425, %v1792
    %1794 = vmatprep.mubr.f32.mxu0 0.0
    %v1795 = vand.u32 %v134, 4294901760
    %v1796 = vsub.f32 %v134, %v1795
    %v1797 = vand.u32 %v1796, 4294901760
    %1798 = vmatmul.mubr.f32.gmra.mxu0 %v1797
    %v1799 = vpop.f32.mrf.mxu0
    %v1800 = vadd.f32 %v1431, %v1799
    %v1801 = vpop.f32.mrf.mxu0
    %v1802 = vadd.f32 %v1433, %v1801
    %1803 = vmatprep.mubr.f32.mxu0 0.0
    %v1804 = vand.u32 %v137, 4294901760
    %v1805 = vsub.f32 %v137, %v1804
    %v1806 = vand.u32 %v1805, 4294901760
    %1807 = vmatmul.mubr.f32.gmra.mxu0 %v1806
    %v1808 = vpop.f32.mrf.mxu0
    %v1809 = vadd.f32 %v1439, %v1808
    %v1810 = vpop.f32.mrf.mxu0
    %v1811 = vadd.f32 %v1441, %v1810
    %1812 = vmatprep.mubr.f32.mxu0 0.0
    %v1813 = vand.u32 %v140, 4294901760
    %v1814 = vsub.f32 %v140, %v1813
    %v1815 = vand.u32 %v1814, 4294901760
    %1816 = vmatmul.mubr.f32.gmra.mxu0 %v1815
    %v1817 = vpop.f32.mrf.mxu0
    %v1818 = vadd.f32 %v1447, %v1817
    %v1819 = vpop.f32.mrf.mxu0
    %v1820 = vadd.f32 %v1449, %v1819
    %1821 = vmatprep.mubr.f32.mxu0 0.0
    %v1822 = vand.u32 %v143, 4294901760
    %v1823 = vsub.f32 %v143, %v1822
    %v1824 = vand.u32 %v1823, 4294901760
    %1825 = vmatmul.mubr.f32.gmra.mxu0 %v1824
    %v1826 = vpop.f32.mrf.mxu0
    %v1827 = vadd.f32 %v1455, %v1826
    %v1828 = vpop.f32.mrf.mxu0
    %v1829 = vadd.f32 %v1457, %v1828
    %1830 = vmatprep.mubr.f32.mxu0 0.0
    %v1831 = vand.u32 %v146, 4294901760
    %v1832 = vsub.f32 %v146, %v1831
    %v1833 = vand.u32 %v1832, 4294901760
    %1834 = vmatmul.mubr.f32.gmra.mxu0 %v1833
    %v1835 = vpop.f32.mrf.mxu0
    %v1836 = vadd.f32 %v1463, %v1835
    %v1837 = vpop.f32.mrf.mxu0
    %v1838 = vadd.f32 %v1465, %v1837
    %1839 = vmatprep.mubr.f32.mxu0 0.0
    %v1840 = vand.u32 %v149, 4294901760
    %v1841 = vsub.f32 %v149, %v1840
    %v1842 = vand.u32 %v1841, 4294901760
    %1843 = vmatmul.mubr.f32.gmra.mxu0 %v1842
    %v1844 = vpop.f32.mrf.mxu0
    %v1845 = vadd.f32 %v1471, %v1844
    %v1846 = vpop.f32.mrf.mxu0
    %v1847 = vadd.f32 %v1473, %v1846
    %1848 = vmatprep.mubr.f32.mxu0 0.0
    %v1849 = vand.u32 %v152, 4294901760
    %v1850 = vsub.f32 %v152, %v1849
    %v1851 = vand.u32 %v1850, 4294901760
    %1852 = vmatmul.mubr.f32.gmra.mxu0 %v1851
    %v1853 = vpop.f32.mrf.mxu0
    %v1854 = vadd.f32 %v1479, %v1853
    %v1855 = vpop.f32.mrf.mxu0
    %v1856 = vadd.f32 %v1481, %v1855
    %1857 = vmatprep.mubr.f32.mxu0 0.0
    %v1858 = vand.u32 %v155, 4294901760
    %v1859 = vsub.f32 %v155, %v1858
    %v1860 = vand.u32 %v1859, 4294901760
    %1861 = vmatmul.mubr.f32.gmra.mxu0 %v1860
    %v1862 = vpop.f32.mrf.mxu0
    %v1863 = vadd.f32 %v1487, %v1862
    %v1864 = vpop.f32.mrf.mxu0
    %v1865 = vadd.f32 %v1489, %v1864
    %1866 = vmatprep.mubr.f32.mxu0 0.0
    %v1867 = vand.u32 %v158, 4294901760
    %v1868 = vsub.f32 %v158, %v1867
    %v1869 = vand.u32 %v1868, 4294901760
    %1870 = vmatmul.mubr.f32.gmra.mxu0 %v1869
    %v1871 = vpop.f32.mrf.mxu0
    %v1872 = vadd.f32 %v1495, %v1871
    %v1873 = vpop.f32.mrf.mxu0
    %v1874 = vadd.f32 %v1497, %v1873
    %1875 = vmatprep.mubr.f32.mxu0 0.0
    %v1876 = vand.u32 %v161, 4294901760
    %v1877 = vsub.f32 %v161, %v1876
    %v1878 = vand.u32 %v1877, 4294901760
    %1879 = vmatmul.mubr.f32.gmra.mxu0 %v1878
    %v1880 = vpop.f32.mrf.mxu0
    %v1881 = vadd.f32 %v1503, %v1880
    %v1882 = vpop.f32.mrf.mxu0
    %v1883 = vadd.f32 %v1505, %v1882
    %1884 = vmatprep.mubr.f32.mxu0 0.0
    %v1885 = vand.u32 %v164, 4294901760
    %v1886 = vsub.f32 %v164, %v1885
    %v1887 = vand.u32 %v1886, 4294901760
    %1888 = vmatmul.mubr.f32.gmra.mxu0 %v1887
    %v1889 = vpop.f32.mrf.mxu0
    %v1890 = vadd.f32 %v1511, %v1889
    %v1891 = vpop.f32.mrf.mxu0
    %v1892 = vadd.f32 %v1513, %v1891
    %1893 = vmatprep.mubr.f32.mxu0 0.0
    %v1894 = vand.u32 %v167, 4294901760
    %v1895 = vsub.f32 %v167, %v1894
    %v1896 = vand.u32 %v1895, 4294901760
    %1897 = vmatmul.mubr.f32.gmra.mxu0 %v1896
    %v1898 = vpop.f32.mrf.mxu0
    %v1899 = vadd.f32 %v1519, %v1898
    %v1900 = vpop.f32.mrf.mxu0
    %v1901 = vadd.f32 %v1521, %v1900
    %1902 = vmatprep.mubr.f32.mxu0 0.0
    %v1903 = vand.u32 %v170, 4294901760
    %v1904 = vsub.f32 %v170, %v1903
    %v1905 = vand.u32 %v1904, 4294901760
    %1906 = vmatmul.mubr.f32.gmra.mxu0 %v1905
    %v1907 = vpop.f32.mrf.mxu0
    %v1908 = vadd.f32 %v1527, %v1907
    %v1909 = vpop.f32.mrf.mxu0
    %v1910 = vadd.f32 %v1529, %v1909
    %1911 = vmatprep.mubr.f32.mxu0 0.0
    %v1912 = vand.u32 %v173, 4294901760
    %v1913 = vsub.f32 %v173, %v1912
    %v1914 = vand.u32 %v1913, 4294901760
    %1915 = vmatmul.mubr.f32.gmra.mxu0 %v1914
    %v1916 = vpop.f32.mrf.mxu0
    %v1917 = vadd.f32 %v1535, %v1916
    %v1918 = vpop.f32.mrf.mxu0
    %v1919 = vadd.f32 %v1537, %v1918
    %1920 = vmatprep.mubr.f32.mxu0 0.0
    %v1921 = vand.u32 %v176, 4294901760
    %v1922 = vsub.f32 %v176, %v1921
    %v1923 = vand.u32 %v1922, 4294901760
    %1924 = vmatmul.mubr.f32.gmra.mxu0 %v1923
    %v1925 = vpop.f32.mrf.mxu0
    %v1926 = vadd.f32 %v1543, %v1925
    %v1927 = vpop.f32.mrf.mxu0
    %v1928 = vadd.f32 %v1545, %v1927
    %1929 = vmatprep.mubr.f32.mxu0 0.0
    %v1930 = vand.u32 %v179, 4294901760
    %v1931 = vsub.f32 %v179, %v1930
    %v1932 = vand.u32 %v1931, 4294901760
    %1933 = vmatmul.mubr.f32.gmra.mxu0 %v1932
    %v1934 = vpop.f32.mrf.mxu0
    %v1935 = vadd.f32 %v1551, %v1934
    %v1936 = vpop.f32.mrf.mxu0
    %v1937 = vadd.f32 %v1553, %v1936
    %1938 = vmatprep.mubr.f32.mxu0 0.0
    %v1939 = vand.u32 %v182, 4294901760
    %v1940 = vsub.f32 %v182, %v1939
    %v1941 = vand.u32 %v1940, 4294901760
    %1942 = vmatmul.mubr.f32.gmra.mxu0 %v1941
    %v1943 = vpop.f32.mrf.mxu0
    %v1944 = vadd.f32 %v1559, %v1943
    %v1945 = vpop.f32.mrf.mxu0
    %v1946 = vadd.f32 %v1561, %v1945
    %1947 = vdwg.mxu0
    %1948 = vmatprep.subr.mxu0 0.0
    %v1949 = vand.u32 %v230, 4294901760
    %v1950 = vsub.f32 %v230, %v1949
    %v1951 = vand.u32 %v1950, 4294901760
    %1952 = vmatpush1.xpose.msra.mxu0 %v1951
    %1953 = vmatprep.subr.mxu0 0.0
    %v1954 = vand.u32 %v227, 4294901760
    %v1955 = vsub.f32 %v227, %v1954
    %v1956 = vand.u32 %v1955, 4294901760
    %1957 = vmatpush1.xpose.msra.mxu0 %v1956
    %1958 = vmatprep.subr.mxu0 0.0
    %v1959 = vand.u32 %v224, 4294901760
    %v1960 = vsub.f32 %v224, %v1959
    %v1961 = vand.u32 %v1960, 4294901760
    %1962 = vmatpush1.xpose.msra.mxu0 %v1961
    %1963 = vmatprep.subr.mxu0 0.0
    %v1964 = vand.u32 %v221, 4294901760
    %v1965 = vsub.f32 %v221, %v1964
    %v1966 = vand.u32 %v1965, 4294901760
    %1967 = vmatpush1.xpose.msra.mxu0 %v1966
    %1968 = vmatprep.subr.mxu0 0.0
    %v1969 = vand.u32 %v218, 4294901760
    %v1970 = vsub.f32 %v218, %v1969
    %v1971 = vand.u32 %v1970, 4294901760
    %1972 = vmatpush1.xpose.msra.mxu0 %v1971
    %1973 = vmatprep.subr.mxu0 0.0
    %v1974 = vand.u32 %v215, 4294901760
    %v1975 = vsub.f32 %v215, %v1974
    %v1976 = vand.u32 %v1975, 4294901760
    %1977 = vmatpush1.xpose.msra.mxu0 %v1976
    %1978 = vmatprep.subr.mxu0 0.0
    %v1979 = vand.u32 %v212, 4294901760
    %v1980 = vsub.f32 %v212, %v1979
    %v1981 = vand.u32 %v1980, 4294901760
    %1982 = vmatpush1.xpose.msra.mxu0 %v1981
    %1983 = vmatprep.subr.mxu0 0.0
    %v1984 = vand.u32 %v209, 4294901760
    %v1985 = vsub.f32 %v209, %v1984
    %v1986 = vand.u32 %v1985, 4294901760
    %1987 = vmatpush1.xpose.msra.mxu0 %v1986
    %1988 = vmatprep.subr.mxu0 0.0
    %v1989 = vand.u32 %v206, 4294901760
    %v1990 = vsub.f32 %v206, %v1989
    %v1991 = vand.u32 %v1990, 4294901760
    %1992 = vmatpush1.xpose.msra.mxu0 %v1991
    %1993 = vmatprep.subr.mxu0 0.0
    %v1994 = vand.u32 %v203, 4294901760
    %v1995 = vsub.f32 %v203, %v1994
    %v1996 = vand.u32 %v1995, 4294901760
    %1997 = vmatpush1.xpose.msra.mxu0 %v1996
    %1998 = vmatprep.subr.mxu0 0.0
    %v1999 = vand.u32 %v200, 4294901760
    %v2000 = vsub.f32 %v200, %v1999
    %v2001 = vand.u32 %v2000, 4294901760
    %2002 = vmatpush1.xpose.msra.mxu0 %v2001
    %2003 = vmatprep.subr.mxu0 0.0
    %v2004 = vand.u32 %v197, 4294901760
    %v2005 = vsub.f32 %v197, %v2004
    %v2006 = vand.u32 %v2005, 4294901760
    %2007 = vmatpush1.xpose.msra.mxu0 %v2006
    %2008 = vmatprep.subr.mxu0 0.0
    %v2009 = vand.u32 %v194, 4294901760
    %v2010 = vsub.f32 %v194, %v2009
    %v2011 = vand.u32 %v2010, 4294901760
    %2012 = vmatpush1.xpose.msra.mxu0 %v2011
    %2013 = vmatprep.subr.mxu0 0.0
    %v2014 = vand.u32 %v191, 4294901760
    %v2015 = vsub.f32 %v191, %v2014
    %v2016 = vand.u32 %v2015, 4294901760
    %2017 = vmatpush1.xpose.msra.mxu0 %v2016
    %2018 = vmatprep.subr.mxu0 0.0
    %v2019 = vand.u32 %v188, 4294901760
    %v2020 = vsub.f32 %v188, %v2019
    %v2021 = vand.u32 %v2020, 4294901760
    %2022 = vmatpush1.xpose.msra.mxu0 %v2021
    %2023 = vmatprep.subr.mxu0 0.0
    %v2024 = vand.u32 %v185, 4294901760
    %v2025 = vsub.f32 %v185, %v2024
    %v2026 = vand.u32 %v2025, 4294901760
    %2027 = vmatpush1.xpose.msra.mxu0 %v2026
    %2028 = vmatprep.subr.mxu0 0.0
    %v2029 = vand.u32 %v278, 4294901760
    %v2030 = vsub.f32 %v278, %v2029
    %v2031 = vand.u32 %v2030, 4294901760
    %2032 = vmatpush2.xpose.msra.mxu0 %v2031
    %2033 = vmatprep.subr.mxu0 0.0
    %v2034 = vand.u32 %v275, 4294901760
    %v2035 = vsub.f32 %v275, %v2034
    %v2036 = vand.u32 %v2035, 4294901760
    %2037 = vmatpush2.xpose.msra.mxu0 %v2036
    %2038 = vmatprep.subr.mxu0 0.0
    %v2039 = vand.u32 %v272, 4294901760
    %v2040 = vsub.f32 %v272, %v2039
    %v2041 = vand.u32 %v2040, 4294901760
    %2042 = vmatpush2.xpose.msra.mxu0 %v2041
    %2043 = vmatprep.subr.mxu0 0.0
    %v2044 = vand.u32 %v269, 4294901760
    %v2045 = vsub.f32 %v269, %v2044
    %v2046 = vand.u32 %v2045, 4294901760
    %2047 = vmatpush2.xpose.msra.mxu0 %v2046
    %2048 = vmatprep.subr.mxu0 0.0
    %v2049 = vand.u32 %v266, 4294901760
    %v2050 = vsub.f32 %v266, %v2049
    %v2051 = vand.u32 %v2050, 4294901760
    %2052 = vmatpush2.xpose.msra.mxu0 %v2051
    %2053 = vmatprep.subr.mxu0 0.0
    %v2054 = vand.u32 %v263, 4294901760
    %v2055 = vsub.f32 %v263, %v2054
    %v2056 = vand.u32 %v2055, 4294901760
    %2057 = vmatpush2.xpose.msra.mxu0 %v2056
    %2058 = vmatprep.subr.mxu0 0.0
    %v2059 = vand.u32 %v260, 4294901760
    %v2060 = vsub.f32 %v260, %v2059
    %v2061 = vand.u32 %v2060, 4294901760
    %2062 = vmatpush2.xpose.msra.mxu0 %v2061
    %2063 = vmatprep.subr.mxu0 0.0
    %v2064 = vand.u32 %v257, 4294901760
    %v2065 = vsub.f32 %v257, %v2064
    %v2066 = vand.u32 %v2065, 4294901760
    %2067 = vmatpush2.xpose.msra.mxu0 %v2066
    %2068 = vmatprep.subr.mxu0 0.0
    %v2069 = vand.u32 %v254, 4294901760
    %v2070 = vsub.f32 %v254, %v2069
    %v2071 = vand.u32 %v2070, 4294901760
    %2072 = vmatpush2.xpose.msra.mxu0 %v2071
    %2073 = vmatprep.subr.mxu0 0.0
    %v2074 = vand.u32 %v251, 4294901760
    %v2075 = vsub.f32 %v251, %v2074
    %v2076 = vand.u32 %v2075, 4294901760
    %2077 = vmatpush2.xpose.msra.mxu0 %v2076
    %2078 = vmatprep.subr.mxu0 0.0
    %v2079 = vand.u32 %v248, 4294901760
    %v2080 = vsub.f32 %v248, %v2079
    %v2081 = vand.u32 %v2080, 4294901760
    %2082 = vmatpush2.xpose.msra.mxu0 %v2081
    %2083 = vmatprep.subr.mxu0 0.0
    %v2084 = vand.u32 %v245, 4294901760
    %v2085 = vsub.f32 %v245, %v2084
    %v2086 = vand.u32 %v2085, 4294901760
    %2087 = vmatpush2.xpose.msra.mxu0 %v2086
    %2088 = vmatprep.subr.mxu0 0.0
    %v2089 = vand.u32 %v242, 4294901760
    %v2090 = vsub.f32 %v242, %v2089
    %v2091 = vand.u32 %v2090, 4294901760
    %2092 = vmatpush2.xpose.msra.mxu0 %v2091
    %2093 = vmatprep.subr.mxu0 0.0
    %v2094 = vand.u32 %v239, 4294901760
    %v2095 = vsub.f32 %v239, %v2094
    %v2096 = vand.u32 %v2095, 4294901760
    %2097 = vmatpush2.xpose.msra.mxu0 %v2096
    %2098 = vmatprep.subr.mxu0 0.0
    %v2099 = vand.u32 %v236, 4294901760
    %v2100 = vsub.f32 %v236, %v2099
    %v2101 = vand.u32 %v2100, 4294901760
    %2102 = vmatpush2.xpose.msra.mxu0 %v2101
    %2103 = vmatprep.subr.mxu0 0.0
    %v2104 = vand.u32 %v233, 4294901760
    %v2105 = vsub.f32 %v233, %v2104
    %v2106 = vand.u32 %v2105, 4294901760
    %2107 = vmatpush2.xpose.msra.mxu0 %v2106
    %2108 = vmatprep.mubr.f32.mxu0 0.0
    %v2109 = vand.u32 %v89, 4294901760
    %2110 = vmatmul.mubr.f32.gmra.mxu0 %v2109
    %v2111 = vpop.f32.mrf.mxu0
    %v2112 = vadd.f32 %v1665, %v2111
    %v2113 = vpop.f32.mrf.mxu0
    %v2114 = vadd.f32 %v1667, %v2113
    %2115 = vmatprep.mubr.f32.mxu0 0.0
    %v2116 = vand.u32 %v92, 4294901760
    %2117 = vmatmul.mubr.f32.gmra.mxu0 %v2116
    %v2118 = vpop.f32.mrf.mxu0
    %v2119 = vadd.f32 %v1674, %v2118
    %v2120 = vpop.f32.mrf.mxu0
    %v2121 = vadd.f32 %v1676, %v2120
    %2122 = vmatprep.mubr.f32.mxu0 0.0
    %v2123 = vand.u32 %v95, 4294901760
    %2124 = vmatmul.mubr.f32.gmra.mxu0 %v2123
    %v2125 = vpop.f32.mrf.mxu0
    %v2126 = vadd.f32 %v1683, %v2125
    %v2127 = vpop.f32.mrf.mxu0
    %v2128 = vadd.f32 %v1685, %v2127
    %2129 = vmatprep.mubr.f32.mxu0 0.0
    %v2130 = vand.u32 %v98, 4294901760
    %2131 = vmatmul.mubr.f32.gmra.mxu0 %v2130
    %v2132 = vpop.f32.mrf.mxu0
    %v2133 = vadd.f32 %v1692, %v2132
    %v2134 = vpop.f32.mrf.mxu0
    %v2135 = vadd.f32 %v1694, %v2134
    %2136 = vmatprep.mubr.f32.mxu0 0.0
    %v2137 = vand.u32 %v101, 4294901760
    %2138 = vmatmul.mubr.f32.gmra.mxu0 %v2137
    %v2139 = vpop.f32.mrf.mxu0
    %v2140 = vadd.f32 %v1701, %v2139
    %v2141 = vpop.f32.mrf.mxu0
    %v2142 = vadd.f32 %v1703, %v2141
    %2143 = vmatprep.mubr.f32.mxu0 0.0
    %v2144 = vand.u32 %v104, 4294901760
    %2145 = vmatmul.mubr.f32.gmra.mxu0 %v2144
    %v2146 = vpop.f32.mrf.mxu0
    %v2147 = vadd.f32 %v1710, %v2146
    %v2148 = vpop.f32.mrf.mxu0
    %v2149 = vadd.f32 %v1712, %v2148
    %2150 = vmatprep.mubr.f32.mxu0 0.0
    %v2151 = vand.u32 %v107, 4294901760
    %2152 = vmatmul.mubr.f32.gmra.mxu0 %v2151
    %v2153 = vpop.f32.mrf.mxu0
    %v2154 = vadd.f32 %v1719, %v2153
    %v2155 = vpop.f32.mrf.mxu0
    %v2156 = vadd.f32 %v1721, %v2155
    %2157 = vmatprep.mubr.f32.mxu0 0.0
    %v2158 = vand.u32 %v110, 4294901760
    %2159 = vmatmul.mubr.f32.gmra.mxu0 %v2158
    %v2160 = vpop.f32.mrf.mxu0
    %v2161 = vadd.f32 %v1728, %v2160
    %v2162 = vpop.f32.mrf.mxu0
    %v2163 = vadd.f32 %v1730, %v2162
    %2164 = vmatprep.mubr.f32.mxu0 0.0
    %v2165 = vand.u32 %v113, 4294901760
    %2166 = vmatmul.mubr.f32.gmra.mxu0 %v2165
    %v2167 = vpop.f32.mrf.mxu0
    %v2168 = vadd.f32 %v1737, %v2167
    %v2169 = vpop.f32.mrf.mxu0
    %v2170 = vadd.f32 %v1739, %v2169
    %2171 = vmatprep.mubr.f32.mxu0 0.0
    %v2172 = vand.u32 %v116, 4294901760
    %2173 = vmatmul.mubr.f32.gmra.mxu0 %v2172
    %v2174 = vpop.f32.mrf.mxu0
    %v2175 = vadd.f32 %v1746, %v2174
    %v2176 = vpop.f32.mrf.mxu0
    %v2177 = vadd.f32 %v1748, %v2176
    %2178 = vmatprep.mubr.f32.mxu0 0.0
    %v2179 = vand.u32 %v119, 4294901760
    %2180 = vmatmul.mubr.f32.gmra.mxu0 %v2179
    %v2181 = vpop.f32.mrf.mxu0
    %v2182 = vadd.f32 %v1755, %v2181
    %v2183 = vpop.f32.mrf.mxu0
    %v2184 = vadd.f32 %v1757, %v2183
    %2185 = vmatprep.mubr.f32.mxu0 0.0
    %v2186 = vand.u32 %v122, 4294901760
    %2187 = vmatmul.mubr.f32.gmra.mxu0 %v2186
    %v2188 = vpop.f32.mrf.mxu0
    %v2189 = vadd.f32 %v1764, %v2188
    %v2190 = vpop.f32.mrf.mxu0
    %v2191 = vadd.f32 %v1766, %v2190
    %2192 = vmatprep.mubr.f32.mxu0 0.0
    %v2193 = vand.u32 %v125, 4294901760
    %2194 = vmatmul.mubr.f32.gmra.mxu0 %v2193
    %v2195 = vpop.f32.mrf.mxu0
    %v2196 = vadd.f32 %v1773, %v2195
    %v2197 = vpop.f32.mrf.mxu0
    %v2198 = vadd.f32 %v1775, %v2197
    %2199 = vmatprep.mubr.f32.mxu0 0.0
    %v2200 = vand.u32 %v128, 4294901760
    %2201 = vmatmul.mubr.f32.gmra.mxu0 %v2200
    %v2202 = vpop.f32.mrf.mxu0
    %v2203 = vadd.f32 %v1782, %v2202
    %v2204 = vpop.f32.mrf.mxu0
    %v2205 = vadd.f32 %v1784, %v2204
    %2206 = vmatprep.mubr.f32.mxu0 0.0
    %v2207 = vand.u32 %v131, 4294901760
    %2208 = vmatmul.mubr.f32.gmra.mxu0 %v2207
    %v2209 = vpop.f32.mrf.mxu0
    %v2210 = vadd.f32 %v1791, %v2209
    %v2211 = vpop.f32.mrf.mxu0
    %v2212 = vadd.f32 %v1793, %v2211
    %2213 = vmatprep.mubr.f32.mxu0 0.0
    %v2214 = vand.u32 %v134, 4294901760
    %2215 = vmatmul.mubr.f32.gmra.mxu0 %v2214
    %v2216 = vpop.f32.mrf.mxu0
    %v2217 = vadd.f32 %v1800, %v2216
    %v2218 = vpop.f32.mrf.mxu0
    %v2219 = vadd.f32 %v1802, %v2218
    %2220 = vmatprep.mubr.f32.mxu0 0.0
    %v2221 = vand.u32 %v137, 4294901760
    %2222 = vmatmul.mubr.f32.gmra.mxu0 %v2221
    %v2223 = vpop.f32.mrf.mxu0
    %v2224 = vadd.f32 %v1809, %v2223
    %v2225 = vpop.f32.mrf.mxu0
    %v2226 = vadd.f32 %v1811, %v2225
    %2227 = vmatprep.mubr.f32.mxu0 0.0
    %v2228 = vand.u32 %v140, 4294901760
    %2229 = vmatmul.mubr.f32.gmra.mxu0 %v2228
    %v2230 = vpop.f32.mrf.mxu0
    %v2231 = vadd.f32 %v1818, %v2230
    %v2232 = vpop.f32.mrf.mxu0
    %v2233 = vadd.f32 %v1820, %v2232
    %2234 = vmatprep.mubr.f32.mxu0 0.0
    %v2235 = vand.u32 %v143, 4294901760
    %2236 = vmatmul.mubr.f32.gmra.mxu0 %v2235
    %v2237 = vpop.f32.mrf.mxu0
    %v2238 = vadd.f32 %v1827, %v2237
    %v2239 = vpop.f32.mrf.mxu0
    %v2240 = vadd.f32 %v1829, %v2239
    %2241 = vmatprep.mubr.f32.mxu0 0.0
    %v2242 = vand.u32 %v146, 4294901760
    %2243 = vmatmul.mubr.f32.gmra.mxu0 %v2242
    %v2244 = vpop.f32.mrf.mxu0
    %v2245 = vadd.f32 %v1836, %v2244
    %v2246 = vpop.f32.mrf.mxu0
    %v2247 = vadd.f32 %v1838, %v2246
    %2248 = vmatprep.mubr.f32.mxu0 0.0
    %v2249 = vand.u32 %v149, 4294901760
    %2250 = vmatmul.mubr.f32.gmra.mxu0 %v2249
    %v2251 = vpop.f32.mrf.mxu0
    %v2252 = vadd.f32 %v1845, %v2251
    %v2253 = vpop.f32.mrf.mxu0
    %v2254 = vadd.f32 %v1847, %v2253
    %2255 = vmatprep.mubr.f32.mxu0 0.0
    %v2256 = vand.u32 %v152, 4294901760
    %2257 = vmatmul.mubr.f32.gmra.mxu0 %v2256
    %v2258 = vpop.f32.mrf.mxu0
    %v2259 = vadd.f32 %v1854, %v2258
    %v2260 = vpop.f32.mrf.mxu0
    %v2261 = vadd.f32 %v1856, %v2260
    %2262 = vmatprep.mubr.f32.mxu0 0.0
    %v2263 = vand.u32 %v155, 4294901760
    %2264 = vmatmul.mubr.f32.gmra.mxu0 %v2263
    %v2265 = vpop.f32.mrf.mxu0
    %v2266 = vadd.f32 %v1863, %v2265
    %v2267 = vpop.f32.mrf.mxu0
    %v2268 = vadd.f32 %v1865, %v2267
    %2269 = vmatprep.mubr.f32.mxu0 0.0
    %v2270 = vand.u32 %v158, 4294901760
    %2271 = vmatmul.mubr.f32.gmra.mxu0 %v2270
    %v2272 = vpop.f32.mrf.mxu0
    %v2273 = vadd.f32 %v1872, %v2272
    %v2274 = vpop.f32.mrf.mxu0
    %v2275 = vadd.f32 %v1874, %v2274
    %2276 = vmatprep.mubr.f32.mxu0 0.0
    %v2277 = vand.u32 %v161, 4294901760
    %2278 = vmatmul.mubr.f32.gmra.mxu0 %v2277
    %v2279 = vpop.f32.mrf.mxu0
    %v2280 = vadd.f32 %v1881, %v2279
    %v2281 = vpop.f32.mrf.mxu0
    %v2282 = vadd.f32 %v1883, %v2281
    %2283 = vmatprep.mubr.f32.mxu0 0.0
    %v2284 = vand.u32 %v164, 4294901760
    %2285 = vmatmul.mubr.f32.gmra.mxu0 %v2284
    %v2286 = vpop.f32.mrf.mxu0
    %v2287 = vadd.f32 %v1890, %v2286
    %v2288 = vpop.f32.mrf.mxu0
    %v2289 = vadd.f32 %v1892, %v2288
    %2290 = vmatprep.mubr.f32.mxu0 0.0
    %v2291 = vand.u32 %v167, 4294901760
    %2292 = vmatmul.mubr.f32.gmra.mxu0 %v2291
    %v2293 = vpop.f32.mrf.mxu0
    %v2294 = vadd.f32 %v1899, %v2293
    %v2295 = vpop.f32.mrf.mxu0
    %v2296 = vadd.f32 %v1901, %v2295
    %2297 = vmatprep.mubr.f32.mxu0 0.0
    %v2298 = vand.u32 %v170, 4294901760
    %2299 = vmatmul.mubr.f32.gmra.mxu0 %v2298
    %v2300 = vpop.f32.mrf.mxu0
    %v2301 = vadd.f32 %v1908, %v2300
    %v2302 = vpop.f32.mrf.mxu0
    %v2303 = vadd.f32 %v1910, %v2302
    %2304 = vmatprep.mubr.f32.mxu0 0.0
    %v2305 = vand.u32 %v173, 4294901760
    %2306 = vmatmul.mubr.f32.gmra.mxu0 %v2305
    %v2307 = vpop.f32.mrf.mxu0
    %v2308 = vadd.f32 %v1917, %v2307
    %v2309 = vpop.f32.mrf.mxu0
    %v2310 = vadd.f32 %v1919, %v2309
    %2311 = vmatprep.mubr.f32.mxu0 0.0
    %v2312 = vand.u32 %v176, 4294901760
    %2313 = vmatmul.mubr.f32.gmra.mxu0 %v2312
    %v2314 = vpop.f32.mrf.mxu0
    %v2315 = vadd.f32 %v1926, %v2314
    %v2316 = vpop.f32.mrf.mxu0
    %v2317 = vadd.f32 %v1928, %v2316
    %2318 = vmatprep.mubr.f32.mxu0 0.0
    %v2319 = vand.u32 %v179, 4294901760
    %2320 = vmatmul.mubr.f32.gmra.mxu0 %v2319
    %v2321 = vpop.f32.mrf.mxu0
    %v2322 = vadd.f32 %v1935, %v2321
    %v2323 = vpop.f32.mrf.mxu0
    %v2324 = vadd.f32 %v1937, %v2323
    %2325 = vmatprep.mubr.f32.mxu0 0.0
    %v2326 = vand.u32 %v182, 4294901760
    %2327 = vmatmul.mubr.f32.gmra.mxu0 %v2326
    %v2328 = vpop.f32.mrf.mxu0
    %v2329 = vadd.f32 %v1944, %v2328
    %v2330 = vpop.f32.mrf.mxu0
    %v2331 = vadd.f32 %v1946, %v2330
    %2332 = vdwg.mxu0
    %2333 = vmatprep.subr.mxu0 0.0
    %v2334 = vand.u32 %v230, 4294901760
    %2335 = vmatpush1.xpose.msra.mxu0 %v2334
    %2336 = vmatprep.subr.mxu0 0.0
    %v2337 = vand.u32 %v227, 4294901760
    %2338 = vmatpush1.xpose.msra.mxu0 %v2337
    %2339 = vmatprep.subr.mxu0 0.0
    %v2340 = vand.u32 %v224, 4294901760
    %2341 = vmatpush1.xpose.msra.mxu0 %v2340
    %2342 = vmatprep.subr.mxu0 0.0
    %v2343 = vand.u32 %v221, 4294901760
    %2344 = vmatpush1.xpose.msra.mxu0 %v2343
    %2345 = vmatprep.subr.mxu0 0.0
    %v2346 = vand.u32 %v218, 4294901760
    %2347 = vmatpush1.xpose.msra.mxu0 %v2346
    %2348 = vmatprep.subr.mxu0 0.0
    %v2349 = vand.u32 %v215, 4294901760
    %2350 = vmatpush1.xpose.msra.mxu0 %v2349
    %2351 = vmatprep.subr.mxu0 0.0
    %v2352 = vand.u32 %v212, 4294901760
    %2353 = vmatpush1.xpose.msra.mxu0 %v2352
    %2354 = vmatprep.subr.mxu0 0.0
    %v2355 = vand.u32 %v209, 4294901760
    %2356 = vmatpush1.xpose.msra.mxu0 %v2355
    %2357 = vmatprep.subr.mxu0 0.0
    %v2358 = vand.u32 %v206, 4294901760
    %2359 = vmatpush1.xpose.msra.mxu0 %v2358
    %2360 = vmatprep.subr.mxu0 0.0
    %v2361 = vand.u32 %v203, 4294901760
    %2362 = vmatpush1.xpose.msra.mxu0 %v2361
    %2363 = vmatprep.subr.mxu0 0.0
    %v2364 = vand.u32 %v200, 4294901760
    %2365 = vmatpush1.xpose.msra.mxu0 %v2364
    %2366 = vmatprep.subr.mxu0 0.0
    %v2367 = vand.u32 %v197, 4294901760
    %2368 = vmatpush1.xpose.msra.mxu0 %v2367
    %2369 = vmatprep.subr.mxu0 0.0
    %v2370 = vand.u32 %v194, 4294901760
    %2371 = vmatpush1.xpose.msra.mxu0 %v2370
    %2372 = vmatprep.subr.mxu0 0.0
    %v2373 = vand.u32 %v191, 4294901760
    %2374 = vmatpush1.xpose.msra.mxu0 %v2373
    %2375 = vmatprep.subr.mxu0 0.0
    %v2376 = vand.u32 %v188, 4294901760
    %2377 = vmatpush1.xpose.msra.mxu0 %v2376
    %2378 = vmatprep.subr.mxu0 0.0
    %v2379 = vand.u32 %v185, 4294901760
    %2380 = vmatpush1.xpose.msra.mxu0 %v2379
    %2381 = vmatprep.subr.mxu0 0.0
    %v2382 = vand.u32 %v278, 4294901760
    %2383 = vmatpush2.xpose.msra.mxu0 %v2382
    %2384 = vmatprep.subr.mxu0 0.0
    %v2385 = vand.u32 %v275, 4294901760
    %2386 = vmatpush2.xpose.msra.mxu0 %v2385
    %2387 = vmatprep.subr.mxu0 0.0
    %v2388 = vand.u32 %v272, 4294901760
    %2389 = vmatpush2.xpose.msra.mxu0 %v2388
    %2390 = vmatprep.subr.mxu0 0.0
    %v2391 = vand.u32 %v269, 4294901760
    %2392 = vmatpush2.xpose.msra.mxu0 %v2391
    %2393 = vmatprep.subr.mxu0 0.0
    %v2394 = vand.u32 %v266, 4294901760
    %2395 = vmatpush2.xpose.msra.mxu0 %v2394
    %2396 = vmatprep.subr.mxu0 0.0
    %v2397 = vand.u32 %v263, 4294901760
    %2398 = vmatpush2.xpose.msra.mxu0 %v2397
    %2399 = vmatprep.subr.mxu0 0.0
    %v2400 = vand.u32 %v260, 4294901760
    %2401 = vmatpush2.xpose.msra.mxu0 %v2400
    %2402 = vmatprep.subr.mxu0 0.0
    %v2403 = vand.u32 %v257, 4294901760
    %2404 = vmatpush2.xpose.msra.mxu0 %v2403
    %2405 = vmatprep.subr.mxu0 0.0
    %v2406 = vand.u32 %v254, 4294901760
    %2407 = vmatpush2.xpose.msra.mxu0 %v2406
    %2408 = vmatprep.subr.mxu0 0.0
    %v2409 = vand.u32 %v251, 4294901760
    %2410 = vmatpush2.xpose.msra.mxu0 %v2409
    %2411 = vmatprep.subr.mxu0 0.0
    %v2412 = vand.u32 %v248, 4294901760
    %2413 = vmatpush2.xpose.msra.mxu0 %v2412
    %2414 = vmatprep.subr.mxu0 0.0
    %v2415 = vand.u32 %v245, 4294901760
    %2416 = vmatpush2.xpose.msra.mxu0 %v2415
    %2417 = vmatprep.subr.mxu0 0.0
    %v2418 = vand.u32 %v242, 4294901760
    %2419 = vmatpush2.xpose.msra.mxu0 %v2418
    %2420 = vmatprep.subr.mxu0 0.0
    %v2421 = vand.u32 %v239, 4294901760
    %2422 = vmatpush2.xpose.msra.mxu0 %v2421
    %2423 = vmatprep.subr.mxu0 0.0
    %v2424 = vand.u32 %v236, 4294901760
    %2425 = vmatpush2.xpose.msra.mxu0 %v2424
    %2426 = vmatprep.subr.mxu0 0.0
    %v2427 = vand.u32 %v233, 4294901760
    %2428 = vmatpush2.xpose.msra.mxu0 %v2427
    %2429 = vmatprep.mubr.f32.mxu0 0.0
    %v2430 = vand.u32 %v89, 4294901760
    %2431 = vmatmul.mubr.f32.gmra.mxu0 %v2430
    %v2432 = vpop.f32.mrf.mxu0
    %v2433 = vadd.f32 %v2112, %v2432
    %v2434 = vpop.f32.mrf.mxu0
    %v2435 = vadd.f32 %v2114, %v2434
    %2436 = vmatprep.mubr.f32.mxu0 0.0
    %v2437 = vand.u32 %v92, 4294901760
    %2438 = vmatmul.mubr.f32.gmra.mxu0 %v2437
    %v2439 = vpop.f32.mrf.mxu0
    %v2440 = vadd.f32 %v2119, %v2439
    %v2441 = vpop.f32.mrf.mxu0
    %v2442 = vadd.f32 %v2121, %v2441
    %2443 = vmatprep.mubr.f32.mxu0 0.0
    %v2444 = vand.u32 %v95, 4294901760
    %2445 = vmatmul.mubr.f32.gmra.mxu0 %v2444
    %v2446 = vpop.f32.mrf.mxu0
    %v2447 = vadd.f32 %v2126, %v2446
    %v2448 = vpop.f32.mrf.mxu0
    %v2449 = vadd.f32 %v2128, %v2448
    %2450 = vmatprep.mubr.f32.mxu0 0.0
    %v2451 = vand.u32 %v98, 4294901760
    %2452 = vmatmul.mubr.f32.gmra.mxu0 %v2451
    %v2453 = vpop.f32.mrf.mxu0
    %v2454 = vadd.f32 %v2133, %v2453
    %v2455 = vpop.f32.mrf.mxu0
    %v2456 = vadd.f32 %v2135, %v2455
    %2457 = vmatprep.mubr.f32.mxu0 0.0
    %v2458 = vand.u32 %v101, 4294901760
    %2459 = vmatmul.mubr.f32.gmra.mxu0 %v2458
    %v2460 = vpop.f32.mrf.mxu0
    %v2461 = vadd.f32 %v2140, %v2460
    %v2462 = vpop.f32.mrf.mxu0
    %v2463 = vadd.f32 %v2142, %v2462
    %2464 = vmatprep.mubr.f32.mxu0 0.0
    %v2465 = vand.u32 %v104, 4294901760
    %2466 = vmatmul.mubr.f32.gmra.mxu0 %v2465
    %v2467 = vpop.f32.mrf.mxu0
    %v2468 = vadd.f32 %v2147, %v2467
    %v2469 = vpop.f32.mrf.mxu0
    %v2470 = vadd.f32 %v2149, %v2469
    %2471 = vmatprep.mubr.f32.mxu0 0.0
    %v2472 = vand.u32 %v107, 4294901760
    %2473 = vmatmul.mubr.f32.gmra.mxu0 %v2472
    %v2474 = vpop.f32.mrf.mxu0
    %v2475 = vadd.f32 %v2154, %v2474
    %v2476 = vpop.f32.mrf.mxu0
    %v2477 = vadd.f32 %v2156, %v2476
    %2478 = vmatprep.mubr.f32.mxu0 0.0
    %v2479 = vand.u32 %v110, 4294901760
    %2480 = vmatmul.mubr.f32.gmra.mxu0 %v2479
    %v2481 = vpop.f32.mrf.mxu0
    %v2482 = vadd.f32 %v2161, %v2481
    %v2483 = vpop.f32.mrf.mxu0
    %v2484 = vadd.f32 %v2163, %v2483
    %2485 = vmatprep.mubr.f32.mxu0 0.0
    %v2486 = vand.u32 %v113, 4294901760
    %2487 = vmatmul.mubr.f32.gmra.mxu0 %v2486
    %v2488 = vpop.f32.mrf.mxu0
    %v2489 = vadd.f32 %v2168, %v2488
    %v2490 = vpop.f32.mrf.mxu0
    %v2491 = vadd.f32 %v2170, %v2490
    %2492 = vmatprep.mubr.f32.mxu0 0.0
    %v2493 = vand.u32 %v116, 4294901760
    %2494 = vmatmul.mubr.f32.gmra.mxu0 %v2493
    %v2495 = vpop.f32.mrf.mxu0
    %v2496 = vadd.f32 %v2175, %v2495
    %v2497 = vpop.f32.mrf.mxu0
    %v2498 = vadd.f32 %v2177, %v2497
    %2499 = vmatprep.mubr.f32.mxu0 0.0
    %v2500 = vand.u32 %v119, 4294901760
    %2501 = vmatmul.mubr.f32.gmra.mxu0 %v2500
    %v2502 = vpop.f32.mrf.mxu0
    %v2503 = vadd.f32 %v2182, %v2502
    %v2504 = vpop.f32.mrf.mxu0
    %v2505 = vadd.f32 %v2184, %v2504
    %2506 = vmatprep.mubr.f32.mxu0 0.0
    %v2507 = vand.u32 %v122, 4294901760
    %2508 = vmatmul.mubr.f32.gmra.mxu0 %v2507
    %v2509 = vpop.f32.mrf.mxu0
    %v2510 = vadd.f32 %v2189, %v2509
    %v2511 = vpop.f32.mrf.mxu0
    %v2512 = vadd.f32 %v2191, %v2511
    %2513 = vmatprep.mubr.f32.mxu0 0.0
    %v2514 = vand.u32 %v125, 4294901760
    %2515 = vmatmul.mubr.f32.gmra.mxu0 %v2514
    %v2516 = vpop.f32.mrf.mxu0
    %v2517 = vadd.f32 %v2196, %v2516
    %v2518 = vpop.f32.mrf.mxu0
    %v2519 = vadd.f32 %v2198, %v2518
    %2520 = vmatprep.mubr.f32.mxu0 0.0
    %v2521 = vand.u32 %v128, 4294901760
    %2522 = vmatmul.mubr.f32.gmra.mxu0 %v2521
    %v2523 = vpop.f32.mrf.mxu0
    %v2524 = vadd.f32 %v2203, %v2523
    %v2525 = vpop.f32.mrf.mxu0
    %v2526 = vadd.f32 %v2205, %v2525
    %2527 = vmatprep.mubr.f32.mxu0 0.0
    %v2528 = vand.u32 %v131, 4294901760
    %2529 = vmatmul.mubr.f32.gmra.mxu0 %v2528
    %v2530 = vpop.f32.mrf.mxu0
    %v2531 = vadd.f32 %v2210, %v2530
    %v2532 = vpop.f32.mrf.mxu0
    %v2533 = vadd.f32 %v2212, %v2532
    %2534 = vmatprep.mubr.f32.mxu0 0.0
    %v2535 = vand.u32 %v134, 4294901760
    %2536 = vmatmul.mubr.f32.gmra.mxu0 %v2535
    %v2537 = vpop.f32.mrf.mxu0
    %v2538 = vadd.f32 %v2217, %v2537
    %v2539 = vpop.f32.mrf.mxu0
    %v2540 = vadd.f32 %v2219, %v2539
    %2541 = vmatprep.mubr.f32.mxu0 0.0
    %v2542 = vand.u32 %v137, 4294901760
    %2543 = vmatmul.mubr.f32.gmra.mxu0 %v2542
    %v2544 = vpop.f32.mrf.mxu0
    %v2545 = vadd.f32 %v2224, %v2544
    %v2546 = vpop.f32.mrf.mxu0
    %v2547 = vadd.f32 %v2226, %v2546
    %2548 = vmatprep.mubr.f32.mxu0 0.0
    %v2549 = vand.u32 %v140, 4294901760
    %2550 = vmatmul.mubr.f32.gmra.mxu0 %v2549
    %v2551 = vpop.f32.mrf.mxu0
    %v2552 = vadd.f32 %v2231, %v2551
    %v2553 = vpop.f32.mrf.mxu0
    %v2554 = vadd.f32 %v2233, %v2553
    %2555 = vmatprep.mubr.f32.mxu0 0.0
    %v2556 = vand.u32 %v143, 4294901760
    %2557 = vmatmul.mubr.f32.gmra.mxu0 %v2556
    %v2558 = vpop.f32.mrf.mxu0
    %v2559 = vadd.f32 %v2238, %v2558
    %v2560 = vpop.f32.mrf.mxu0
    %v2561 = vadd.f32 %v2240, %v2560
    %2562 = vmatprep.mubr.f32.mxu0 0.0
    %v2563 = vand.u32 %v146, 4294901760
    %2564 = vmatmul.mubr.f32.gmra.mxu0 %v2563
    %v2565 = vpop.f32.mrf.mxu0
    %v2566 = vadd.f32 %v2245, %v2565
    %v2567 = vpop.f32.mrf.mxu0
    %v2568 = vadd.f32 %v2247, %v2567
    %2569 = vmatprep.mubr.f32.mxu0 0.0
    %v2570 = vand.u32 %v149, 4294901760
    %2571 = vmatmul.mubr.f32.gmra.mxu0 %v2570
    %v2572 = vpop.f32.mrf.mxu0
    %v2573 = vadd.f32 %v2252, %v2572
    %v2574 = vpop.f32.mrf.mxu0
    %v2575 = vadd.f32 %v2254, %v2574
    %2576 = vmatprep.mubr.f32.mxu0 0.0
    %v2577 = vand.u32 %v152, 4294901760
    %2578 = vmatmul.mubr.f32.gmra.mxu0 %v2577
    %v2579 = vpop.f32.mrf.mxu0
    %v2580 = vadd.f32 %v2259, %v2579
    %v2581 = vpop.f32.mrf.mxu0
    %v2582 = vadd.f32 %v2261, %v2581
    %2583 = vmatprep.mubr.f32.mxu0 0.0
    %v2584 = vand.u32 %v155, 4294901760
    %2585 = vmatmul.mubr.f32.gmra.mxu0 %v2584
    %v2586 = vpop.f32.mrf.mxu0
    %v2587 = vadd.f32 %v2266, %v2586
    %v2588 = vpop.f32.mrf.mxu0
    %v2589 = vadd.f32 %v2268, %v2588
    %2590 = vmatprep.mubr.f32.mxu0 0.0
    %v2591 = vand.u32 %v158, 4294901760
    %2592 = vmatmul.mubr.f32.gmra.mxu0 %v2591
    %v2593 = vpop.f32.mrf.mxu0
    %v2594 = vadd.f32 %v2273, %v2593
    %v2595 = vpop.f32.mrf.mxu0
    %v2596 = vadd.f32 %v2275, %v2595
    %2597 = vmatprep.mubr.f32.mxu0 0.0
    %v2598 = vand.u32 %v161, 4294901760
    %2599 = vmatmul.mubr.f32.gmra.mxu0 %v2598
    %v2600 = vpop.f32.mrf.mxu0
    %v2601 = vadd.f32 %v2280, %v2600
    %v2602 = vpop.f32.mrf.mxu0
    %v2603 = vadd.f32 %v2282, %v2602
    %2604 = vmatprep.mubr.f32.mxu0 0.0
    %v2605 = vand.u32 %v164, 4294901760
    %2606 = vmatmul.mubr.f32.gmra.mxu0 %v2605
    %v2607 = vpop.f32.mrf.mxu0
    %v2608 = vadd.f32 %v2287, %v2607
    %v2609 = vpop.f32.mrf.mxu0
    %v2610 = vadd.f32 %v2289, %v2609
    %2611 = vmatprep.mubr.f32.mxu0 0.0
    %v2612 = vand.u32 %v167, 4294901760
    %2613 = vmatmul.mubr.f32.gmra.mxu0 %v2612
    %v2614 = vpop.f32.mrf.mxu0
    %v2615 = vadd.f32 %v2294, %v2614
    %v2616 = vpop.f32.mrf.mxu0
    %v2617 = vadd.f32 %v2296, %v2616
    %2618 = vmatprep.mubr.f32.mxu0 0.0
    %v2619 = vand.u32 %v170, 4294901760
    %2620 = vmatmul.mubr.f32.gmra.mxu0 %v2619
    %v2621 = vpop.f32.mrf.mxu0
    %v2622 = vadd.f32 %v2301, %v2621
    %v2623 = vpop.f32.mrf.mxu0
    %v2624 = vadd.f32 %v2303, %v2623
    %2625 = vmatprep.mubr.f32.mxu0 0.0
    %v2626 = vand.u32 %v173, 4294901760
    %2627 = vmatmul.mubr.f32.gmra.mxu0 %v2626
    %v2628 = vpop.f32.mrf.mxu0
    %v2629 = vadd.f32 %v2308, %v2628
    %v2630 = vpop.f32.mrf.mxu0
    %v2631 = vadd.f32 %v2310, %v2630
    %2632 = vmatprep.mubr.f32.mxu0 0.0
    %v2633 = vand.u32 %v176, 4294901760
    %2634 = vmatmul.mubr.f32.gmra.mxu0 %v2633
    %v2635 = vpop.f32.mrf.mxu0
    %v2636 = vadd.f32 %v2315, %v2635
    %v2637 = vpop.f32.mrf.mxu0
    %v2638 = vadd.f32 %v2317, %v2637
    %2639 = vmatprep.mubr.f32.mxu0 0.0
    %v2640 = vand.u32 %v179, 4294901760
    %2641 = vmatmul.mubr.f32.gmra.mxu0 %v2640
    %v2642 = vpop.f32.mrf.mxu0
    %v2643 = vadd.f32 %v2322, %v2642
    %v2644 = vpop.f32.mrf.mxu0
    %v2645 = vadd.f32 %v2324, %v2644
    %2646 = vmatprep.mubr.f32.mxu0 0.0
    %v2647 = vand.u32 %v182, 4294901760
    %2648 = vmatmul.mubr.f32.gmra.mxu0 %v2647
    %v2649 = vpop.f32.mrf.mxu0
    %v2650 = vadd.f32 %v2329, %v2649
    %v2651 = vpop.f32.mrf.mxu0
    %v2652 = vadd.f32 %v2331, %v2651
    %2653 = vdwg.mxu0
    %v2654 = vld [vmem:[%s3] sm:$0xff]
    %v2655 = vld [vmem:[%s3 + $0x8] sm:$0xff]
    %v2656 = vld [vmem:[%s3 + $0x10] sm:$0xff]
    %v2657 = vld [vmem:[%s3 + $0x18] sm:$0xff]
    %v2658 = vld [vmem:[%s3 + $0x20] sm:$0xff]
    %v2659 = vld [vmem:[%s3 + $0x28] sm:$0xff]
    %v2660 = vld [vmem:[%s3 + $0x30] sm:$0xff]
    %v2661 = vld [vmem:[%s3 + $0x38] sm:$0xff]
    %v2662 = vld [vmem:[%s3 + $0x40] sm:$0xff]
    %v2663 = vld [vmem:[%s3 + $0x48] sm:$0xff]
    %v2664 = vld [vmem:[%s3 + $0x50] sm:$0xff]
    %v2665 = vld [vmem:[%s3 + $0x58] sm:$0xff]
    %v2666 = vld [vmem:[%s3 + $0x60] sm:$0xff]
    %v2667 = vld [vmem:[%s3 + $0x68] sm:$0xff]
    %v2668 = vld [vmem:[%s3 + $0x70] sm:$0xff]
    %v2669 = vld [vmem:[%s3 + $0x78] sm:$0xff]
    %v2670 = vld [vmem:[%s3 + $0x80] sm:$0xff]
    %v2671 = vld [vmem:[%s3 + $0x88] sm:$0xff]
    %v2672 = vld [vmem:[%s3 + $0x90] sm:$0xff]
    %v2673 = vld [vmem:[%s3 + $0x98] sm:$0xff]
    %v2674 = vld [vmem:[%s3 + $0xa0] sm:$0xff]
    %v2675 = vld [vmem:[%s3 + $0xa8] sm:$0xff]
    %v2676 = vld [vmem:[%s3 + $0xb0] sm:$0xff]
    %v2677 = vld [vmem:[%s3 + $0xb8] sm:$0xff]
    %v2678 = vld [vmem:[%s3 + $0xc0] sm:$0xff]
    %v2679 = vld [vmem:[%s3 + $0xc8] sm:$0xff]
    %v2680 = vld [vmem:[%s3 + $0xd0] sm:$0xff]
    %v2681 = vld [vmem:[%s3 + $0xd8] sm:$0xff]
    %v2682 = vld [vmem:[%s3 + $0xe0] sm:$0xff]
    %v2683 = vld [vmem:[%s3 + $0xe8] sm:$0xff]
    %v2684 = vld [vmem:[%s3 + $0xf0] sm:$0xff]
    %v2685 = vld [vmem:[%s3 + $0xf8] sm:$0xff]
    %v2686 = vld [vmem:[%s4] sm:$0x3]
    %2688 = vset.pattern.permute.xlu0 0
    %2689 = vperm.xlu0 %2688, %v2654
    %v2690 = vpop.permute.xlu0 %2689
    %2693 = vset.pattern.permute.xlu0 0
    %2694 = vperm.xlu0 %2693, %v2655
    %v2695 = vpop.permute.xlu0 %2694
    %2698 = vset.pattern.permute.xlu0 0
    %2699 = vperm.xlu0 %2698, %v2656
    %v2700 = vpop.permute.xlu0 %2699
    %2703 = vset.pattern.permute.xlu0 0
    %2704 = vperm.xlu0 %2703, %v2657
    %v2705 = vpop.permute.xlu0 %2704
    %2708 = vset.pattern.permute.xlu0 0
    %2709 = vperm.xlu0 %2708, %v2658
    %v2710 = vpop.permute.xlu0 %2709
    %2713 = vset.pattern.permute.xlu0 0
    %2714 = vperm.xlu0 %2713, %v2659
    %v2715 = vpop.permute.xlu0 %2714
    %2718 = vset.pattern.permute.xlu0 0
    %2719 = vperm.xlu0 %2718, %v2660
    %v2720 = vpop.permute.xlu0 %2719
    %2723 = vset.pattern.permute.xlu0 0
    %2724 = vperm.xlu0 %2723, %v2661
    %v2725 = vpop.permute.xlu0 %2724
    %2728 = vset.pattern.permute.xlu0 0
    %2729 = vperm.xlu0 %2728, %v2662
    %v2730 = vpop.permute.xlu0 %2729
    %2733 = vset.pattern.permute.xlu0 0
    %2734 = vperm.xlu0 %2733, %v2663
    %v2735 = vpop.permute.xlu0 %2734
    %2738 = vset.pattern.permute.xlu0 0
    %2739 = vperm.xlu0 %2738, %v2664
    %v2740 = vpop.permute.xlu0 %2739
    %2743 = vset.pattern.permute.xlu0 0
    %2744 = vperm.xlu0 %2743, %v2665
    %v2745 = vpop.permute.xlu0 %2744
    %2748 = vset.pattern.permute.xlu0 0
    %2749 = vperm.xlu0 %2748, %v2666
    %v2750 = vpop.permute.xlu0 %2749
    %2753 = vset.pattern.permute.xlu0 0
    %2754 = vperm.xlu0 %2753, %v2667
    %v2755 = vpop.permute.xlu0 %2754
    %2758 = vset.pattern.permute.xlu0 0
    %2759 = vperm.xlu0 %2758, %v2668
    %v2760 = vpop.permute.xlu0 %2759
    %2763 = vset.pattern.permute.xlu0 0
    %2764 = vperm.xlu0 %2763, %v2669
    %v2765 = vpop.permute.xlu0 %2764
    %2768 = vset.pattern.permute.xlu0 0
    %2769 = vperm.xlu0 %2768, %v2670
    %v2770 = vpop.permute.xlu0 %2769
    %2773 = vset.pattern.permute.xlu0 0
    %2774 = vperm.xlu0 %2773, %v2671
    %v2775 = vpop.permute.xlu0 %2774
    %2778 = vset.pattern.permute.xlu0 0
    %2779 = vperm.xlu0 %2778, %v2672
    %v2780 = vpop.permute.xlu0 %2779
    %2783 = vset.pattern.permute.xlu0 0
    %2784 = vperm.xlu0 %2783, %v2673
    %v2785 = vpop.permute.xlu0 %2784
    %2788 = vset.pattern.permute.xlu0 0
    %2789 = vperm.xlu0 %2788, %v2674
    %v2790 = vpop.permute.xlu0 %2789
    %2793 = vset.pattern.permute.xlu0 0
    %2794 = vperm.xlu0 %2793, %v2675
    %v2795 = vpop.permute.xlu0 %2794
    %2798 = vset.pattern.permute.xlu0 0
    %2799 = vperm.xlu0 %2798, %v2676
    %v2800 = vpop.permute.xlu0 %2799
    %2803 = vset.pattern.permute.xlu0 0
    %2804 = vperm.xlu0 %2803, %v2677
    %v2805 = vpop.permute.xlu0 %2804
    %2808 = vset.pattern.permute.xlu0 0
    %2809 = vperm.xlu0 %2808, %v2678
    %v2810 = vpop.permute.xlu0 %2809
    %2813 = vset.pattern.permute.xlu0 0
    %2814 = vperm.xlu0 %2813, %v2679
    %v2815 = vpop.permute.xlu0 %2814
    %2818 = vset.pattern.permute.xlu0 0
    %2819 = vperm.xlu0 %2818, %v2680
    %v2820 = vpop.permute.xlu0 %2819
    %2823 = vset.pattern.permute.xlu0 0
    %2824 = vperm.xlu0 %2823, %v2681
    %v2825 = vpop.permute.xlu0 %2824
    %2828 = vset.pattern.permute.xlu0 0
    %2829 = vperm.xlu0 %2828, %v2682
    %v2830 = vpop.permute.xlu0 %2829
    %2833 = vset.pattern.permute.xlu0 0
    %2834 = vperm.xlu0 %2833, %v2683
    %v2835 = vpop.permute.xlu0 %2834
    %2838 = vset.pattern.permute.xlu0 0
    %2839 = vperm.xlu0 %2838, %v2684
    %v2840 = vpop.permute.xlu0 %2839
    %2843 = vset.pattern.permute.xlu0 0
    %2844 = vperm.xlu0 %2843, %v2685
    %v2845 = vpop.permute.xlu0 %2844
    %v2848 = vlaneseq
    %v2849 = vshrl.u32 %v2848, 7
    %v2850 = vsub.s32 0, %v2849
    %v2851 = vrot.slane %v2686, %v2850
    %v2852 = vlaneseq
    %v2853 = vshrl.u32 %v2852, 7
    %v2854 = vsub.s32 1, %v2853
    %v2855 = vrot.slane %v2686, %v2854
    %v2858 = vadd.f32 %v2690, %v2851
    %v2859 = vadd.f32 %v2690, %v2855
    %v2860 = vadd.f32 %v2695, %v2851
    %v2861 = vadd.f32 %v2695, %v2855
    %v2862 = vadd.f32 %v2700, %v2851
    %v2863 = vadd.f32 %v2700, %v2855
    %v2864 = vadd.f32 %v2705, %v2851
    %v2865 = vadd.f32 %v2705, %v2855
    %v2866 = vadd.f32 %v2710, %v2851
    %v2867 = vadd.f32 %v2710, %v2855
    %v2868 = vadd.f32 %v2715, %v2851
    %v2869 = vadd.f32 %v2715, %v2855
    %v2870 = vadd.f32 %v2720, %v2851
    %v2871 = vadd.f32 %v2720, %v2855
    %v2872 = vadd.f32 %v2725, %v2851
    %v2873 = vadd.f32 %v2725, %v2855
    %v2874 = vadd.f32 %v2730, %v2851
    %v2875 = vadd.f32 %v2730, %v2855
    %v2876 = vadd.f32 %v2735, %v2851
    %v2877 = vadd.f32 %v2735, %v2855
    %v2878 = vadd.f32 %v2740, %v2851
    %v2879 = vadd.f32 %v2740, %v2855
    %v2880 = vadd.f32 %v2745, %v2851
    %v2881 = vadd.f32 %v2745, %v2855
    %v2882 = vadd.f32 %v2750, %v2851
    %v2883 = vadd.f32 %v2750, %v2855
    %v2884 = vadd.f32 %v2755, %v2851
    %v2885 = vadd.f32 %v2755, %v2855
    %v2886 = vadd.f32 %v2760, %v2851
    %v2887 = vadd.f32 %v2760, %v2855
    %v2888 = vadd.f32 %v2765, %v2851
    %v2889 = vadd.f32 %v2765, %v2855
    %v2890 = vadd.f32 %v2770, %v2851
    %v2891 = vadd.f32 %v2770, %v2855
    %v2892 = vadd.f32 %v2775, %v2851
    %v2893 = vadd.f32 %v2775, %v2855
    %v2894 = vadd.f32 %v2780, %v2851
    %v2895 = vadd.f32 %v2780, %v2855
    %v2896 = vadd.f32 %v2785, %v2851
    %v2897 = vadd.f32 %v2785, %v2855
    %v2898 = vadd.f32 %v2790, %v2851
    %v2899 = vadd.f32 %v2790, %v2855
    %v2900 = vadd.f32 %v2795, %v2851
    %v2901 = vadd.f32 %v2795, %v2855
    %v2902 = vadd.f32 %v2800, %v2851
    %v2903 = vadd.f32 %v2800, %v2855
    %v2904 = vadd.f32 %v2805, %v2851
    %v2905 = vadd.f32 %v2805, %v2855
    %v2906 = vadd.f32 %v2810, %v2851
    %v2907 = vadd.f32 %v2810, %v2855
    %v2908 = vadd.f32 %v2815, %v2851
    %v2909 = vadd.f32 %v2815, %v2855
    %v2910 = vadd.f32 %v2820, %v2851
    %v2911 = vadd.f32 %v2820, %v2855
    %v2912 = vadd.f32 %v2825, %v2851
    %v2913 = vadd.f32 %v2825, %v2855
    %v2914 = vadd.f32 %v2830, %v2851
    %v2915 = vadd.f32 %v2830, %v2855
    %v2916 = vadd.f32 %v2835, %v2851
    %v2917 = vadd.f32 %v2835, %v2855
    %v2918 = vadd.f32 %v2840, %v2851
    %v2919 = vadd.f32 %v2840, %v2855
    %v2920 = vadd.f32 %v2845, %v2851
    %v2921 = vadd.f32 %v2845, %v2855
    %v2922 = vmul.f32 %v2433, 2.0
    %v2923 = vmul.f32 %v2435, 2.0
    %v2924 = vmul.f32 %v2440, 2.0
    %v2925 = vmul.f32 %v2442, 2.0
    %v2926 = vmul.f32 %v2447, 2.0
    %v2927 = vmul.f32 %v2449, 2.0
    %v2928 = vmul.f32 %v2454, 2.0
    %v2929 = vmul.f32 %v2456, 2.0
    %v2930 = vmul.f32 %v2461, 2.0
    %v2931 = vmul.f32 %v2463, 2.0
    %v2932 = vmul.f32 %v2468, 2.0
    %v2933 = vmul.f32 %v2470, 2.0
    %v2934 = vmul.f32 %v2475, 2.0
    %v2935 = vmul.f32 %v2477, 2.0
    %v2936 = vmul.f32 %v2482, 2.0
    %v2937 = vmul.f32 %v2484, 2.0
    %v2938 = vmul.f32 %v2489, 2.0
    %v2939 = vmul.f32 %v2491, 2.0
    %v2940 = vmul.f32 %v2496, 2.0
    %v2941 = vmul.f32 %v2498, 2.0
    %v2942 = vmul.f32 %v2503, 2.0
    %v2943 = vmul.f32 %v2505, 2.0
    %v2944 = vmul.f32 %v2510, 2.0
    %v2945 = vmul.f32 %v2512, 2.0
    %v2946 = vmul.f32 %v2517, 2.0
    %v2947 = vmul.f32 %v2519, 2.0
    %v2948 = vmul.f32 %v2524, 2.0
    %v2949 = vmul.f32 %v2526, 2.0
    %v2950 = vmul.f32 %v2531, 2.0
    %v2951 = vmul.f32 %v2533, 2.0
    %v2952 = vmul.f32 %v2538, 2.0
    %v2953 = vmul.f32 %v2540, 2.0
    %v2954 = vmul.f32 %v2545, 2.0
    %v2955 = vmul.f32 %v2547, 2.0
    %v2956 = vmul.f32 %v2552, 2.0
    %v2957 = vmul.f32 %v2554, 2.0
    %v2958 = vmul.f32 %v2559, 2.0
    %v2959 = vmul.f32 %v2561, 2.0
    %v2960 = vmul.f32 %v2566, 2.0
    %v2961 = vmul.f32 %v2568, 2.0
    %v2962 = vmul.f32 %v2573, 2.0
    %v2963 = vmul.f32 %v2575, 2.0
    %v2964 = vmul.f32 %v2580, 2.0
    %v2965 = vmul.f32 %v2582, 2.0
    %v2966 = vmul.f32 %v2587, 2.0
    %v2967 = vmul.f32 %v2589, 2.0
    %v2968 = vmul.f32 %v2594, 2.0
    %v2969 = vmul.f32 %v2596, 2.0
    %v2970 = vmul.f32 %v2601, 2.0
    %v2971 = vmul.f32 %v2603, 2.0
    %v2972 = vmul.f32 %v2608, 2.0
    %v2973 = vmul.f32 %v2610, 2.0
    %v2974 = vmul.f32 %v2615, 2.0
    %v2975 = vmul.f32 %v2617, 2.0
    %v2976 = vmul.f32 %v2622, 2.0
    %v2977 = vmul.f32 %v2624, 2.0
    %v2978 = vmul.f32 %v2629, 2.0
    %v2979 = vmul.f32 %v2631, 2.0
    %v2980 = vmul.f32 %v2636, 2.0
    %v2981 = vmul.f32 %v2638, 2.0
    %v2982 = vmul.f32 %v2643, 2.0
    %v2983 = vmul.f32 %v2645, 2.0
    %v2984 = vmul.f32 %v2650, 2.0
    %v2985 = vmul.f32 %v2652, 2.0
    %v2986 = vsub.f32 %v2858, %v2922
    %v2987 = vsub.f32 %v2859, %v2923
    %v2988 = vsub.f32 %v2860, %v2924
    %v2989 = vsub.f32 %v2861, %v2925
    %v2990 = vsub.f32 %v2862, %v2926
    %v2991 = vsub.f32 %v2863, %v2927
    %v2992 = vsub.f32 %v2864, %v2928
    %v2993 = vsub.f32 %v2865, %v2929
    %v2994 = vsub.f32 %v2866, %v2930
    %v2995 = vsub.f32 %v2867, %v2931
    %v2996 = vsub.f32 %v2868, %v2932
    %v2997 = vsub.f32 %v2869, %v2933
    %v2998 = vsub.f32 %v2870, %v2934
    %v2999 = vsub.f32 %v2871, %v2935
    %v3000 = vsub.f32 %v2872, %v2936
    %v3001 = vsub.f32 %v2873, %v2937
    %v3002 = vsub.f32 %v2874, %v2938
    %v3003 = vsub.f32 %v2875, %v2939
    %v3004 = vsub.f32 %v2876, %v2940
    %v3005 = vsub.f32 %v2877, %v2941
    %v3006 = vsub.f32 %v2878, %v2942
    %v3007 = vsub.f32 %v2879, %v2943
    %v3008 = vsub.f32 %v2880, %v2944
    %v3009 = vsub.f32 %v2881, %v2945
    %v3010 = vsub.f32 %v2882, %v2946
    %v3011 = vsub.f32 %v2883, %v2947
    %v3012 = vsub.f32 %v2884, %v2948
    %v3013 = vsub.f32 %v2885, %v2949
    %v3014 = vsub.f32 %v2886, %v2950
    %v3015 = vsub.f32 %v2887, %v2951
    %v3016 = vsub.f32 %v2888, %v2952
    %v3017 = vsub.f32 %v2889, %v2953
    %v3018 = vsub.f32 %v2890, %v2954
    %v3019 = vsub.f32 %v2891, %v2955
    %v3020 = vsub.f32 %v2892, %v2956
    %v3021 = vsub.f32 %v2893, %v2957
    %v3022 = vsub.f32 %v2894, %v2958
    %v3023 = vsub.f32 %v2895, %v2959
    %v3024 = vsub.f32 %v2896, %v2960
    %v3025 = vsub.f32 %v2897, %v2961
    %v3026 = vsub.f32 %v2898, %v2962
    %v3027 = vsub.f32 %v2899, %v2963
    %v3028 = vsub.f32 %v2900, %v2964
    %v3029 = vsub.f32 %v2901, %v2965
    %v3030 = vsub.f32 %v2902, %v2966
    %v3031 = vsub.f32 %v2903, %v2967
    %v3032 = vsub.f32 %v2904, %v2968
    %v3033 = vsub.f32 %v2905, %v2969
    %v3034 = vsub.f32 %v2906, %v2970
    %v3035 = vsub.f32 %v2907, %v2971
    %v3036 = vsub.f32 %v2908, %v2972
    %v3037 = vsub.f32 %v2909, %v2973
    %v3038 = vsub.f32 %v2910, %v2974
    %v3039 = vsub.f32 %v2911, %v2975
    %v3040 = vsub.f32 %v2912, %v2976
    %v3041 = vsub.f32 %v2913, %v2977
    %v3042 = vsub.f32 %v2914, %v2978
    %v3043 = vsub.f32 %v2915, %v2979
    %v3044 = vsub.f32 %v2916, %v2980
    %v3045 = vsub.f32 %v2917, %v2981
    %v3046 = vsub.f32 %v2918, %v2982
    %v3047 = vsub.f32 %v2919, %v2983
    %v3048 = vsub.f32 %v2920, %v2984
    %v3049 = vsub.f32 %v2921, %v2985
    %v3050 = vstv %s22
    %v3051 = vmul.f32 %v3050, %v2986
    %v3052 = vmul.f32 %v3050, %v2987
    %v3053 = vmul.f32 %v3050, %v2988
    %v3054 = vmul.f32 %v3050, %v2989
    %v3055 = vmul.f32 %v3050, %v2990
    %v3056 = vmul.f32 %v3050, %v2991
    %v3057 = vmul.f32 %v3050, %v2992
    %v3058 = vmul.f32 %v3050, %v2993
    %v3059 = vmul.f32 %v3050, %v2994
    %v3060 = vmul.f32 %v3050, %v2995
    %v3061 = vmul.f32 %v3050, %v2996
    %v3062 = vmul.f32 %v3050, %v2997
    %v3063 = vmul.f32 %v3050, %v2998
    %v3064 = vmul.f32 %v3050, %v2999
    %v3065 = vmul.f32 %v3050, %v3000
    %v3066 = vmul.f32 %v3050, %v3001
    %v3067 = vmul.f32 %v3050, %v3002
    %v3068 = vmul.f32 %v3050, %v3003
    %v3069 = vmul.f32 %v3050, %v3004
    %v3070 = vmul.f32 %v3050, %v3005
    %v3071 = vmul.f32 %v3050, %v3006
    %v3072 = vmul.f32 %v3050, %v3007
    %v3073 = vmul.f32 %v3050, %v3008
    %v3074 = vmul.f32 %v3050, %v3009
    %v3075 = vmul.f32 %v3050, %v3010
    %v3076 = vmul.f32 %v3050, %v3011
    %v3077 = vmul.f32 %v3050, %v3012
    %v3078 = vmul.f32 %v3050, %v3013
    %v3079 = vmul.f32 %v3050, %v3014
    %v3080 = vmul.f32 %v3050, %v3015
    %v3081 = vmul.f32 %v3050, %v3016
    %v3082 = vmul.f32 %v3050, %v3017
    %v3083 = vmul.f32 %v3050, %v3018
    %v3084 = vmul.f32 %v3050, %v3019
    %v3085 = vmul.f32 %v3050, %v3020
    %v3086 = vmul.f32 %v3050, %v3021
    %v3087 = vmul.f32 %v3050, %v3022
    %v3088 = vmul.f32 %v3050, %v3023
    %v3089 = vmul.f32 %v3050, %v3024
    %v3090 = vmul.f32 %v3050, %v3025
    %v3091 = vmul.f32 %v3050, %v3026
    %v3092 = vmul.f32 %v3050, %v3027
    %v3093 = vmul.f32 %v3050, %v3028
    %v3094 = vmul.f32 %v3050, %v3029
    %v3095 = vmul.f32 %v3050, %v3030
    %v3096 = vmul.f32 %v3050, %v3031
    %v3097 = vmul.f32 %v3050, %v3032
    %v3098 = vmul.f32 %v3050, %v3033
    %v3099 = vmul.f32 %v3050, %v3034
    %v3100 = vmul.f32 %v3050, %v3035
    %v3101 = vmul.f32 %v3050, %v3036
    %v3102 = vmul.f32 %v3050, %v3037
    %v3103 = vmul.f32 %v3050, %v3038
    %v3104 = vmul.f32 %v3050, %v3039
    %v3105 = vmul.f32 %v3050, %v3040
    %v3106 = vmul.f32 %v3050, %v3041
    %v3107 = vmul.f32 %v3050, %v3042
    %v3108 = vmul.f32 %v3050, %v3043
    %v3109 = vmul.f32 %v3050, %v3044
    %v3110 = vmul.f32 %v3050, %v3045
    %v3111 = vmul.f32 %v3050, %v3046
    %v3112 = vmul.f32 %v3050, %v3047
    %v3113 = vmul.f32 %v3050, %v3048
    %v3114 = vmul.f32 %v3050, %v3049
    %v3115 = vmax.f32 %v3051, 0.0
    %v3116 = vmax.f32 %v3052, 0.0
    %v3117 = vmax.f32 %v3053, 0.0
    %v3118 = vmax.f32 %v3054, 0.0
    %v3119 = vmax.f32 %v3055, 0.0
    %v3120 = vmax.f32 %v3056, 0.0
    %v3121 = vmax.f32 %v3057, 0.0
    %v3122 = vmax.f32 %v3058, 0.0
    %v3123 = vmax.f32 %v3059, 0.0
    %v3124 = vmax.f32 %v3060, 0.0
    %v3125 = vmax.f32 %v3061, 0.0
    %v3126 = vmax.f32 %v3062, 0.0
    %v3127 = vmax.f32 %v3063, 0.0
    %v3128 = vmax.f32 %v3064, 0.0
    %v3129 = vmax.f32 %v3065, 0.0
    %v3130 = vmax.f32 %v3066, 0.0
    %v3131 = vmax.f32 %v3067, 0.0
    %v3132 = vmax.f32 %v3068, 0.0
    %v3133 = vmax.f32 %v3069, 0.0
    %v3134 = vmax.f32 %v3070, 0.0
    %v3135 = vmax.f32 %v3071, 0.0
    %v3136 = vmax.f32 %v3072, 0.0
    %v3137 = vmax.f32 %v3073, 0.0
    %v3138 = vmax.f32 %v3074, 0.0
    %v3139 = vmax.f32 %v3075, 0.0
    %v3140 = vmax.f32 %v3076, 0.0
    %v3141 = vmax.f32 %v3077, 0.0
    %v3142 = vmax.f32 %v3078, 0.0
    %v3143 = vmax.f32 %v3079, 0.0
    %v3144 = vmax.f32 %v3080, 0.0
    %v3145 = vmax.f32 %v3081, 0.0
    %v3146 = vmax.f32 %v3082, 0.0
    %v3147 = vmax.f32 %v3083, 0.0
    %v3148 = vmax.f32 %v3084, 0.0
    %v3149 = vmax.f32 %v3085, 0.0
    %v3150 = vmax.f32 %v3086, 0.0
    %v3151 = vmax.f32 %v3087, 0.0
    %v3152 = vmax.f32 %v3088, 0.0
    %v3153 = vmax.f32 %v3089, 0.0
    %v3154 = vmax.f32 %v3090, 0.0
    %v3155 = vmax.f32 %v3091, 0.0
    %v3156 = vmax.f32 %v3092, 0.0
    %v3157 = vmax.f32 %v3093, 0.0
    %v3158 = vmax.f32 %v3094, 0.0
    %v3159 = vmax.f32 %v3095, 0.0
    %v3160 = vmax.f32 %v3096, 0.0
    %v3161 = vmax.f32 %v3097, 0.0
    %v3162 = vmax.f32 %v3098, 0.0
    %v3163 = vmax.f32 %v3099, 0.0
    %v3164 = vmax.f32 %v3100, 0.0
    %v3165 = vmax.f32 %v3101, 0.0
    %v3166 = vmax.f32 %v3102, 0.0
    %v3167 = vmax.f32 %v3103, 0.0
    %v3168 = vmax.f32 %v3104, 0.0
    %v3169 = vmax.f32 %v3105, 0.0
    %v3170 = vmax.f32 %v3106, 0.0
    %v3171 = vmax.f32 %v3107, 0.0
    %v3172 = vmax.f32 %v3108, 0.0
    %v3173 = vmax.f32 %v3109, 0.0
    %v3174 = vmax.f32 %v3110, 0.0
    %v3175 = vmax.f32 %v3111, 0.0
    %v3176 = vmax.f32 %v3112, 0.0
    %v3177 = vmax.f32 %v3113, 0.0
    %v3178 = vmax.f32 %v3114, 0.0
    %v3179 = vmul.f32 %v3115, 5.0
    %v3180 = vmul.f32 %v3116, 5.0
    %v3181 = vmul.f32 %v3117, 5.0
    %v3182 = vmul.f32 %v3118, 5.0
    %v3183 = vmul.f32 %v3119, 5.0
    %v3184 = vmul.f32 %v3120, 5.0
    %v3185 = vmul.f32 %v3121, 5.0
    %v3186 = vmul.f32 %v3122, 5.0
    %v3187 = vmul.f32 %v3123, 5.0
    %v3188 = vmul.f32 %v3124, 5.0
    %v3189 = vmul.f32 %v3125, 5.0
    %v3190 = vmul.f32 %v3126, 5.0
    %v3191 = vmul.f32 %v3127, 5.0
    %v3192 = vmul.f32 %v3128, 5.0
    %v3193 = vmul.f32 %v3129, 5.0
    %v3194 = vmul.f32 %v3130, 5.0
    %v3195 = vmul.f32 %v3131, 5.0
    %v3196 = vmul.f32 %v3132, 5.0
    %v3197 = vmul.f32 %v3133, 5.0
    %v3198 = vmul.f32 %v3134, 5.0
    %v3199 = vmul.f32 %v3135, 5.0
    %v3200 = vmul.f32 %v3136, 5.0
    %v3201 = vmul.f32 %v3137, 5.0
    %v3202 = vmul.f32 %v3138, 5.0
    %v3203 = vmul.f32 %v3139, 5.0
    %v3204 = vmul.f32 %v3140, 5.0
    %v3205 = vmul.f32 %v3141, 5.0
    %v3206 = vmul.f32 %v3142, 5.0
    %v3207 = vmul.f32 %v3143, 5.0
    %v3208 = vmul.f32 %v3144, 5.0
    %v3209 = vmul.f32 %v3145, 5.0
    %v3210 = vmul.f32 %v3146, 5.0
    %v3211 = vmul.f32 %v3147, 5.0
    %v3212 = vmul.f32 %v3148, 5.0
    %v3213 = vmul.f32 %v3149, 5.0
    %v3214 = vmul.f32 %v3150, 5.0
    %v3215 = vmul.f32 %v3151, 5.0
    %v3216 = vmul.f32 %v3152, 5.0
    %v3217 = vmul.f32 %v3153, 5.0
    %v3218 = vmul.f32 %v3154, 5.0
    %v3219 = vmul.f32 %v3155, 5.0
    %v3220 = vmul.f32 %v3156, 5.0
    %v3221 = vmul.f32 %v3157, 5.0
    %v3222 = vmul.f32 %v3158, 5.0
    %v3223 = vmul.f32 %v3159, 5.0
    %v3224 = vmul.f32 %v3160, 5.0
    %v3225 = vmul.f32 %v3161, 5.0
    %v3226 = vmul.f32 %v3162, 5.0
    %v3227 = vmul.f32 %v3163, 5.0
    %v3228 = vmul.f32 %v3164, 5.0
    %v3229 = vmul.f32 %v3165, 5.0
    %v3230 = vmul.f32 %v3166, 5.0
    %v3231 = vmul.f32 %v3167, 5.0
    %v3232 = vmul.f32 %v3168, 5.0
    %v3233 = vmul.f32 %v3169, 5.0
    %v3234 = vmul.f32 %v3170, 5.0
    %v3235 = vmul.f32 %v3171, 5.0
    %v3236 = vmul.f32 %v3172, 5.0
    %v3237 = vmul.f32 %v3173, 5.0
    %v3238 = vmul.f32 %v3174, 5.0
    %v3239 = vmul.f32 %v3175, 5.0
    %v3240 = vmul.f32 %v3176, 5.0
    %v3241 = vmul.f32 %v3177, 5.0
    %v3242 = vmul.f32 %v3178, 5.0
    %v3243 = vrsqrt.pop %v3179
    %v3244 = vmul.f32 %v3179, %v3243
    %vm3245 = vcmp.eq.f32.partialorder %v3179, inf
    %v3246 = vsel %vm3245, %v3179, %v3244
    %vm3247 = vcmp.eq.f32.partialorder %v3179, 0.0
    %v3248 = vand.u32 %v3179, 2147483648
    %v3249 = vsel %vm3247, %v3248, %v3246
    %v3250 = vrsqrt.pop %v3180
    %v3251 = vmul.f32 %v3180, %v3250
    %vm3252 = vcmp.eq.f32.partialorder %v3180, inf
    %v3253 = vsel %vm3252, %v3180, %v3251
    %vm3254 = vcmp.eq.f32.partialorder %v3180, 0.0
    %v3255 = vand.u32 %v3180, 2147483648
    %v3256 = vsel %vm3254, %v3255, %v3253
    %v3257 = vrsqrt.pop %v3181
    %v3258 = vmul.f32 %v3181, %v3257
    %vm3259 = vcmp.eq.f32.partialorder %v3181, inf
    %v3260 = vsel %vm3259, %v3181, %v3258
    %vm3261 = vcmp.eq.f32.partialorder %v3181, 0.0
    %v3262 = vand.u32 %v3181, 2147483648
    %v3263 = vsel %vm3261, %v3262, %v3260
    %v3264 = vrsqrt.pop %v3182
    %v3265 = vmul.f32 %v3182, %v3264
    %vm3266 = vcmp.eq.f32.partialorder %v3182, inf
    %v3267 = vsel %vm3266, %v3182, %v3265
    %vm3268 = vcmp.eq.f32.partialorder %v3182, 0.0
    %v3269 = vand.u32 %v3182, 2147483648
    %v3270 = vsel %vm3268, %v3269, %v3267
    %v3271 = vrsqrt.pop %v3183
    %v3272 = vmul.f32 %v3183, %v3271
    %vm3273 = vcmp.eq.f32.partialorder %v3183, inf
    %v3274 = vsel %vm3273, %v3183, %v3272
    %vm3275 = vcmp.eq.f32.partialorder %v3183, 0.0
    %v3276 = vand.u32 %v3183, 2147483648
    %v3277 = vsel %vm3275, %v3276, %v3274
    %v3278 = vrsqrt.pop %v3184
    %v3279 = vmul.f32 %v3184, %v3278
    %vm3280 = vcmp.eq.f32.partialorder %v3184, inf
    %v3281 = vsel %vm3280, %v3184, %v3279
    %vm3282 = vcmp.eq.f32.partialorder %v3184, 0.0
    %v3283 = vand.u32 %v3184, 2147483648
    %v3284 = vsel %vm3282, %v3283, %v3281
    %v3285 = vrsqrt.pop %v3185
    %v3286 = vmul.f32 %v3185, %v3285
    %vm3287 = vcmp.eq.f32.partialorder %v3185, inf
    %v3288 = vsel %vm3287, %v3185, %v3286
    %vm3289 = vcmp.eq.f32.partialorder %v3185, 0.0
    %v3290 = vand.u32 %v3185, 2147483648
    %v3291 = vsel %vm3289, %v3290, %v3288
    %v3292 = vrsqrt.pop %v3186
    %v3293 = vmul.f32 %v3186, %v3292
    %vm3294 = vcmp.eq.f32.partialorder %v3186, inf
    %v3295 = vsel %vm3294, %v3186, %v3293
    %vm3296 = vcmp.eq.f32.partialorder %v3186, 0.0
    %v3297 = vand.u32 %v3186, 2147483648
    %v3298 = vsel %vm3296, %v3297, %v3295
    %v3299 = vrsqrt.pop %v3187
    %v3300 = vmul.f32 %v3187, %v3299
    %vm3301 = vcmp.eq.f32.partialorder %v3187, inf
    %v3302 = vsel %vm3301, %v3187, %v3300
    %vm3303 = vcmp.eq.f32.partialorder %v3187, 0.0
    %v3304 = vand.u32 %v3187, 2147483648
    %v3305 = vsel %vm3303, %v3304, %v3302
    %v3306 = vrsqrt.pop %v3188
    %v3307 = vmul.f32 %v3188, %v3306
    %vm3308 = vcmp.eq.f32.partialorder %v3188, inf
    %v3309 = vsel %vm3308, %v3188, %v3307
    %vm3310 = vcmp.eq.f32.partialorder %v3188, 0.0
    %v3311 = vand.u32 %v3188, 2147483648
    %v3312 = vsel %vm3310, %v3311, %v3309
    %v3313 = vrsqrt.pop %v3189
    %v3314 = vmul.f32 %v3189, %v3313
    %vm3315 = vcmp.eq.f32.partialorder %v3189, inf
    %v3316 = vsel %vm3315, %v3189, %v3314
    %vm3317 = vcmp.eq.f32.partialorder %v3189, 0.0
    %v3318 = vand.u32 %v3189, 2147483648
    %v3319 = vsel %vm3317, %v3318, %v3316
    %v3320 = vrsqrt.pop %v3190
    %v3321 = vmul.f32 %v3190, %v3320
    %vm3322 = vcmp.eq.f32.partialorder %v3190, inf
    %v3323 = vsel %vm3322, %v3190, %v3321
    %vm3324 = vcmp.eq.f32.partialorder %v3190, 0.0
    %v3325 = vand.u32 %v3190, 2147483648
    %v3326 = vsel %vm3324, %v3325, %v3323
    %v3327 = vrsqrt.pop %v3191
    %v3328 = vmul.f32 %v3191, %v3327
    %vm3329 = vcmp.eq.f32.partialorder %v3191, inf
    %v3330 = vsel %vm3329, %v3191, %v3328
    %vm3331 = vcmp.eq.f32.partialorder %v3191, 0.0
    %v3332 = vand.u32 %v3191, 2147483648
    %v3333 = vsel %vm3331, %v3332, %v3330
    %v3334 = vrsqrt.pop %v3192
    %v3335 = vmul.f32 %v3192, %v3334
    %vm3336 = vcmp.eq.f32.partialorder %v3192, inf
    %v3337 = vsel %vm3336, %v3192, %v3335
    %vm3338 = vcmp.eq.f32.partialorder %v3192, 0.0
    %v3339 = vand.u32 %v3192, 2147483648
    %v3340 = vsel %vm3338, %v3339, %v3337
    %v3341 = vrsqrt.pop %v3193
    %v3342 = vmul.f32 %v3193, %v3341
    %vm3343 = vcmp.eq.f32.partialorder %v3193, inf
    %v3344 = vsel %vm3343, %v3193, %v3342
    %vm3345 = vcmp.eq.f32.partialorder %v3193, 0.0
    %v3346 = vand.u32 %v3193, 2147483648
    %v3347 = vsel %vm3345, %v3346, %v3344
    %v3348 = vrsqrt.pop %v3194
    %v3349 = vmul.f32 %v3194, %v3348
    %vm3350 = vcmp.eq.f32.partialorder %v3194, inf
    %v3351 = vsel %vm3350, %v3194, %v3349
    %vm3352 = vcmp.eq.f32.partialorder %v3194, 0.0
    %v3353 = vand.u32 %v3194, 2147483648
    %v3354 = vsel %vm3352, %v3353, %v3351
    %v3355 = vrsqrt.pop %v3195
    %v3356 = vmul.f32 %v3195, %v3355
    %vm3357 = vcmp.eq.f32.partialorder %v3195, inf
    %v3358 = vsel %vm3357, %v3195, %v3356
    %vm3359 = vcmp.eq.f32.partialorder %v3195, 0.0
    %v3360 = vand.u32 %v3195, 2147483648
    %v3361 = vsel %vm3359, %v3360, %v3358
    %v3362 = vrsqrt.pop %v3196
    %v3363 = vmul.f32 %v3196, %v3362
    %vm3364 = vcmp.eq.f32.partialorder %v3196, inf
    %v3365 = vsel %vm3364, %v3196, %v3363
    %vm3366 = vcmp.eq.f32.partialorder %v3196, 0.0
    %v3367 = vand.u32 %v3196, 2147483648
    %v3368 = vsel %vm3366, %v3367, %v3365
    %v3369 = vrsqrt.pop %v3197
    %v3370 = vmul.f32 %v3197, %v3369
    %vm3371 = vcmp.eq.f32.partialorder %v3197, inf
    %v3372 = vsel %vm3371, %v3197, %v3370
    %vm3373 = vcmp.eq.f32.partialorder %v3197, 0.0
    %v3374 = vand.u32 %v3197, 2147483648
    %v3375 = vsel %vm3373, %v3374, %v3372
    %v3376 = vrsqrt.pop %v3198
    %v3377 = vmul.f32 %v3198, %v3376
    %vm3378 = vcmp.eq.f32.partialorder %v3198, inf
    %v3379 = vsel %vm3378, %v3198, %v3377
    %vm3380 = vcmp.eq.f32.partialorder %v3198, 0.0
    %v3381 = vand.u32 %v3198, 2147483648
    %v3382 = vsel %vm3380, %v3381, %v3379
    %v3383 = vrsqrt.pop %v3199
    %v3384 = vmul.f32 %v3199, %v3383
    %vm3385 = vcmp.eq.f32.partialorder %v3199, inf
    %v3386 = vsel %vm3385, %v3199, %v3384
    %vm3387 = vcmp.eq.f32.partialorder %v3199, 0.0
    %v3388 = vand.u32 %v3199, 2147483648
    %v3389 = vsel %vm3387, %v3388, %v3386
    %v3390 = vrsqrt.pop %v3200
    %v3391 = vmul.f32 %v3200, %v3390
    %vm3392 = vcmp.eq.f32.partialorder %v3200, inf
    %v3393 = vsel %vm3392, %v3200, %v3391
    %vm3394 = vcmp.eq.f32.partialorder %v3200, 0.0
    %v3395 = vand.u32 %v3200, 2147483648
    %v3396 = vsel %vm3394, %v3395, %v3393
    %v3397 = vrsqrt.pop %v3201
    %v3398 = vmul.f32 %v3201, %v3397
    %vm3399 = vcmp.eq.f32.partialorder %v3201, inf
    %v3400 = vsel %vm3399, %v3201, %v3398
    %vm3401 = vcmp.eq.f32.partialorder %v3201, 0.0
    %v3402 = vand.u32 %v3201, 2147483648
    %v3403 = vsel %vm3401, %v3402, %v3400
    %v3404 = vrsqrt.pop %v3202
    %v3405 = vmul.f32 %v3202, %v3404
    %vm3406 = vcmp.eq.f32.partialorder %v3202, inf
    %v3407 = vsel %vm3406, %v3202, %v3405
    %vm3408 = vcmp.eq.f32.partialorder %v3202, 0.0
    %v3409 = vand.u32 %v3202, 2147483648
    %v3410 = vsel %vm3408, %v3409, %v3407
    %v3411 = vrsqrt.pop %v3203
    %v3412 = vmul.f32 %v3203, %v3411
    %vm3413 = vcmp.eq.f32.partialorder %v3203, inf
    %v3414 = vsel %vm3413, %v3203, %v3412
    %vm3415 = vcmp.eq.f32.partialorder %v3203, 0.0
    %v3416 = vand.u32 %v3203, 2147483648
    %v3417 = vsel %vm3415, %v3416, %v3414
    %v3418 = vrsqrt.pop %v3204
    %v3419 = vmul.f32 %v3204, %v3418
    %vm3420 = vcmp.eq.f32.partialorder %v3204, inf
    %v3421 = vsel %vm3420, %v3204, %v3419
    %vm3422 = vcmp.eq.f32.partialorder %v3204, 0.0
    %v3423 = vand.u32 %v3204, 2147483648
    %v3424 = vsel %vm3422, %v3423, %v3421
    %v3425 = vrsqrt.pop %v3205
    %v3426 = vmul.f32 %v3205, %v3425
    %vm3427 = vcmp.eq.f32.partialorder %v3205, inf
    %v3428 = vsel %vm3427, %v3205, %v3426
    %vm3429 = vcmp.eq.f32.partialorder %v3205, 0.0
    %v3430 = vand.u32 %v3205, 2147483648
    %v3431 = vsel %vm3429, %v3430, %v3428
    %v3432 = vrsqrt.pop %v3206
    %v3433 = vmul.f32 %v3206, %v3432
    %vm3434 = vcmp.eq.f32.partialorder %v3206, inf
    %v3435 = vsel %vm3434, %v3206, %v3433
    %vm3436 = vcmp.eq.f32.partialorder %v3206, 0.0
    %v3437 = vand.u32 %v3206, 2147483648
    %v3438 = vsel %vm3436, %v3437, %v3435
    %v3439 = vrsqrt.pop %v3207
    %v3440 = vmul.f32 %v3207, %v3439
    %vm3441 = vcmp.eq.f32.partialorder %v3207, inf
    %v3442 = vsel %vm3441, %v3207, %v3440
    %vm3443 = vcmp.eq.f32.partialorder %v3207, 0.0
    %v3444 = vand.u32 %v3207, 2147483648
    %v3445 = vsel %vm3443, %v3444, %v3442
    %v3446 = vrsqrt.pop %v3208
    %v3447 = vmul.f32 %v3208, %v3446
    %vm3448 = vcmp.eq.f32.partialorder %v3208, inf
    %v3449 = vsel %vm3448, %v3208, %v3447
    %vm3450 = vcmp.eq.f32.partialorder %v3208, 0.0
    %v3451 = vand.u32 %v3208, 2147483648
    %v3452 = vsel %vm3450, %v3451, %v3449
    %v3453 = vrsqrt.pop %v3209
    %v3454 = vmul.f32 %v3209, %v3453
    %vm3455 = vcmp.eq.f32.partialorder %v3209, inf
    %v3456 = vsel %vm3455, %v3209, %v3454
    %vm3457 = vcmp.eq.f32.partialorder %v3209, 0.0
    %v3458 = vand.u32 %v3209, 2147483648
    %v3459 = vsel %vm3457, %v3458, %v3456
    %v3460 = vrsqrt.pop %v3210
    %v3461 = vmul.f32 %v3210, %v3460
    %vm3462 = vcmp.eq.f32.partialorder %v3210, inf
    %v3463 = vsel %vm3462, %v3210, %v3461
    %vm3464 = vcmp.eq.f32.partialorder %v3210, 0.0
    %v3465 = vand.u32 %v3210, 2147483648
    %v3466 = vsel %vm3464, %v3465, %v3463
    %v3467 = vrsqrt.pop %v3211
    %v3468 = vmul.f32 %v3211, %v3467
    %vm3469 = vcmp.eq.f32.partialorder %v3211, inf
    %v3470 = vsel %vm3469, %v3211, %v3468
    %vm3471 = vcmp.eq.f32.partialorder %v3211, 0.0
    %v3472 = vand.u32 %v3211, 2147483648
    %v3473 = vsel %vm3471, %v3472, %v3470
    %v3474 = vrsqrt.pop %v3212
    %v3475 = vmul.f32 %v3212, %v3474
    %vm3476 = vcmp.eq.f32.partialorder %v3212, inf
    %v3477 = vsel %vm3476, %v3212, %v3475
    %vm3478 = vcmp.eq.f32.partialorder %v3212, 0.0
    %v3479 = vand.u32 %v3212, 2147483648
    %v3480 = vsel %vm3478, %v3479, %v3477
    %v3481 = vrsqrt.pop %v3213
    %v3482 = vmul.f32 %v3213, %v3481
    %vm3483 = vcmp.eq.f32.partialorder %v3213, inf
    %v3484 = vsel %vm3483, %v3213, %v3482
    %vm3485 = vcmp.eq.f32.partialorder %v3213, 0.0
    %v3486 = vand.u32 %v3213, 2147483648
    %v3487 = vsel %vm3485, %v3486, %v3484
    %v3488 = vrsqrt.pop %v3214
    %v3489 = vmul.f32 %v3214, %v3488
    %vm3490 = vcmp.eq.f32.partialorder %v3214, inf
    %v3491 = vsel %vm3490, %v3214, %v3489
    %vm3492 = vcmp.eq.f32.partialorder %v3214, 0.0
    %v3493 = vand.u32 %v3214, 2147483648
    %v3494 = vsel %vm3492, %v3493, %v3491
    %v3495 = vrsqrt.pop %v3215
    %v3496 = vmul.f32 %v3215, %v3495
    %vm3497 = vcmp.eq.f32.partialorder %v3215, inf
    %v3498 = vsel %vm3497, %v3215, %v3496
    %vm3499 = vcmp.eq.f32.partialorder %v3215, 0.0
    %v3500 = vand.u32 %v3215, 2147483648
    %v3501 = vsel %vm3499, %v3500, %v3498
    %v3502 = vrsqrt.pop %v3216
    %v3503 = vmul.f32 %v3216, %v3502
    %vm3504 = vcmp.eq.f32.partialorder %v3216, inf
    %v3505 = vsel %vm3504, %v3216, %v3503
    %vm3506 = vcmp.eq.f32.partialorder %v3216, 0.0
    %v3507 = vand.u32 %v3216, 2147483648
    %v3508 = vsel %vm3506, %v3507, %v3505
    %v3509 = vrsqrt.pop %v3217
    %v3510 = vmul.f32 %v3217, %v3509
    %vm3511 = vcmp.eq.f32.partialorder %v3217, inf
    %v3512 = vsel %vm3511, %v3217, %v3510
    %vm3513 = vcmp.eq.f32.partialorder %v3217, 0.0
    %v3514 = vand.u32 %v3217, 2147483648
    %v3515 = vsel %vm3513, %v3514, %v3512
    %v3516 = vrsqrt.pop %v3218
    %v3517 = vmul.f32 %v3218, %v3516
    %vm3518 = vcmp.eq.f32.partialorder %v3218, inf
    %v3519 = vsel %vm3518, %v3218, %v3517
    %vm3520 = vcmp.eq.f32.partialorder %v3218, 0.0
    %v3521 = vand.u32 %v3218, 2147483648
    %v3522 = vsel %vm3520, %v3521, %v3519
    %v3523 = vrsqrt.pop %v3219
    %v3524 = vmul.f32 %v3219, %v3523
    %vm3525 = vcmp.eq.f32.partialorder %v3219, inf
    %v3526 = vsel %vm3525, %v3219, %v3524
    %vm3527 = vcmp.eq.f32.partialorder %v3219, 0.0
    %v3528 = vand.u32 %v3219, 2147483648
    %v3529 = vsel %vm3527, %v3528, %v3526
    %v3530 = vrsqrt.pop %v3220
    %v3531 = vmul.f32 %v3220, %v3530
    %vm3532 = vcmp.eq.f32.partialorder %v3220, inf
    %v3533 = vsel %vm3532, %v3220, %v3531
    %vm3534 = vcmp.eq.f32.partialorder %v3220, 0.0
    %v3535 = vand.u32 %v3220, 2147483648
    %v3536 = vsel %vm3534, %v3535, %v3533
    %v3537 = vrsqrt.pop %v3221
    %v3538 = vmul.f32 %v3221, %v3537
    %vm3539 = vcmp.eq.f32.partialorder %v3221, inf
    %v3540 = vsel %vm3539, %v3221, %v3538
    %vm3541 = vcmp.eq.f32.partialorder %v3221, 0.0
    %v3542 = vand.u32 %v3221, 2147483648
    %v3543 = vsel %vm3541, %v3542, %v3540
    %v3544 = vrsqrt.pop %v3222
    %v3545 = vmul.f32 %v3222, %v3544
    %vm3546 = vcmp.eq.f32.partialorder %v3222, inf
    %v3547 = vsel %vm3546, %v3222, %v3545
    %vm3548 = vcmp.eq.f32.partialorder %v3222, 0.0
    %v3549 = vand.u32 %v3222, 2147483648
    %v3550 = vsel %vm3548, %v3549, %v3547
    %v3551 = vrsqrt.pop %v3223
    %v3552 = vmul.f32 %v3223, %v3551
    %vm3553 = vcmp.eq.f32.partialorder %v3223, inf
    %v3554 = vsel %vm3553, %v3223, %v3552
    %vm3555 = vcmp.eq.f32.partialorder %v3223, 0.0
    %v3556 = vand.u32 %v3223, 2147483648
    %v3557 = vsel %vm3555, %v3556, %v3554
    %v3558 = vrsqrt.pop %v3224
    %v3559 = vmul.f32 %v3224, %v3558
    %vm3560 = vcmp.eq.f32.partialorder %v3224, inf
    %v3561 = vsel %vm3560, %v3224, %v3559
    %vm3562 = vcmp.eq.f32.partialorder %v3224, 0.0
    %v3563 = vand.u32 %v3224, 2147483648
    %v3564 = vsel %vm3562, %v3563, %v3561
    %v3565 = vrsqrt.pop %v3225
    %v3566 = vmul.f32 %v3225, %v3565
    %vm3567 = vcmp.eq.f32.partialorder %v3225, inf
    %v3568 = vsel %vm3567, %v3225, %v3566
    %vm3569 = vcmp.eq.f32.partialorder %v3225, 0.0
    %v3570 = vand.u32 %v3225, 2147483648
    %v3571 = vsel %vm3569, %v3570, %v3568
    %v3572 = vrsqrt.pop %v3226
    %v3573 = vmul.f32 %v3226, %v3572
    %vm3574 = vcmp.eq.f32.partialorder %v3226, inf
    %v3575 = vsel %vm3574, %v3226, %v3573
    %vm3576 = vcmp.eq.f32.partialorder %v3226, 0.0
    %v3577 = vand.u32 %v3226, 2147483648
    %v3578 = vsel %vm3576, %v3577, %v3575
    %v3579 = vrsqrt.pop %v3227
    %v3580 = vmul.f32 %v3227, %v3579
    %vm3581 = vcmp.eq.f32.partialorder %v3227, inf
    %v3582 = vsel %vm3581, %v3227, %v3580
    %vm3583 = vcmp.eq.f32.partialorder %v3227, 0.0
    %v3584 = vand.u32 %v3227, 2147483648
    %v3585 = vsel %vm3583, %v3584, %v3582
    %v3586 = vrsqrt.pop %v3228
    %v3587 = vmul.f32 %v3228, %v3586
    %vm3588 = vcmp.eq.f32.partialorder %v3228, inf
    %v3589 = vsel %vm3588, %v3228, %v3587
    %vm3590 = vcmp.eq.f32.partialorder %v3228, 0.0
    %v3591 = vand.u32 %v3228, 2147483648
    %v3592 = vsel %vm3590, %v3591, %v3589
    %v3593 = vrsqrt.pop %v3229
    %v3594 = vmul.f32 %v3229, %v3593
    %vm3595 = vcmp.eq.f32.partialorder %v3229, inf
    %v3596 = vsel %vm3595, %v3229, %v3594
    %vm3597 = vcmp.eq.f32.partialorder %v3229, 0.0
    %v3598 = vand.u32 %v3229, 2147483648
    %v3599 = vsel %vm3597, %v3598, %v3596
    %v3600 = vrsqrt.pop %v3230
    %v3601 = vmul.f32 %v3230, %v3600
    %vm3602 = vcmp.eq.f32.partialorder %v3230, inf
    %v3603 = vsel %vm3602, %v3230, %v3601
    %vm3604 = vcmp.eq.f32.partialorder %v3230, 0.0
    %v3605 = vand.u32 %v3230, 2147483648
    %v3606 = vsel %vm3604, %v3605, %v3603
    %v3607 = vrsqrt.pop %v3231
    %v3608 = vmul.f32 %v3231, %v3607
    %vm3609 = vcmp.eq.f32.partialorder %v3231, inf
    %v3610 = vsel %vm3609, %v3231, %v3608
    %vm3611 = vcmp.eq.f32.partialorder %v3231, 0.0
    %v3612 = vand.u32 %v3231, 2147483648
    %v3613 = vsel %vm3611, %v3612, %v3610
    %v3614 = vrsqrt.pop %v3232
    %v3615 = vmul.f32 %v3232, %v3614
    %vm3616 = vcmp.eq.f32.partialorder %v3232, inf
    %v3617 = vsel %vm3616, %v3232, %v3615
    %vm3618 = vcmp.eq.f32.partialorder %v3232, 0.0
    %v3619 = vand.u32 %v3232, 2147483648
    %v3620 = vsel %vm3618, %v3619, %v3617
    %v3621 = vrsqrt.pop %v3233
    %v3622 = vmul.f32 %v3233, %v3621
    %vm3623 = vcmp.eq.f32.partialorder %v3233, inf
    %v3624 = vsel %vm3623, %v3233, %v3622
    %vm3625 = vcmp.eq.f32.partialorder %v3233, 0.0
    %v3626 = vand.u32 %v3233, 2147483648
    %v3627 = vsel %vm3625, %v3626, %v3624
    %v3628 = vrsqrt.pop %v3234
    %v3629 = vmul.f32 %v3234, %v3628
    %vm3630 = vcmp.eq.f32.partialorder %v3234, inf
    %v3631 = vsel %vm3630, %v3234, %v3629
    %vm3632 = vcmp.eq.f32.partialorder %v3234, 0.0
    %v3633 = vand.u32 %v3234, 2147483648
    %v3634 = vsel %vm3632, %v3633, %v3631
    %v3635 = vrsqrt.pop %v3235
    %v3636 = vmul.f32 %v3235, %v3635
    %vm3637 = vcmp.eq.f32.partialorder %v3235, inf
    %v3638 = vsel %vm3637, %v3235, %v3636
    %vm3639 = vcmp.eq.f32.partialorder %v3235, 0.0
    %v3640 = vand.u32 %v3235, 2147483648
    %v3641 = vsel %vm3639, %v3640, %v3638
    %v3642 = vrsqrt.pop %v3236
    %v3643 = vmul.f32 %v3236, %v3642
    %vm3644 = vcmp.eq.f32.partialorder %v3236, inf
    %v3645 = vsel %vm3644, %v3236, %v3643
    %vm3646 = vcmp.eq.f32.partialorder %v3236, 0.0
    %v3647 = vand.u32 %v3236, 2147483648
    %v3648 = vsel %vm3646, %v3647, %v3645
    %v3649 = vrsqrt.pop %v3237
    %v3650 = vmul.f32 %v3237, %v3649
    %vm3651 = vcmp.eq.f32.partialorder %v3237, inf
    %v3652 = vsel %vm3651, %v3237, %v3650
    %vm3653 = vcmp.eq.f32.partialorder %v3237, 0.0
    %v3654 = vand.u32 %v3237, 2147483648
    %v3655 = vsel %vm3653, %v3654, %v3652
    %v3656 = vrsqrt.pop %v3238
    %v3657 = vmul.f32 %v3238, %v3656
    %vm3658 = vcmp.eq.f32.partialorder %v3238, inf
    %v3659 = vsel %vm3658, %v3238, %v3657
    %vm3660 = vcmp.eq.f32.partialorder %v3238, 0.0
    %v3661 = vand.u32 %v3238, 2147483648
    %v3662 = vsel %vm3660, %v3661, %v3659
    %v3663 = vrsqrt.pop %v3239
    %v3664 = vmul.f32 %v3239, %v3663
    %vm3665 = vcmp.eq.f32.partialorder %v3239, inf
    %v3666 = vsel %vm3665, %v3239, %v3664
    %vm3667 = vcmp.eq.f32.partialorder %v3239, 0.0
    %v3668 = vand.u32 %v3239, 2147483648
    %v3669 = vsel %vm3667, %v3668, %v3666
    %v3670 = vrsqrt.pop %v3240
    %v3671 = vmul.f32 %v3240, %v3670
    %vm3672 = vcmp.eq.f32.partialorder %v3240, inf
    %v3673 = vsel %vm3672, %v3240, %v3671
    %vm3674 = vcmp.eq.f32.partialorder %v3240, 0.0
    %v3675 = vand.u32 %v3240, 2147483648
    %v3676 = vsel %vm3674, %v3675, %v3673
    %v3677 = vrsqrt.pop %v3241
    %v3678 = vmul.f32 %v3241, %v3677
    %vm3679 = vcmp.eq.f32.partialorder %v3241, inf
    %v3680 = vsel %vm3679, %v3241, %v3678
    %vm3681 = vcmp.eq.f32.partialorder %v3241, 0.0
    %v3682 = vand.u32 %v3241, 2147483648
    %v3683 = vsel %vm3681, %v3682, %v3680
    %v3684 = vrsqrt.pop %v3242
    %v3685 = vmul.f32 %v3242, %v3684
    %vm3686 = vcmp.eq.f32.partialorder %v3242, inf
    %v3687 = vsel %vm3686, %v3242, %v3685
    %vm3688 = vcmp.eq.f32.partialorder %v3242, 0.0
    %v3689 = vand.u32 %v3242, 2147483648
    %v3690 = vsel %vm3688, %v3689, %v3687
    %v3691 = vadd.f32 %v3249, 1.0
    %v3692 = vadd.f32 %v3256, 1.0
    %v3693 = vadd.f32 %v3263, 1.0
    %v3694 = vadd.f32 %v3270, 1.0
    %v3695 = vadd.f32 %v3277, 1.0
    %v3696 = vadd.f32 %v3284, 1.0
    %v3697 = vadd.f32 %v3291, 1.0
    %v3698 = vadd.f32 %v3298, 1.0
    %v3699 = vadd.f32 %v3305, 1.0
    %v3700 = vadd.f32 %v3312, 1.0
    %v3701 = vadd.f32 %v3319, 1.0
    %v3702 = vadd.f32 %v3326, 1.0
    %v3703 = vadd.f32 %v3333, 1.0
    %v3704 = vadd.f32 %v3340, 1.0
    %v3705 = vadd.f32 %v3347, 1.0
    %v3706 = vadd.f32 %v3354, 1.0
    %v3707 = vadd.f32 %v3361, 1.0
    %v3708 = vadd.f32 %v3368, 1.0
    %v3709 = vadd.f32 %v3375, 1.0
    %v3710 = vadd.f32 %v3382, 1.0
    %v3711 = vadd.f32 %v3389, 1.0
    %v3712 = vadd.f32 %v3396, 1.0
    %v3713 = vadd.f32 %v3403, 1.0
    %v3714 = vadd.f32 %v3410, 1.0
    %v3715 = vadd.f32 %v3417, 1.0
    %v3716 = vadd.f32 %v3424, 1.0
    %v3717 = vadd.f32 %v3431, 1.0
    %v3718 = vadd.f32 %v3438, 1.0
    %v3719 = vadd.f32 %v3445, 1.0
    %v3720 = vadd.f32 %v3452, 1.0
    %v3721 = vadd.f32 %v3459, 1.0
    %v3722 = vadd.f32 %v3466, 1.0
    %v3723 = vadd.f32 %v3473, 1.0
    %v3724 = vadd.f32 %v3480, 1.0
    %v3725 = vadd.f32 %v3487, 1.0
    %v3726 = vadd.f32 %v3494, 1.0
    %v3727 = vadd.f32 %v3501, 1.0
    %v3728 = vadd.f32 %v3508, 1.0
    %v3729 = vadd.f32 %v3515, 1.0
    %v3730 = vadd.f32 %v3522, 1.0
    %v3731 = vadd.f32 %v3529, 1.0
    %v3732 = vadd.f32 %v3536, 1.0
    %v3733 = vadd.f32 %v3543, 1.0
    %v3734 = vadd.f32 %v3550, 1.0
    %v3735 = vadd.f32 %v3557, 1.0
    %v3736 = vadd.f32 %v3564, 1.0
    %v3737 = vadd.f32 %v3571, 1.0
    %v3738 = vadd.f32 %v3578, 1.0
    %v3739 = vadd.f32 %v3585, 1.0
    %v3740 = vadd.f32 %v3592, 1.0
    %v3741 = vadd.f32 %v3599, 1.0
    %v3742 = vadd.f32 %v3606, 1.0
    %v3743 = vadd.f32 %v3613, 1.0
    %v3744 = vadd.f32 %v3620, 1.0
    %v3745 = vadd.f32 %v3627, 1.0
    %v3746 = vadd.f32 %v3634, 1.0
    %v3747 = vadd.f32 %v3641, 1.0
    %v3748 = vadd.f32 %v3648, 1.0
    %v3749 = vadd.f32 %v3655, 1.0
    %v3750 = vadd.f32 %v3662, 1.0
    %v3751 = vadd.f32 %v3669, 1.0
    %v3752 = vadd.f32 %v3676, 1.0
    %v3753 = vadd.f32 %v3683, 1.0
    %v3754 = vadd.f32 %v3690, 1.0
    %v3755 = vmul.f32 %v3249, %v3249
    %v3756 = vmul.f32 %v3256, %v3256
    %v3757 = vmul.f32 %v3263, %v3263
    %v3758 = vmul.f32 %v3270, %v3270
    %v3759 = vmul.f32 %v3277, %v3277
    %v3760 = vmul.f32 %v3284, %v3284
    %v3761 = vmul.f32 %v3291, %v3291
    %v3762 = vmul.f32 %v3298, %v3298
    %v3763 = vmul.f32 %v3305, %v3305
    %v3764 = vmul.f32 %v3312, %v3312
    %v3765 = vmul.f32 %v3319, %v3319
    %v3766 = vmul.f32 %v3326, %v3326
    %v3767 = vmul.f32 %v3333, %v3333
    %v3768 = vmul.f32 %v3340, %v3340
    %v3769 = vmul.f32 %v3347, %v3347
    %v3770 = vmul.f32 %v3354, %v3354
    %v3771 = vmul.f32 %v3361, %v3361
    %v3772 = vmul.f32 %v3368, %v3368
    %v3773 = vmul.f32 %v3375, %v3375
    %v3774 = vmul.f32 %v3382, %v3382
    %v3775 = vmul.f32 %v3389, %v3389
    %v3776 = vmul.f32 %v3396, %v3396
    %v3777 = vmul.f32 %v3403, %v3403
    %v3778 = vmul.f32 %v3410, %v3410
    %v3779 = vmul.f32 %v3417, %v3417
    %v3780 = vmul.f32 %v3424, %v3424
    %v3781 = vmul.f32 %v3431, %v3431
    %v3782 = vmul.f32 %v3438, %v3438
    %v3783 = vmul.f32 %v3445, %v3445
    %v3784 = vmul.f32 %v3452, %v3452
    %v3785 = vmul.f32 %v3459, %v3459
    %v3786 = vmul.f32 %v3466, %v3466
    %v3787 = vmul.f32 %v3473, %v3473
    %v3788 = vmul.f32 %v3480, %v3480
    %v3789 = vmul.f32 %v3487, %v3487
    %v3790 = vmul.f32 %v3494, %v3494
    %v3791 = vmul.f32 %v3501, %v3501
    %v3792 = vmul.f32 %v3508, %v3508
    %v3793 = vmul.f32 %v3515, %v3515
    %v3794 = vmul.f32 %v3522, %v3522
    %v3795 = vmul.f32 %v3529, %v3529
    %v3796 = vmul.f32 %v3536, %v3536
    %v3797 = vmul.f32 %v3543, %v3543
    %v3798 = vmul.f32 %v3550, %v3550
    %v3799 = vmul.f32 %v3557, %v3557
    %v3800 = vmul.f32 %v3564, %v3564
    %v3801 = vmul.f32 %v3571, %v3571
    %v3802 = vmul.f32 %v3578, %v3578
    %v3803 = vmul.f32 %v3585, %v3585
    %v3804 = vmul.f32 %v3592, %v3592
    %v3805 = vmul.f32 %v3599, %v3599
    %v3806 = vmul.f32 %v3606, %v3606
    %v3807 = vmul.f32 %v3613, %v3613
    %v3808 = vmul.f32 %v3620, %v3620
    %v3809 = vmul.f32 %v3627, %v3627
    %v3810 = vmul.f32 %v3634, %v3634
    %v3811 = vmul.f32 %v3641, %v3641
    %v3812 = vmul.f32 %v3648, %v3648
    %v3813 = vmul.f32 %v3655, %v3655
    %v3814 = vmul.f32 %v3662, %v3662
    %v3815 = vmul.f32 %v3669, %v3669
    %v3816 = vmul.f32 %v3676, %v3676
    %v3817 = vmul.f32 %v3683, %v3683
    %v3818 = vmul.f32 %v3690, %v3690
    %v3819 = vmul.f32 %v3755, 0.33333334
    %v3820 = vmul.f32 %v3756, 0.33333334
    %v3821 = vmul.f32 %v3757, 0.33333334
    %v3822 = vmul.f32 %v3758, 0.33333334
    %v3823 = vmul.f32 %v3759, 0.33333334
    %v3824 = vmul.f32 %v3760, 0.33333334
    %v3825 = vmul.f32 %v3761, 0.33333334
    %v3826 = vmul.f32 %v3762, 0.33333334
    %v3827 = vmul.f32 %v3763, 0.33333334
    %v3828 = vmul.f32 %v3764, 0.33333334
    %v3829 = vmul.f32 %v3765, 0.33333334
    %v3830 = vmul.f32 %v3766, 0.33333334
    %v3831 = vmul.f32 %v3767, 0.33333334
    %v3832 = vmul.f32 %v3768, 0.33333334
    %v3833 = vmul.f32 %v3769, 0.33333334
    %v3834 = vmul.f32 %v3770, 0.33333334
    %v3835 = vmul.f32 %v3771, 0.33333334
    %v3836 = vmul.f32 %v3772, 0.33333334
    %v3837 = vmul.f32 %v3773, 0.33333334
    %v3838 = vmul.f32 %v3774, 0.33333334
    %v3839 = vmul.f32 %v3775, 0.33333334
    %v3840 = vmul.f32 %v3776, 0.33333334
    %v3841 = vmul.f32 %v3777, 0.33333334
    %v3842 = vmul.f32 %v3778, 0.33333334
    %v3843 = vmul.f32 %v3779, 0.33333334
    %v3844 = vmul.f32 %v3780, 0.33333334
    %v3845 = vmul.f32 %v3781, 0.33333334
    %v3846 = vmul.f32 %v3782, 0.33333334
    %v3847 = vmul.f32 %v3783, 0.33333334
    %v3848 = vmul.f32 %v3784, 0.33333334
    %v3849 = vmul.f32 %v3785, 0.33333334
    %v3850 = vmul.f32 %v3786, 0.33333334
    %v3851 = vmul.f32 %v3787, 0.33333334
    %v3852 = vmul.f32 %v3788, 0.33333334
    %v3853 = vmul.f32 %v3789, 0.33333334
    %v3854 = vmul.f32 %v3790, 0.33333334
    %v3855 = vmul.f32 %v3791, 0.33333334
    %v3856 = vmul.f32 %v3792, 0.33333334
    %v3857 = vmul.f32 %v3793, 0.33333334
    %v3858 = vmul.f32 %v3794, 0.33333334
    %v3859 = vmul.f32 %v3795, 0.33333334
    %v3860 = vmul.f32 %v3796, 0.33333334
    %v3861 = vmul.f32 %v3797, 0.33333334
    %v3862 = vmul.f32 %v3798, 0.33333334
    %v3863 = vmul.f32 %v3799, 0.33333334
    %v3864 = vmul.f32 %v3800, 0.33333334
    %v3865 = vmul.f32 %v3801, 0.33333334
    %v3866 = vmul.f32 %v3802, 0.33333334
    %v3867 = vmul.f32 %v3803, 0.33333334
    %v3868 = vmul.f32 %v3804, 0.33333334
    %v3869 = vmul.f32 %v3805, 0.33333334
    %v3870 = vmul.f32 %v3806, 0.33333334
    %v3871 = vmul.f32 %v3807, 0.33333334
    %v3872 = vmul.f32 %v3808, 0.33333334
    %v3873 = vmul.f32 %v3809, 0.33333334
    %v3874 = vmul.f32 %v3810, 0.33333334
    %v3875 = vmul.f32 %v3811, 0.33333334
    %v3876 = vmul.f32 %v3812, 0.33333334
    %v3877 = vmul.f32 %v3813, 0.33333334
    %v3878 = vmul.f32 %v3814, 0.33333334
    %v3879 = vmul.f32 %v3815, 0.33333334
    %v3880 = vmul.f32 %v3816, 0.33333334
    %v3881 = vmul.f32 %v3817, 0.33333334
    %v3882 = vmul.f32 %v3818, 0.33333334
    %v3883 = vadd.f32 %v3691, %v3819
    %v3884 = vadd.f32 %v3692, %v3820
    %v3885 = vadd.f32 %v3693, %v3821
    %v3886 = vadd.f32 %v3694, %v3822
    %v3887 = vadd.f32 %v3695, %v3823
    %v3888 = vadd.f32 %v3696, %v3824
    %v3889 = vadd.f32 %v3697, %v3825
    %v3890 = vadd.f32 %v3698, %v3826
    %v3891 = vadd.f32 %v3699, %v3827
    %v3892 = vadd.f32 %v3700, %v3828
    %v3893 = vadd.f32 %v3701, %v3829
    %v3894 = vadd.f32 %v3702, %v3830
    %v3895 = vadd.f32 %v3703, %v3831
    %v3896 = vadd.f32 %v3704, %v3832
    %v3897 = vadd.f32 %v3705, %v3833
    %v3898 = vadd.f32 %v3706, %v3834
    %v3899 = vadd.f32 %v3707, %v3835
    %v3900 = vadd.f32 %v3708, %v3836
    %v3901 = vadd.f32 %v3709, %v3837
    %v3902 = vadd.f32 %v3710, %v3838
    %v3903 = vadd.f32 %v3711, %v3839
    %v3904 = vadd.f32 %v3712, %v3840
    %v3905 = vadd.f32 %v3713, %v3841
    %v3906 = vadd.f32 %v3714, %v3842
    %v3907 = vadd.f32 %v3715, %v3843
    %v3908 = vadd.f32 %v3716, %v3844
    %v3909 = vadd.f32 %v3717, %v3845
    %v3910 = vadd.f32 %v3718, %v3846
    %v3911 = vadd.f32 %v3719, %v3847
    %v3912 = vadd.f32 %v3720, %v3848
    %v3913 = vadd.f32 %v3721, %v3849
    %v3914 = vadd.f32 %v3722, %v3850
    %v3915 = vadd.f32 %v3723, %v3851
    %v3916 = vadd.f32 %v3724, %v3852
    %v3917 = vadd.f32 %v3725, %v3853
    %v3918 = vadd.f32 %v3726, %v3854
    %v3919 = vadd.f32 %v3727, %v3855
    %v3920 = vadd.f32 %v3728, %v3856
    %v3921 = vadd.f32 %v3729, %v3857
    %v3922 = vadd.f32 %v3730, %v3858
    %v3923 = vadd.f32 %v3731, %v3859
    %v3924 = vadd.f32 %v3732, %v3860
    %v3925 = vadd.f32 %v3733, %v3861
    %v3926 = vadd.f32 %v3734, %v3862
    %v3927 = vadd.f32 %v3735, %v3863
    %v3928 = vadd.f32 %v3736, %v3864
    %v3929 = vadd.f32 %v3737, %v3865
    %v3930 = vadd.f32 %v3738, %v3866
    %v3931 = vadd.f32 %v3739, %v3867
    %v3932 = vadd.f32 %v3740, %v3868
    %v3933 = vadd.f32 %v3741, %v3869
    %v3934 = vadd.f32 %v3742, %v3870
    %v3935 = vadd.f32 %v3743, %v3871
    %v3936 = vadd.f32 %v3744, %v3872
    %v3937 = vadd.f32 %v3745, %v3873
    %v3938 = vadd.f32 %v3746, %v3874
    %v3939 = vadd.f32 %v3747, %v3875
    %v3940 = vadd.f32 %v3748, %v3876
    %v3941 = vadd.f32 %v3749, %v3877
    %v3942 = vadd.f32 %v3750, %v3878
    %v3943 = vadd.f32 %v3751, %v3879
    %v3944 = vadd.f32 %v3752, %v3880
    %v3945 = vadd.f32 %v3753, %v3881
    %v3946 = vadd.f32 %v3754, %v3882
    %v3947 = vsub.f32 0.0, %v3249
    %v3948 = vsub.f32 0.0, %v3256
    %v3949 = vsub.f32 0.0, %v3263
    %v3950 = vsub.f32 0.0, %v3270
    %v3951 = vsub.f32 0.0, %v3277
    %v3952 = vsub.f32 0.0, %v3284
    %v3953 = vsub.f32 0.0, %v3291
    %v3954 = vsub.f32 0.0, %v3298
    %v3955 = vsub.f32 0.0, %v3305
    %v3956 = vsub.f32 0.0, %v3312
    %v3957 = vsub.f32 0.0, %v3319
    %v3958 = vsub.f32 0.0, %v3326
    %v3959 = vsub.f32 0.0, %v3333
    %v3960 = vsub.f32 0.0, %v3340
    %v3961 = vsub.f32 0.0, %v3347
    %v3962 = vsub.f32 0.0, %v3354
    %v3963 = vsub.f32 0.0, %v3361
    %v3964 = vsub.f32 0.0, %v3368
    %v3965 = vsub.f32 0.0, %v3375
    %v3966 = vsub.f32 0.0, %v3382
    %v3967 = vsub.f32 0.0, %v3389
    %v3968 = vsub.f32 0.0, %v3396
    %v3969 = vsub.f32 0.0, %v3403
    %v3970 = vsub.f32 0.0, %v3410
    %v3971 = vsub.f32 0.0, %v3417
    %v3972 = vsub.f32 0.0, %v3424
    %v3973 = vsub.f32 0.0, %v3431
    %v3974 = vsub.f32 0.0, %v3438
    %v3975 = vsub.f32 0.0, %v3445
    %v3976 = vsub.f32 0.0, %v3452
    %v3977 = vsub.f32 0.0, %v3459
    %v3978 = vsub.f32 0.0, %v3466
    %v3979 = vsub.f32 0.0, %v3473
    %v3980 = vsub.f32 0.0, %v3480
    %v3981 = vsub.f32 0.0, %v3487
    %v3982 = vsub.f32 0.0, %v3494
    %v3983 = vsub.f32 0.0, %v3501
    %v3984 = vsub.f32 0.0, %v3508
    %v3985 = vsub.f32 0.0, %v3515
    %v3986 = vsub.f32 0.0, %v3522
    %v3987 = vsub.f32 0.0, %v3529
    %v3988 = vsub.f32 0.0, %v3536
    %v3989 = vsub.f32 0.0, %v3543
    %v3990 = vsub.f32 0.0, %v3550
    %v3991 = vsub.f32 0.0, %v3557
    %v3992 = vsub.f32 0.0, %v3564
    %v3993 = vsub.f32 0.0, %v3571
    %v3994 = vsub.f32 0.0, %v3578
    %v3995 = vsub.f32 0.0, %v3585
    %v3996 = vsub.f32 0.0, %v3592
    %v3997 = vsub.f32 0.0, %v3599
    %v3998 = vsub.f32 0.0, %v3606
    %v3999 = vsub.f32 0.0, %v3613
    %v4000 = vsub.f32 0.0, %v3620
    %v4001 = vsub.f32 0.0, %v3627
    %v4002 = vsub.f32 0.0, %v3634
    %v4003 = vsub.f32 0.0, %v3641
    %v4004 = vsub.f32 0.0, %v3648
    %v4005 = vsub.f32 0.0, %v3655
    %v4006 = vsub.f32 0.0, %v3662
    %v4007 = vsub.f32 0.0, %v3669
    %v4008 = vsub.f32 0.0, %v3676
    %v4009 = vsub.f32 0.0, %v3683
    %v4010 = vsub.f32 0.0, %v3690
    %v4011 = vmul.f32 %v3947, 1.442695
    %v4012 = vpow.pop %v4011
    %v4013 = vmul.f32 %v3948, 1.442695
    %v4014 = vpow.pop %v4013
    %v4015 = vmul.f32 %v3949, 1.442695
    %v4016 = vpow.pop %v4015
    %v4017 = vmul.f32 %v3950, 1.442695
    %v4018 = vpow.pop %v4017
    %v4019 = vmul.f32 %v3951, 1.442695
    %v4020 = vpow.pop %v4019
    %v4021 = vmul.f32 %v3952, 1.442695
    %v4022 = vpow.pop %v4021
    %v4023 = vmul.f32 %v3953, 1.442695
    %v4024 = vpow.pop %v4023
    %v4025 = vmul.f32 %v3954, 1.442695
    %v4026 = vpow.pop %v4025
    %v4027 = vmul.f32 %v3955, 1.442695
    %v4028 = vpow.pop %v4027
    %v4029 = vmul.f32 %v3956, 1.442695
    %v4030 = vpow.pop %v4029
    %v4031 = vmul.f32 %v3957, 1.442695
    %v4032 = vpow.pop %v4031
    %v4033 = vmul.f32 %v3958, 1.442695
    %v4034 = vpow.pop %v4033
    %v4035 = vmul.f32 %v3959, 1.442695
    %v4036 = vpow.pop %v4035
    %v4037 = vmul.f32 %v3960, 1.442695
    %v4038 = vpow.pop %v4037
    %v4039 = vmul.f32 %v3961, 1.442695
    %v4040 = vpow.pop %v4039
    %v4041 = vmul.f32 %v3962, 1.442695
    %v4042 = vpow.pop %v4041
    %v4043 = vmul.f32 %v3963, 1.442695
    %v4044 = vpow.pop %v4043
    %v4045 = vmul.f32 %v3964, 1.442695
    %v4046 = vpow.pop %v4045
    %v4047 = vmul.f32 %v3965, 1.442695
    %v4048 = vpow.pop %v4047
    %v4049 = vmul.f32 %v3966, 1.442695
    %v4050 = vpow.pop %v4049
    %v4051 = vmul.f32 %v3967, 1.442695
    %v4052 = vpow.pop %v4051
    %v4053 = vmul.f32 %v3968, 1.442695
    %v4054 = vpow.pop %v4053
    %v4055 = vmul.f32 %v3969, 1.442695
    %v4056 = vpow.pop %v4055
    %v4057 = vmul.f32 %v3970, 1.442695
    %v4058 = vpow.pop %v4057
    %v4059 = vmul.f32 %v3971, 1.442695
    %v4060 = vpow.pop %v4059
    %v4061 = vmul.f32 %v3972, 1.442695
    %v4062 = vpow.pop %v4061
    %v4063 = vmul.f32 %v3973, 1.442695
    %v4064 = vpow.pop %v4063
    %v4065 = vmul.f32 %v3974, 1.442695
    %v4066 = vpow.pop %v4065
    %v4067 = vmul.f32 %v3975, 1.442695
    %v4068 = vpow.pop %v4067
    %v4069 = vmul.f32 %v3976, 1.442695
    %v4070 = vpow.pop %v4069
    %v4071 = vmul.f32 %v3977, 1.442695
    %v4072 = vpow.pop %v4071
    %v4073 = vmul.f32 %v3978, 1.442695
    %v4074 = vpow.pop %v4073
    %v4075 = vmul.f32 %v3979, 1.442695
    %v4076 = vpow.pop %v4075
    %v4077 = vmul.f32 %v3980, 1.442695
    %v4078 = vpow.pop %v4077
    %v4079 = vmul.f32 %v3981, 1.442695
    %v4080 = vpow.pop %v4079
    %v4081 = vmul.f32 %v3982, 1.442695
    %v4082 = vpow.pop %v4081
    %v4083 = vmul.f32 %v3983, 1.442695
    %v4084 = vpow.pop %v4083
    %v4085 = vmul.f32 %v3984, 1.442695
    %v4086 = vpow.pop %v4085
    %v4087 = vmul.f32 %v3985, 1.442695
    %v4088 = vpow.pop %v4087
    %v4089 = vmul.f32 %v3986, 1.442695
    %v4090 = vpow.pop %v4089
    %v4091 = vmul.f32 %v3987, 1.442695
    %v4092 = vpow.pop %v4091
    %v4093 = vmul.f32 %v3988, 1.442695
    %v4094 = vpow.pop %v4093
    %v4095 = vmul.f32 %v3989, 1.442695
    %v4096 = vpow.pop %v4095
    %v4097 = vmul.f32 %v3990, 1.442695
    %v4098 = vpow.pop %v4097
    %v4099 = vmul.f32 %v3991, 1.442695
    %v4100 = vpow.pop %v4099
    %v4101 = vmul.f32 %v3992, 1.442695
    %v4102 = vpow.pop %v4101
    %v4103 = vmul.f32 %v3993, 1.442695
    %v4104 = vpow.pop %v4103
    %v4105 = vmul.f32 %v3994, 1.442695
    %v4106 = vpow.pop %v4105
    %v4107 = vmul.f32 %v3995, 1.442695
    %v4108 = vpow.pop %v4107
    %v4109 = vmul.f32 %v3996, 1.442695
    %v4110 = vpow.pop %v4109
    %v4111 = vmul.f32 %v3997, 1.442695
    %v4112 = vpow.pop %v4111
    %v4113 = vmul.f32 %v3998, 1.442695
    %v4114 = vpow.pop %v4113
    %v4115 = vmul.f32 %v3999, 1.442695
    %v4116 = vpow.pop %v4115
    %v4117 = vmul.f32 %v4000, 1.442695
    %v4118 = vpow.pop %v4117
    %v4119 = vmul.f32 %v4001, 1.442695
    %v4120 = vpow.pop %v4119
    %v4121 = vmul.f32 %v4002, 1.442695
    %v4122 = vpow.pop %v4121
    %v4123 = vmul.f32 %v4003, 1.442695
    %v4124 = vpow.pop %v4123
    %v4125 = vmul.f32 %v4004, 1.442695
    %v4126 = vpow.pop %v4125
    %v4127 = vmul.f32 %v4005, 1.442695
    %v4128 = vpow.pop %v4127
    %v4129 = vmul.f32 %v4006, 1.442695
    %v4130 = vpow.pop %v4129
    %v4131 = vmul.f32 %v4007, 1.442695
    %v4132 = vpow.pop %v4131
    %v4133 = vmul.f32 %v4008, 1.442695
    %v4134 = vpow.pop %v4133
    %v4135 = vmul.f32 %v4009, 1.442695
    %v4136 = vpow.pop %v4135
    %v4137 = vmul.f32 %v4010, 1.442695
    %v4138 = vpow.pop %v4137
    %v4139 = vmul.f32 %v3883, %v4012
    %v4140 = vmul.f32 %v3884, %v4014
    %v4141 = vmul.f32 %v3885, %v4016
    %v4142 = vmul.f32 %v3886, %v4018
    %v4143 = vmul.f32 %v3887, %v4020
    %v4144 = vmul.f32 %v3888, %v4022
    %v4145 = vmul.f32 %v3889, %v4024
    %v4146 = vmul.f32 %v3890, %v4026
    %v4147 = vmul.f32 %v3891, %v4028
    %v4148 = vmul.f32 %v3892, %v4030
    %v4149 = vmul.f32 %v3893, %v4032
    %v4150 = vmul.f32 %v3894, %v4034
    %v4151 = vmul.f32 %v3895, %v4036
    %v4152 = vmul.f32 %v3896, %v4038
    %v4153 = vmul.f32 %v3897, %v4040
    %v4154 = vmul.f32 %v3898, %v4042
    %v4155 = vmul.f32 %v3899, %v4044
    %v4156 = vmul.f32 %v3900, %v4046
    %v4157 = vmul.f32 %v3901, %v4048
    %v4158 = vmul.f32 %v3902, %v4050
    %v4159 = vmul.f32 %v3903, %v4052
    %v4160 = vmul.f32 %v3904, %v4054
    %v4161 = vmul.f32 %v3905, %v4056
    %v4162 = vmul.f32 %v3906, %v4058
    %v4163 = vmul.f32 %v3907, %v4060
    %v4164 = vmul.f32 %v3908, %v4062
    %v4165 = vmul.f32 %v3909, %v4064
    %v4166 = vmul.f32 %v3910, %v4066
    %v4167 = vmul.f32 %v3911, %v4068
    %v4168 = vmul.f32 %v3912, %v4070
    %v4169 = vmul.f32 %v3913, %v4072
    %v4170 = vmul.f32 %v3914, %v4074
    %v4171 = vmul.f32 %v3915, %v4076
    %v4172 = vmul.f32 %v3916, %v4078
    %v4173 = vmul.f32 %v3917, %v4080
    %v4174 = vmul.f32 %v3918, %v4082
    %v4175 = vmul.f32 %v3919, %v4084
    %v4176 = vmul.f32 %v3920, %v4086
    %v4177 = vmul.f32 %v3921, %v4088
    %v4178 = vmul.f32 %v3922, %v4090
    %v4179 = vmul.f32 %v3923, %v4092
    %v4180 = vmul.f32 %v3924, %v4094
    %v4181 = vmul.f32 %v3925, %v4096
    %v4182 = vmul.f32 %v3926, %v4098
    %v4183 = vmul.f32 %v3927, %v4100
    %v4184 = vmul.f32 %v3928, %v4102
    %v4185 = vmul.f32 %v3929, %v4104
    %v4186 = vmul.f32 %v3930, %v4106
    %v4187 = vmul.f32 %v3931, %v4108
    %v4188 = vmul.f32 %v3932, %v4110
    %v4189 = vmul.f32 %v3933, %v4112
    %v4190 = vmul.f32 %v3934, %v4114
    %v4191 = vmul.f32 %v3935, %v4116
    %v4192 = vmul.f32 %v3936, %v4118
    %v4193 = vmul.f32 %v3937, %v4120
    %v4194 = vmul.f32 %v3938, %v4122
    %v4195 = vmul.f32 %v3939, %v4124
    %v4196 = vmul.f32 %v3940, %v4126
    %v4197 = vmul.f32 %v3941, %v4128
    %v4198 = vmul.f32 %v3942, %v4130
    %v4199 = vmul.f32 %v3943, %v4132
    %v4200 = vmul.f32 %v3944, %v4134
    %v4201 = vmul.f32 %v3945, %v4136
    %v4202 = vmul.f32 %v3946, %v4138
    %4203 = vst [vmem:[#allocation3] sm:$0xff] %v4139
    %4204 = vst [vmem:[#allocation3 + $0x8] sm:$0xff] %v4140
    %4205 = vst [vmem:[#allocation3 + $0x10] sm:$0xff] %v4141
    %4206 = vst [vmem:[#allocation3 + $0x18] sm:$0xff] %v4142
    %4207 = vst [vmem:[#allocation3 + $0x20] sm:$0xff] %v4143
    %4208 = vst [vmem:[#allocation3 + $0x28] sm:$0xff] %v4144
    %4209 = vst [vmem:[#allocation3 + $0x30] sm:$0xff] %v4145
    %4210 = vst [vmem:[#allocation3 + $0x38] sm:$0xff] %v4146
    %4211 = vst [vmem:[#allocation3 + $0x40] sm:$0xff] %v4147
    %4212 = vst [vmem:[#allocation3 + $0x48] sm:$0xff] %v4148
    %4213 = vst [vmem:[#allocation3 + $0x50] sm:$0xff] %v4149
    %4214 = vst [vmem:[#allocation3 + $0x58] sm:$0xff] %v4150
    %4215 = vst [vmem:[#allocation3 + $0x60] sm:$0xff] %v4151
    %4216 = vst [vmem:[#allocation3 + $0x68] sm:$0xff] %v4152
    %4217 = vst [vmem:[#allocation3 + $0x70] sm:$0xff] %v4153
    %4218 = vst [vmem:[#allocation3 + $0x78] sm:$0xff] %v4154
    %4219 = vst [vmem:[#allocation3 + $0x80] sm:$0xff] %v4155
    %4220 = vst [vmem:[#allocation3 + $0x88] sm:$0xff] %v4156
    %4221 = vst [vmem:[#allocation3 + $0x90] sm:$0xff] %v4157
    %4222 = vst [vmem:[#allocation3 + $0x98] sm:$0xff] %v4158
    %4223 = vst [vmem:[#allocation3 + $0xa0] sm:$0xff] %v4159
    %4224 = vst [vmem:[#allocation3 + $0xa8] sm:$0xff] %v4160
    %4225 = vst [vmem:[#allocation3 + $0xb0] sm:$0xff] %v4161
    %4226 = vst [vmem:[#allocation3 + $0xb8] sm:$0xff] %v4162
    %4227 = vst [vmem:[#allocation3 + $0xc0] sm:$0xff] %v4163
    %4228 = vst [vmem:[#allocation3 + $0xc8] sm:$0xff] %v4164
    %4229 = vst [vmem:[#allocation3 + $0xd0] sm:$0xff] %v4165
    %4230 = vst [vmem:[#allocation3 + $0xd8] sm:$0xff] %v4166
    %4231 = vst [vmem:[#allocation3 + $0xe0] sm:$0xff] %v4167
    %4232 = vst [vmem:[#allocation3 + $0xe8] sm:$0xff] %v4168
    %4233 = vst [vmem:[#allocation3 + $0xf0] sm:$0xff] %v4169
    %4234 = vst [vmem:[#allocation3 + $0xf8] sm:$0xff] %v4170
    %4235 = vst [vmem:[#allocation3 + $0x100] sm:$0xff] %v4171
    %4236 = vst [vmem:[#allocation3 + $0x108] sm:$0xff] %v4172
    %4237 = vst [vmem:[#allocation3 + $0x110] sm:$0xff] %v4173
    %4238 = vst [vmem:[#allocation3 + $0x118] sm:$0xff] %v4174
    %4239 = vst [vmem:[#allocation3 + $0x120] sm:$0xff] %v4175
    %4240 = vst [vmem:[#allocation3 + $0x128] sm:$0xff] %v4176
    %4241 = vst [vmem:[#allocation3 + $0x130] sm:$0xff] %v4177
    %4242 = vst [vmem:[#allocation3 + $0x138] sm:$0xff] %v4178
    %4243 = vst [vmem:[#allocation3 + $0x140] sm:$0xff] %v4179
    %4244 = vst [vmem:[#allocation3 + $0x148] sm:$0xff] %v4180
    %4245 = vst [vmem:[#allocation3 + $0x150] sm:$0xff] %v4181
    %4246 = vst [vmem:[#allocation3 + $0x158] sm:$0xff] %v4182
    %4247 = vst [vmem:[#allocation3 + $0x160] sm:$0xff] %v4183
    %4248 = vst [vmem:[#allocation3 + $0x168] sm:$0xff] %v4184
    %4249 = vst [vmem:[#allocation3 + $0x170] sm:$0xff] %v4185
    %4250 = vst [vmem:[#allocation3 + $0x178] sm:$0xff] %v4186
    %4251 = vst [vmem:[#allocation3 + $0x180] sm:$0xff] %v4187
    %4252 = vst [vmem:[#allocation3 + $0x188] sm:$0xff] %v4188
    %4253 = vst [vmem:[#allocation3 + $0x190] sm:$0xff] %v4189
    %4254 = vst [vmem:[#allocation3 + $0x198] sm:$0xff] %v4190
    %4255 = vst [vmem:[#allocation3 + $0x1a0] sm:$0xff] %v4191
    %4256 = vst [vmem:[#allocation3 + $0x1a8] sm:$0xff] %v4192
    %4257 = vst [vmem:[#allocation3 + $0x1b0] sm:$0xff] %v4193
    %4258 = vst [vmem:[#allocation3 + $0x1b8] sm:$0xff] %v4194
    %4259 = vst [vmem:[#allocation3 + $0x1c0] sm:$0xff] %v4195
    %4260 = vst [vmem:[#allocation3 + $0x1c8] sm:$0xff] %v4196
    %4261 = vst [vmem:[#allocation3 + $0x1d0] sm:$0xff] %v4197
    %4262 = vst [vmem:[#allocation3 + $0x1d8] sm:$0xff] %v4198
    %4263 = vst [vmem:[#allocation3 + $0x1e0] sm:$0xff] %v4199
    %4264 = vst [vmem:[#allocation3 + $0x1e8] sm:$0xff] %v4200
    %4265 = vst [vmem:[#allocation3 + $0x1f0] sm:$0xff] %v4201
    %4266 = vst [vmem:[#allocation3 + $0x1f8] sm:$0xff] %v4202
    // Predicated region
    $region22: #{tpu_custom_call.1} parent=1 // pred_check
      _
    $region23: #{tpu_custom_call.1} parent=1 // pred_check_branch
      %4268 = sbr.rel (0) target = $region25
    $region24: #{tpu_custom_call.1} parent=1 // pred_region
      %s4270 = ssub.s32 8192, 8192
      %4271 = vsyncadd [#allocation4], %s4270
      %s4272 = sshll.u32 [#allocation3], 4
      %s4273 = int_to_ptr.vmem [resolvable:$true] %s4272
      %4278 = dma.vmem_to_hbm [thread:$0]  %s4273, 8192, %s5, [#allocation4], 256, 256, 16
    $region25: #{tpu_custom_call.1} parent=1 // pred_fallthru
      _
    // Predicated region
    $region26: #{tpu_custom_call.1} parent=1 // pred_check
      _
    $region27: #{tpu_custom_call.1} parent=1 // pred_check_branch
      %4280 = sbr.rel (0) target = $region29
    $region28: #{tpu_custom_call.1} parent=1 // pred_region
      %4281 = dma.done [#allocation4], 8192
    $region29: #{tpu_custom_call.1} parent=1 // pred_fallthru
      _
    %4282 = vsyncpa [#allocation4], 1

</llo_original>
